<compile_context>
chip_gen: v7x
topology: tpu7x:2x2x1
jax: 0.10.0
libtpu: 0.0.40
codegen_flags: <defaults>
</compile_context>

<pallas_src>
import jax
import jax.numpy as jnp
from jax import lax
from jax.experimental import pallas as pl
from jax.experimental.pallas import tpu as pltpu


# --------------------------------------------------------------------------------------
# helpers
# --------------------------------------------------------------------------------------
def _pick_row_tile(m):
    for c in (512, 256, 128, 64, 32, 16, 8):
        if m % c == 0:
            return c
    return m


def _pick_time_chunk(t):
    for c in (32, 16, 8):
        if t % c == 0:
            return c
    return t


_PARAMS_SEQ = pltpu.CompilerParams(
    dimension_semantics=("arbitrary",),          # serial recurrence over time chunks
    vmem_limit_bytes=32 * 1024 * 1024,
)
_PARAMS_PAR = pltpu.CompilerParams(
    dimension_semantics=("parallel",),           # independent row tiles
    vmem_limit_bytes=32 * 1024 * 1024,
)


def _lstm_cell(gates, c, H):
    """gates: (B, 4H) f32 in PyTorch order i,f,g,o; c: (B, H) f32."""
    i_g = jax.nn.sigmoid(gates[:, 0 * H:1 * H])
    f_g = jax.nn.sigmoid(gates[:, 1 * H:2 * H])
    g_g = jnp.tanh(gates[:, 2 * H:3 * H])
    o_g = jax.nn.sigmoid(gates[:, 3 * H:4 * H])
    c_new = f_g * c + i_g * g_g
    h_new = o_g * jnp.tanh(c_new)
    return h_new, c_new


# --------------------------------------------------------------------------------------
# Pallas kernels
# --------------------------------------------------------------------------------------
def _proj1_kernel(x_ref, w_ref, b_ref, o_ref):
    """Input projection, layer 0: (tm, Din) @ (Din, 8H) + (1, 8H) -> (tm, 8H)."""
    x = x_ref[...].astype(w_ref.dtype)
    o_ref[...] = jnp.dot(x, w_ref[...], preferred_element_type=jnp.float32) + b_ref[...]


def _proj2_kernel(xf_ref, xb_ref, wf_ref, wb_ref, b_ref, o_ref):
    """Input projection, deep layers: split concat(fwd, bwd) input into two matmuls."""
    acc = jnp.dot(xf_ref[...].astype(wf_ref.dtype), wf_ref[...],
                  preferred_element_type=jnp.float32)
    acc = acc + jnp.dot(xb_ref[...].astype(wb_ref.dtype), wb_ref[...],
                        preferred_element_type=jnp.float32)
    o_ref[...] = acc + b_ref[...]


def _bilstm_layer_kernel(gxf_ref, gxb_ref, whf_ref, whb_ref,
                         outf_ref, outb_ref,
                         hf_ref, cf_ref, hb_ref, cb_ref):
    """Fused bidirectional LSTM recurrence for one (non-final) layer, one time chunk.

    gxf_ref: (TC, B, 4H) fwd input-projected gates for chunk i (original time order)
    gxb_ref: (TC, B, 4H) bwd input-projected gates for chunk nc-1-i
    whf/whb: (H, 4H) bf16 recurrent weights
    outf/outb: (TC, B, H) bf16 per-direction hidden outputs
    hf/cf/hb/cb: (B, H) f32 scratch carrying state across grid steps
    """
    TC, B, _ = gxf_ref.shape
    H = whf_ref.shape[0]

    @pl.when(pl.program_id(0) == 0)
    def _():
        hf_ref[...] = jnp.zeros_like(hf_ref)
        cf_ref[...] = jnp.zeros_like(cf_ref)
        hb_ref[...] = jnp.zeros_like(hb_ref)
        cb_ref[...] = jnp.zeros_like(cb_ref)

    w_hh_f = whf_ref[...]
    w_hh_b = whb_ref[...]

    def body(s, carry):
        h_f, c_f, h_b, c_b = carry
        # forward direction: local time s (original time ascending)
        gates_f = gxf_ref[s] + jnp.dot(h_f.astype(w_hh_f.dtype), w_hh_f,
                                       preferred_element_type=jnp.float32)
        h_f, c_f = _lstm_cell(gates_f, c_f, H)
        outf_ref[s] = h_f.astype(outf_ref.dtype)
        # backward direction: local time TC-1-s (original time descending)
        sb = TC - 1 - s
        gates_b = gxb_ref[sb] + jnp.dot(h_b.astype(w_hh_b.dtype), w_hh_b,
                                        preferred_element_type=jnp.float32)
        h_b, c_b = _lstm_cell(gates_b, c_b, H)
        outb_ref[sb] = h_b.astype(outb_ref.dtype)
        return h_f, c_f, h_b, c_b

    unroll = True if TC <= 16 else 4
    carry0 = (hf_ref[...], cf_ref[...], hb_ref[...], cb_ref[...])
    h_f, c_f, h_b, c_b = lax.fori_loop(0, TC, body, carry0, unroll=unroll)
    hf_ref[...] = h_f
    cf_ref[...] = c_f
    hb_ref[...] = h_b
    cb_ref[...] = c_b


def _bilstm_last_kernel(gxf_ref, gxb_ref, whf_ref, wcls_ref, bcls_ref,
                        logit_ref, hf_ref, cf_ref):
    """Final layer: fwd recurrence + single bwd step at time T-1 + fused classifier.

    gxf_ref: (TC, B, 4H) fwd gates for chunk i
    gxb_ref: (TC, B, 4H) bwd gates for the LAST chunk (constant index map)
    wcls_ref: (1, 2H) f32; bcls_ref: (1, 1) f32; logit_ref: (B, 1) f32
    """
    TC, B, _ = gxf_ref.shape
    H = whf_ref.shape[0]

    @pl.when(pl.program_id(0) == 0)
    def _():
        hf_ref[...] = jnp.zeros_like(hf_ref)
        cf_ref[...] = jnp.zeros_like(cf_ref)

    w_hh_f = whf_ref[...]

    def body(s, carry):
        h_f, c_f = carry
        gates_f = gxf_ref[s] + jnp.dot(h_f.astype(w_hh_f.dtype), w_hh_f,
                                       preferred_element_type=jnp.float32)
        return _lstm_cell(gates_f, c_f, H)

    unroll = True if TC <= 16 else 4
    h_f, c_f = lax.fori_loop(0, TC, body, (hf_ref[...], cf_ref[...]), unroll=unroll)
    hf_ref[...] = h_f
    cf_ref[...] = c_f

    @pl.when(pl.program_id(0) == pl.num_programs(0) - 1)
    def _():
        # Backward-direction output at original time T-1 is exactly one LSTM step
        # from zero state: gates = x_{T-1} @ W_ih_b + b_b (h0 term vanishes).
        gates_b = gxb_ref[TC - 1]
        h_b, _ = _lstm_cell(gates_b, jnp.zeros((B, H), jnp.float32), H)
        # Classifier fused as a VPU lane reduction: logits = [h_f, h_b] @ W_cls^T + b.
        w_cls = wcls_ref[...]                                      # (1, 2H)
        logit = (jnp.sum(h_f * w_cls[:, :H], axis=-1, keepdims=True)
                 + jnp.sum(h_b * w_cls[:, H:], axis=-1, keepdims=True)
                 + bcls_ref[...])
        logit_ref[...] = logit


# --------------------------------------------------------------------------------------
# pallas_call wrappers
# --------------------------------------------------------------------------------------
def _input_projection_l0(x2d, w_cat, b_cat):
    M, Din = x2d.shape
    G = w_cat.shape[1]
    tm = _pick_row_tile(M)
    return pl.pallas_call(
        _proj1_kernel,
        out_shape=jax.ShapeDtypeStruct((M, G), jnp.float32),
        grid_spec=pltpu.PrefetchScalarGridSpec(
            num_scalar_prefetch=0,
            grid=(M // tm,),
            in_specs=[
                pl.BlockSpec((tm, Din), lambda i: (i, 0)),
                pl.BlockSpec((Din, G), lambda i: (0, 0)),
                pl.BlockSpec((1, G), lambda i: (0, 0)),
            ],
            out_specs=pl.BlockSpec((tm, G), lambda i: (i, 0)),
        ),
        compiler_params=_PARAMS_PAR,
    )(x2d, w_cat, b_cat)


def _input_projection_deep(xf2d, xb2d, wf, wb, b_cat):
    M, Hin = xf2d.shape
    G = wf.shape[1]
    tm = _pick_row_tile(M)
    return pl.pallas_call(
        _proj2_kernel,
        out_shape=jax.ShapeDtypeStruct((M, G), jnp.float32),
        grid_spec=pltpu.PrefetchScalarGridSpec(
            num_scalar_prefetch=0,
            grid=(M // tm,),
            in_specs=[
                pl.BlockSpec((tm, Hin), lambda i: (i, 0)),
                pl.BlockSpec((tm, Hin), lambda i: (i, 0)),
                pl.BlockSpec((Hin, G), lambda i: (0, 0)),
                pl.BlockSpec((Hin, G), lambda i: (0, 0)),
                pl.BlockSpec((1, G), lambda i: (0, 0)),
            ],
            out_specs=pl.BlockSpec((tm, G), lambda i: (i, 0)),
        ),
        compiler_params=_PARAMS_PAR,
    )(xf2d, xb2d, wf, wb, b_cat)


def _bilstm_layer(gx, w_hh_f, w_hh_b):
    """gx: (T, B, 8H) f32 pre-projected gates -> (out_f, out_b), each (T, B, H) bf16."""
    T, B, G = gx.shape
    H = w_hh_f.shape[0]
    TC = _pick_time_chunk(T)
    nc = T // TC
    # TODO(synk): on v7x (2 TensorCores/chip), run the two directions on separate cores
    # via a parallel direction grid axis / pl.core_map for ~2x on the recurrent part.
    return pl.pallas_call(
        _bilstm_layer_kernel,
        out_shape=(jax.ShapeDtypeStruct((T, B, H), jnp.bfloat16),
                   jax.ShapeDtypeStruct((T, B, H), jnp.bfloat16)),
        grid_spec=pltpu.PrefetchScalarGridSpec(
            num_scalar_prefetch=0,
            grid=(nc,),
            in_specs=[
                pl.BlockSpec((TC, B, 4 * H), lambda i: (i, 0, 0)),           # fwd gates
                pl.BlockSpec((TC, B, 4 * H), lambda i: (nc - 1 - i, 0, 1)),  # bwd gates
                pl.BlockSpec((H, 4 * H), lambda i: (0, 0)),
                pl.BlockSpec((H, 4 * H), lambda i: (0, 0)),
            ],
            out_specs=(
                pl.BlockSpec((TC, B, H), lambda i: (i, 0, 0)),
                pl.BlockSpec((TC, B, H), lambda i: (nc - 1 - i, 0, 0)),
            ),
            scratch_shapes=[pltpu.VMEM((B, H), jnp.float32)] * 4,
        ),
        compiler_params=_PARAMS_SEQ,
    )(gx, gx, w_hh_f, w_hh_b)


def _bilstm_last(gx, w_hh_f, w_cls, b_cls):
    """Final layer + classifier: gx (T, B, 8H) -> logits (B, 1)."""
    T, B, G = gx.shape
    H = w_hh_f.shape[0]
    TC = _pick_time_chunk(T)
    nc = T // TC
    return pl.pallas_call(
        _bilstm_last_kernel,
        out_shape=jax.ShapeDtypeStruct((B, 1), jnp.float32),
        grid_spec=pltpu.PrefetchScalarGridSpec(
            num_scalar_prefetch=0,
            grid=(nc,),
            in_specs=[
                pl.BlockSpec((TC, B, 4 * H), lambda i: (i, 0, 0)),       # fwd gates
                pl.BlockSpec((TC, B, 4 * H), lambda i: (nc - 1, 0, 1)),  # bwd gates @ last chunk
                pl.BlockSpec((H, 4 * H), lambda i: (0, 0)),
                pl.BlockSpec((1, 2 * H), lambda i: (0, 0)),
                pl.BlockSpec((1, 1), lambda i: (0, 0)),
            ],
            out_specs=pl.BlockSpec((B, 1), lambda i: (0, 0)),
            scratch_shapes=[pltpu.VMEM((B, H), jnp.float32)] * 2,
        ),
        compiler_params=_PARAMS_SEQ,
    )(gx, gx, w_hh_f, w_cls, b_cls)


# --------------------------------------------------------------------------------------
# Parameter init (deterministic, mirrors the PyTorch module's shapes)
# --------------------------------------------------------------------------------------
def init_params(key, n_vocab, embedding_dim, hidden_dim, n_layers, bidirectional=True):
    if not bidirectional:
        raise NotImplementedError("this Pallas port implements the bidirectional config")
    H = hidden_dim
    bound = 1.0 / float(H) ** 0.5
    keys = jax.random.split(key, 1 + 8 * n_layers + 2)
    ptr = [0]

    def nxt():
        k = keys[ptr[0]]
        ptr[0] += 1
        return k

    emb = jax.random.normal(nxt(), (n_vocab, embedding_dim), jnp.float32) * 0.1
    emb = emb.at[0].set(0.0)                               # padding_idx=0

    layers = []
    for layer in range(n_layers):
        d_in = embedding_dim if layer == 0 else 2 * H
        per_dir = []
        for _ in range(2):                                  # fwd, bwd
            w_ih = jax.random.uniform(nxt(), (4 * H, d_in), jnp.float32, -bound, bound)
            w_hh = jax.random.uniform(nxt(), (4 * H, H), jnp.float32, -bound, bound)
            b_ih = jax.random.uniform(nxt(), (4 * H,), jnp.float32, -bound, bound)
            b_hh = jax.random.uniform(nxt(), (4 * H,), jnp.float32, -bound, bound)
            per_dir.append((w_ih, w_hh, b_ih + b_hh))
        (w_ih_f, w_hh_f, b_f), (w_ih_b, w_hh_b, b_b) = per_dir

        w_ih_cat = jnp.concatenate([w_ih_f.T, w_ih_b.T], axis=1)        # (d_in, 8H)
        b_cat = jnp.concatenate([b_f, b_b]).reshape(1, 8 * H)           # (1, 8H), f32
        lp = dict(
            b_cat=b_cat,
            w_hh_f_t=w_hh_f.T.astype(jnp.bfloat16),                     # (H, 4H)
            w_hh_b_t=w_hh_b.T.astype(jnp.bfloat16),                     # (H, 4H)
        )
        if layer == 0:
            lp["w_ih_cat"] = w_ih_cat.astype(jnp.bfloat16)              # (E, 8H)
        else:
            lp["w_ih_f_in"] = w_ih_cat[:H].astype(jnp.bfloat16)         # rows for prev fwd
            lp["w_ih_b_in"] = w_ih_cat[H:].astype(jnp.bfloat16)         # rows for prev bwd
        layers.append(lp)

    cls_bound = 1.0 / float(2 * H) ** 0.5
    w_cls = jax.random.uniform(nxt(), (1, 2 * H), jnp.float32, -cls_bound, cls_bound)
    b_cls = jax.random.uniform(nxt(), (1, 1), jnp.float32, -cls_bound, cls_bound)
    return dict(emb=emb, lstm=layers, w_cls=w_cls, b_cls=b_cls)


# --------------------------------------------------------------------------------------
# Forward pass
# --------------------------------------------------------------------------------------
@jax.jit
def sentence_classifier2_forward(params, token_ids):
    # Embedding gather directly into time-major layout (T, B, E); padding row is zero.
    x_tm = jnp.take(params["emb"], token_ids.T, axis=0)    # (T, B, E) f32
    T, B, E = x_tm.shape

    layers = params["lstm"]
    n_layers = len(layers)

    out_f = out_b = None
    logits = None
    for li, lp in enumerate(layers):
        # Hoisted input projection (both directions, bias folded in): (T*B, Din) matmul.
        if li == 0:
            gx2d = _input_projection_l0(x_tm.reshape(T * B, E),
                                        lp["w_ih_cat"], lp["b_cat"])
        else:
            Hp = out_f.shape[-1]
            gx2d = _input_projection_deep(out_f.reshape(T * B, Hp),
                                          out_b.reshape(T * B, Hp),
                                          lp["w_ih_f_in"], lp["w_ih_b_in"], lp["b_cat"])
        gx = gx2d.reshape(T, B, -1)                         # (T, B, 8H), contiguous reshape

        if li < n_layers - 1:
            out_f, out_b = _bilstm_layer(gx, lp["w_hh_f_t"], lp["w_hh_b_t"])
            # inter-layer nn.Dropout: identity in eval mode.
        else:
            # Final layer: classifier fused into the recurrence epilogue;
            # pre-classifier nn.Dropout is identity in eval mode.
            logits = _bilstm_last(gx, lp["w_hh_f_t"], params["w_cls"], params["b_cls"])
    return logits


# --------------------------------------------------------------------------------------
if __name__ == "__main__":
    n_vocab = 100
    embedding_dim = 32
    hidden_dim = 32
    n_layers = 2
    batch = 2
    seq_len = 8

    key = jax.random.PRNGKey(0)
    k_params, k_tokens = jax.random.split(key)

    params = init_params(k_params, n_vocab, embedding_dim, hidden_dim, n_layers,
                         bidirectional=True)
    token_ids = jax.random.randint(k_tokens, (batch, seq_len), minval=0, maxval=n_vocab,
                                   dtype=jnp.int32)

    logits = sentence_classifier2_forward(params, token_ids)
    jax.block_until_ready(logits)
    assert logits.shape == (batch, 1)
    print("KERNEL_OK")
</pallas_src>

<mosaic_0001>
module attributes {stable_mosaic.version = 11 : i64} {
  func.func @_proj1_kernel(%arg0: i32, %arg1: memref<16x32xf32, #tpu.memory_space<vmem>>, %arg2: memref<32x256xbf16, #tpu.memory_space<vmem>>, %arg3: memref<1x256xf32, #tpu.memory_space<vmem>>, %arg4: memref<16x256xf32, #tpu.memory_space<vmem>>) attributes {dimension_semantics = [#tpu.dimension_semantics<parallel>], iteration_bounds = array<i64: 1>, scalar_prefetch = 0 : i64, scratch_operands = 0 : i64, tpu.core_type = #tpu.core_type<tc>, window_params = [{transform_indices = @transform_0, window_bounds = array<i64: 16, 32>}, {pipeline_mode = #tpu.pipeline_mode<synchronous>, transform_indices = @transform_1, window_bounds = array<i64: 32, 256>}, {pipeline_mode = #tpu.pipeline_mode<synchronous>, transform_indices = @transform_2, window_bounds = array<i64: 1, 256>}, {transform_indices = @transform_3, window_bounds = array<i64: 16, 256>}]} {
    %c0 = arith.constant 0 : index
    %c0_0 = arith.constant 0 : index
    %0 = vector.load %arg1[%c0, %c0_0] : memref<16x32xf32, #tpu.memory_space<vmem>>, vector<16x32xf32>
    %1 = arith.truncf %0 : vector<16x32xf32> to vector<16x32xbf16>
    %c0_1 = arith.constant 0 : index
    %c0_2 = arith.constant 0 : index
    %2 = vector.load %arg2[%c0_1, %c0_2] : memref<32x256xbf16, #tpu.memory_space<vmem>>, vector<32x256xbf16>
    %cst = arith.constant dense<0.000000e+00> : vector<16x256xf32>
    %3 = tpu.matmul %1, %2, %cst {dimension_numbers = #tpu.dot_dimension_numbers<[1], [0], [0], [1], [0, 0, 1, 1], [], []>} : vector<16x32xbf16>, vector<32x256xbf16>, vector<16x256xf32> -> vector<16x256xf32>
    %c0_3 = arith.constant 0 : index
    %c0_4 = arith.constant 0 : index
    %4 = vector.load %arg3[%c0_3, %c0_4] : memref<1x256xf32, #tpu.memory_space<vmem>>, vector<1x256xf32>
    %5 = vector.broadcast %4 : vector<1x256xf32> to vector<16x256xf32>
    %6 = arith.addf %3, %5 : vector<16x256xf32>
    %c0_5 = arith.constant 0 : index
    %c0_6 = arith.constant 0 : index
    %7 = vector.load %arg4[%c0_5, %c0_6] : memref<16x256xf32, #tpu.memory_space<vmem>>, vector<16x256xf32>
    tpu.vector_store %arg4[%c0_5, %c0_6], %6 {strides = array<i32>} : memref<16x256xf32, #tpu.memory_space<vmem>>, vector<16x256xf32>,
    return
  }
  func.func @transform_0(%arg0: i32) -> (i32, i32) {
    %c0_i32 = arith.constant 0 : i32
    %c0_i32_0 = arith.constant 0 : i32
    return %arg0, %c0_i32 : i32, i32
  }
  func.func @transform_1(%arg0: i32) -> (i32, i32) {
    %c0_i32 = arith.constant 0 : i32
    %c0_i32_0 = arith.constant 0 : i32
    %c0_i32_1 = arith.constant 0 : i32
    return %c0_i32, %c0_i32_0 : i32, i32
  }
  func.func @transform_2(%arg0: i32) -> (i32, i32) {
    %c0_i32 = arith.constant 0 : i32
    %c0_i32_0 = arith.constant 0 : i32
    %c0_i32_1 = arith.constant 0 : i32
    return %c0_i32, %c0_i32_0 : i32, i32
  }
  func.func @transform_3(%arg0: i32) -> (i32, i32) {
    %c0_i32 = arith.constant 0 : i32
    %c0_i32_0 = arith.constant 0 : i32
    return %arg0, %c0_i32 : i32, i32
  }
}

module attributes {stable_mosaic.version = 11 : i64} {
  func.func @_proj2_kernel(%arg0: i32, %arg1: memref<16x32xbf16, #tpu.memory_space<vmem>>, %arg2: memref<16x32xbf16, #tpu.memory_space<vmem>>, %arg3: memref<32x256xbf16, #tpu.memory_space<vmem>>, %arg4: memref<32x256xbf16, #tpu.memory_space<vmem>>, %arg5: memref<1x256xf32, #tpu.memory_space<vmem>>, %arg6: memref<16x256xf32, #tpu.memory_space<vmem>>) attributes {dimension_semantics = [#tpu.dimension_semantics<parallel>], iteration_bounds = array<i64: 1>, scalar_prefetch = 0 : i64, scratch_operands = 0 : i64, tpu.core_type = #tpu.core_type<tc>, window_params = [{transform_indices = @transform_0, window_bounds = array<i64: 16, 32>}, {transform_indices = @transform_1, window_bounds = array<i64: 16, 32>}, {pipeline_mode = #tpu.pipeline_mode<synchronous>, transform_indices = @transform_2, window_bounds = array<i64: 32, 256>}, {pipeline_mode = #tpu.pipeline_mode<synchronous>, transform_indices = @transform_3, window_bounds = array<i64: 32, 256>}, {pipeline_mode = #tpu.pipeline_mode<synchronous>, transform_indices = @transform_4, window_bounds = array<i64: 1, 256>}, {transform_indices = @transform_5, window_bounds = array<i64: 16, 256>}]} {
    %c0 = arith.constant 0 : index
    %c0_0 = arith.constant 0 : index
    %0 = vector.load %arg1[%c0, %c0_0] : memref<16x32xbf16, #tpu.memory_space<vmem>>, vector<16x32xbf16>
    %c0_1 = arith.constant 0 : index
    %c0_2 = arith.constant 0 : index
    %1 = vector.load %arg3[%c0_1, %c0_2] : memref<32x256xbf16, #tpu.memory_space<vmem>>, vector<32x256xbf16>
    %cst = arith.constant dense<0.000000e+00> : vector<16x256xf32>
    %2 = tpu.matmul %0, %1, %cst {dimension_numbers = #tpu.dot_dimension_numbers<[1], [0], [0], [1], [0, 0, 1, 1], [], []>} : vector<16x32xbf16>, vector<32x256xbf16>, vector<16x256xf32> -> vector<16x256xf32>
    %c0_3 = arith.constant 0 : index
    %c0_4 = arith.constant 0 : index
    %3 = vector.load %arg2[%c0_3, %c0_4] : memref<16x32xbf16, #tpu.memory_space<vmem>>, vector<16x32xbf16>
    %c0_5 = arith.constant 0 : index
    %c0_6 = arith.constant 0 : index
    %4 = vector.load %arg4[%c0_5, %c0_6] : memref<32x256xbf16, #tpu.memory_space<vmem>>, vector<32x256xbf16>
    %cst_7 = arith.constant dense<0.000000e+00> : vector<16x256xf32>
    %5 = tpu.matmul %3, %4, %cst_7 {dimension_numbers = #tpu.dot_dimension_numbers<[1], [0], [0], [1], [0, 0, 1, 1], [], []>} : vector<16x32xbf16>, vector<32x256xbf16>, vector<16x256xf32> -> vector<16x256xf32>
    %6 = arith.addf %2, %5 : vector<16x256xf32>
    %c0_8 = arith.constant 0 : index
    %c0_9 = arith.constant 0 : index
    %7 = vector.load %arg5[%c0_8, %c0_9] : memref<1x256xf32, #tpu.memory_space<vmem>>, vector<1x256xf32>
    %8 = vector.broadcast %7 : vector<1x256xf32> to vector<16x256xf32>
    %9 = arith.addf %6, %8 : vector<16x256xf32>
    %c0_10 = arith.constant 0 : index
    %c0_11 = arith.constant 0 : index
    %10 = vector.load %arg6[%c0_10, %c0_11] : memref<16x256xf32, #tpu.memory_space<vmem>>, vector<16x256xf32>
    tpu.vector_store %arg6[%c0_10, %c0_11], %9 {strides = array<i32>} : memref<16x256xf32, #tpu.memory_space<vmem>>, vector<16x256xf32>,
    return
  }
  func.func @transform_0(%arg0: i32) -> (i32, i32) {
    %c0_i32 = arith.constant 0 : i32
    %c0_i32_0 = arith.constant 0 : i32
    return %arg0, %c0_i32 : i32, i32
  }
  func.func @transform_1(%arg0: i32) -> (i32, i32) {
    %c0_i32 = arith.constant 0 : i32
    %c0_i32_0 = arith.constant 0 : i32
    return %arg0, %c0_i32 : i32, i32
  }
  func.func @transform_2(%arg0: i32) -> (i32, i32) {
    %c0_i32 = arith.constant 0 : i32
    %c0_i32_0 = arith.constant 0 : i32
    %c0_i32_1 = arith.constant 0 : i32
    return %c0_i32, %c0_i32_0 : i32, i32
  }
  func.func @transform_3(%arg0: i32) -> (i32, i32) {
    %c0_i32 = arith.constant 0 : i32
    %c0_i32_0 = arith.constant 0 : i32
    %c0_i32_1 = arith.constant 0 : i32
    return %c0_i32, %c0_i32_0 : i32, i32
  }
  func.func @transform_4(%arg0: i32) -> (i32, i32) {
    %c0_i32 = arith.constant 0 : i32
    %c0_i32_0 = arith.constant 0 : i32
    %c0_i32_1 = arith.constant 0 : i32
    return %c0_i32, %c0_i32_0 : i32, i32
  }
  func.func @transform_5(%arg0: i32) -> (i32, i32) {
    %c0_i32 = arith.constant 0 : i32
    %c0_i32_0 = arith.constant 0 : i32
    return %arg0, %c0_i32 : i32, i32
  }
}

module attributes {stable_mosaic.version = 11 : i64} {
  func.func @_bilstm_last_kernel(%arg0: i32, %arg1: memref<8x2x128xf32, #tpu.memory_space<vmem>>, %arg2: memref<8x2x128xf32, #tpu.memory_space<vmem>>, %arg3: memref<32x128xbf16, #tpu.memory_space<vmem>>, %arg4: memref<1x64xf32, #tpu.memory_space<vmem>>, %arg5: memref<1x1xf32, #tpu.memory_space<vmem>>, %arg6: memref<2x1xf32, #tpu.memory_space<vmem>>, %arg7: memref<2x32xf32, #tpu.memory_space<vmem>>, %arg8: memref<2x32xf32, #tpu.memory_space<vmem>>) attributes {dimension_semantics = [#tpu.dimension_semantics<arbitrary>], iteration_bounds = array<i64: 1>, scalar_prefetch = 0 : i64, scratch_operands = 2 : i64, tpu.core_type = #tpu.core_type<tc>, window_params = [{transform_indices = @transform_0, window_bounds = array<i64: 8, 2, 128>}, {transform_indices = @transform_1, window_bounds = array<i64: 8, 2, 128>}, {pipeline_mode = #tpu.pipeline_mode<synchronous>, transform_indices = @transform_2, window_bounds = array<i64: 32, 128>}, {pipeline_mode = #tpu.pipeline_mode<synchronous>, transform_indices = @transform_3, window_bounds = array<i64: 1, 64>}, {pipeline_mode = #tpu.pipeline_mode<synchronous>, transform_indices = @transform_4, window_bounds = array<i64: 1, 1>}, {pipeline_mode = #tpu.pipeline_mode<synchronous>, transform_indices = @transform_5, window_bounds = array<i64: 2, 1>}]} {
    %c0_i32 = arith.constant 0 : i32
    %0 = arith.cmpi eq, %arg0, %c0_i32 : i32
    %1 = arith.extui %0 : i1 to i32
    %c0_i32_0 = arith.constant 0 : i32
    %2 = arith.cmpi ne, %1, %c0_i32_0 : i32
    scf.if %2 {
      %cst_60 = arith.constant 0.000000e+00 : f32
      %259 = vector.broadcast %cst_60 : f32 to vector<2x32xf32>
      %c0_61 = arith.constant 0 : index
      %c0_62 = arith.constant 0 : index
      %260 = vector.load %arg7[%c0_61, %c0_62] : memref<2x32xf32, #tpu.memory_space<vmem>>, vector<2x32xf32>
      tpu.vector_store %arg7[%c0_61, %c0_62], %259 {strides = array<i32>} : memref<2x32xf32, #tpu.memory_space<vmem>>, vector<2x32xf32>,
      %cst_63 = arith.constant 0.000000e+00 : f32
      %261 = vector.broadcast %cst_63 : f32 to vector<2x32xf32>
      %c0_64 = arith.constant 0 : index
      %c0_65 = arith.constant 0 : index
      %262 = vector.load %arg8[%c0_64, %c0_65] : memref<2x32xf32, #tpu.memory_space<vmem>>, vector<2x32xf32>
      tpu.vector_store %arg8[%c0_64, %c0_65], %261 {strides = array<i32>} : memref<2x32xf32, #tpu.memory_space<vmem>>, vector<2x32xf32>,
    } else {
    }
    %c0 = arith.constant 0 : index
    %c0_1 = arith.constant 0 : index
    %3 = vector.load %arg3[%c0, %c0_1] : memref<32x128xbf16, #tpu.memory_space<vmem>>, vector<32x128xbf16>
    %c0_2 = arith.constant 0 : index
    %c0_3 = arith.constant 0 : index
    %4 = vector.load %arg7[%c0_2, %c0_3] : memref<2x32xf32, #tpu.memory_space<vmem>>, vector<2x32xf32>
    %c0_4 = arith.constant 0 : index
    %c0_5 = arith.constant 0 : index
    %5 = vector.load %arg8[%c0_4, %c0_5] : memref<2x32xf32, #tpu.memory_space<vmem>>, vector<2x32xf32>
    %c0_i32_6 = arith.constant 0 : i32
    %6 = arith.index_cast %c0_i32_6 : i32 to index
    %c0_7 = arith.constant 0 : index
    %c0_8 = arith.constant 0 : index
    %7 = vector.load %arg1[%6, %c0_7, %c0_8] : memref<8x2x128xf32, #tpu.memory_space<vmem>>, vector<1x2x128xf32>
    %8 = vector.shape_cast %7 : vector<1x2x128xf32> to vector<2x128xf32>
    %9 = arith.truncf %4 : vector<2x32xf32> to vector<2x32xbf16>
    %cst = arith.constant dense<0.000000e+00> : vector<2x128xf32>
    %10 = tpu.matmul %9, %3, %cst {dimension_numbers = #tpu.dot_dimension_numbers<[1], [0], [0], [1], [0, 0, 1, 1], [], []>} : vector<2x32xbf16>, vector<32x128xbf16>, vector<2x128xf32> -> vector<2x128xf32>
    %11 = arith.addf %8, %10 : vector<2x128xf32>
    %12 = vector.extract_strided_slice %11 {offsets = [0, 0], sizes = [2, 32], strides = [1, 1]} : vector<2x128xf32> to vector<2x32xf32>
    %13 = arith.negf %12 : vector<2x32xf32>
    %14 = math.exp %13 : vector<2x32xf32>
    %cst_9 = arith.constant 1.000000e+00 : f32
    %15 = vector.broadcast %cst_9 : f32 to vector<2x32xf32>
    %16 = arith.addf %15, %14 : vector<2x32xf32>
    %17 = arith.divf %15, %16 : vector<2x32xf32>
    %18 = vector.extract_strided_slice %11 {offsets = [0, 32], sizes = [2, 32], strides = [1, 1]} : vector<2x128xf32> to vector<2x32xf32>
    %19 = arith.negf %18 : vector<2x32xf32>
    %20 = math.exp %19 : vector<2x32xf32>
    %cst_10 = arith.constant 1.000000e+00 : f32
    %21 = vector.broadcast %cst_10 : f32 to vector<2x32xf32>
    %22 = arith.addf %21, %20 : vector<2x32xf32>
    %23 = arith.divf %21, %22 : vector<2x32xf32>
    %24 = vector.extract_strided_slice %11 {offsets = [0, 64], sizes = [2, 32], strides = [1, 1]} : vector<2x128xf32> to vector<2x32xf32>
    %25 = math.tanh %24 : vector<2x32xf32>
    %26 = vector.extract_strided_slice %11 {offsets = [0, 96], sizes = [2, 32], strides = [1, 1]} : vector<2x128xf32> to vector<2x32xf32>
    %27 = arith.negf %26 : vector<2x32xf32>
    %28 = math.exp %27 : vector<2x32xf32>
    %cst_11 = arith.constant 1.000000e+00 : f32
    %29 = vector.broadcast %cst_11 : f32 to vector<2x32xf32>
    %30 = arith.addf %29, %28 : vector<2x32xf32>
    %31 = arith.divf %29, %30 : vector<2x32xf32>
    %32 = arith.mulf %23, %5 : vector<2x32xf32>
    %33 = arith.mulf %17, %25 : vector<2x32xf32>
    %34 = arith.addf %32, %33 : vector<2x32xf32>
    %35 = math.tanh %34 : vector<2x32xf32>
    %36 = arith.mulf %31, %35 : vector<2x32xf32>
    %c1_i32 = arith.constant 1 : i32
    %37 = arith.index_cast %c1_i32 : i32 to index
    %c0_12 = arith.constant 0 : index
    %c0_13 = arith.constant 0 : index
    %38 = vector.load %arg1[%37, %c0_12, %c0_13] : memref<8x2x128xf32, #tpu.memory_space<vmem>>, vector<1x2x128xf32>
    %39 = vector.shape_cast %38 : vector<1x2x128xf32> to vector<2x128xf32>
    %40 = arith.truncf %36 : vector<2x32xf32> to vector<2x32xbf16>
    %cst_14 = arith.constant dense<0.000000e+00> : vector<2x128xf32>
    %41 = tpu.matmul %40, %3, %cst_14 {dimension_numbers = #tpu.dot_dimension_numbers<[1], [0], [0], [1], [0, 0, 1, 1], [], []>} : vector<2x32xbf16>, vector<32x128xbf16>, vector<2x128xf32> -> vector<2x128xf32>
    %42 = arith.addf %39, %41 : vector<2x128xf32>
    %43 = vector.extract_strided_slice %42 {offsets = [0, 0], sizes = [2, 32], strides = [1, 1]} : vector<2x128xf32> to vector<2x32xf32>
    %44 = arith.negf %43 : vector<2x32xf32>
    %45 = math.exp %44 : vector<2x32xf32>
    %cst_15 = arith.constant 1.000000e+00 : f32
    %46 = vector.broadcast %cst_15 : f32 to vector<2x32xf32>
    %47 = arith.addf %46, %45 : vector<2x32xf32>
    %48 = arith.divf %46, %47 : vector<2x32xf32>
    %49 = vector.extract_strided_slice %42 {offsets = [0, 32], sizes = [2, 32], strides = [1, 1]} : vector<2x128xf32> to vector<2x32xf32>
    %50 = arith.negf %49 : vector<2x32xf32>
    %51 = math.exp %50 : vector<2x32xf32>
    %cst_16 = arith.constant 1.000000e+00 : f32
    %52 = vector.broadcast %cst_16 : f32 to vector<2x32xf32>
    %53 = arith.addf %52, %51 : vector<2x32xf32>
    %54 = arith.divf %52, %53 : vector<2x32xf32>
    %55 = vector.extract_strided_slice %42 {offsets = [0, 64], sizes = [2, 32], strides = [1, 1]} : vector<2x128xf32> to vector<2x32xf32>
    %56 = math.tanh %55 : vector<2x32xf32>
    %57 = vector.extract_strided_slice %42 {offsets = [0, 96], sizes = [2, 32], strides = [1, 1]} : vector<2x128xf32> to vector<2x32xf32>
    %58 = arith.negf %57 : vector<2x32xf32>
    %59 = math.exp %58 : vector<2x32xf32>
    %cst_17 = arith.constant 1.000000e+00 : f32
    %60 = vector.broadcast %cst_17 : f32 to vector<2x32xf32>
    %61 = arith.addf %60, %59 : vector<2x32xf32>
    %62 = arith.divf %60, %61 : vector<2x32xf32>
    %63 = arith.mulf %54, %34 : vector<2x32xf32>
    %64 = arith.mulf %48, %56 : vector<2x32xf32>
    %65 = arith.addf %63, %64 : vector<2x32xf32>
    %66 = math.tanh %65 : vector<2x32xf32>
    %67 = arith.mulf %62, %66 : vector<2x32xf32>
    %c2_i32 = arith.constant 2 : i32
    %68 = arith.index_cast %c2_i32 : i32 to index
    %c0_18 = arith.constant 0 : index
    %c0_19 = arith.constant 0 : index
    %69 = vector.load %arg1[%68, %c0_18, %c0_19] : memref<8x2x128xf32, #tpu.memory_space<vmem>>, vector<1x2x128xf32>
    %70 = vector.shape_cast %69 : vector<1x2x128xf32> to vector<2x128xf32>
    %71 = arith.truncf %67 : vector<2x32xf32> to vector<2x32xbf16>
    %cst_20 = arith.constant dense<0.000000e+00> : vector<2x128xf32>
    %72 = tpu.matmul %71, %3, %cst_20 {dimension_numbers = #tpu.dot_dimension_numbers<[1], [0], [0], [1], [0, 0, 1, 1], [], []>} : vector<2x32xbf16>, vector<32x128xbf16>, vector<2x128xf32> -> vector<2x128xf32>
    %73 = arith.addf %70, %72 : vector<2x128xf32>
    %74 = vector.extract_strided_slice %73 {offsets = [0, 0], sizes = [2, 32], strides = [1, 1]} : vector<2x128xf32> to vector<2x32xf32>
    %75 = arith.negf %74 : vector<2x32xf32>
    %76 = math.exp %75 : vector<2x32xf32>
    %cst_21 = arith.constant 1.000000e+00 : f32
    %77 = vector.broadcast %cst_21 : f32 to vector<2x32xf32>
    %78 = arith.addf %77, %76 : vector<2x32xf32>
    %79 = arith.divf %77, %78 : vector<2x32xf32>
    %80 = vector.extract_strided_slice %73 {offsets = [0, 32], sizes = [2, 32], strides = [1, 1]} : vector<2x128xf32> to vector<2x32xf32>
    %81 = arith.negf %80 : vector<2x32xf32>
    %82 = math.exp %81 : vector<2x32xf32>
    %cst_22 = arith.constant 1.000000e+00 : f32
    %83 = vector.broadcast %cst_22 : f32 to vector<2x32xf32>
    %84 = arith.addf %83, %82 : vector<2x32xf32>
    %85 = arith.divf %83, %84 : vector<2x32xf32>
    %86 = vector.extract_strided_slice %73 {offsets = [0, 64], sizes = [2, 32], strides = [1, 1]} : vector<2x128xf32> to vector<2x32xf32>
    %87 = math.tanh %86 : vector<2x32xf32>
    %88 = vector.extract_strided_slice %73 {offsets = [0, 96], sizes = [2, 32], strides = [1, 1]} : vector<2x128xf32> to vector<2x32xf32>
    %89 = arith.negf %88 : vector<2x32xf32>
    %90 = math.exp %89 : vector<2x32xf32>
    %cst_23 = arith.constant 1.000000e+00 : f32
    %91 = vector.broadcast %cst_23 : f32 to vector<2x32xf32>
    %92 = arith.addf %91, %90 : vector<2x32xf32>
    %93 = arith.divf %91, %92 : vector<2x32xf32>
    %94 = arith.mulf %85, %65 : vector<2x32xf32>
    %95 = arith.mulf %79, %87 : vector<2x32xf32>
    %96 = arith.addf %94, %95 : vector<2x32xf32>
    %97 = math.tanh %96 : vector<2x32xf32>
    %98 = arith.mulf %93, %97 : vector<2x32xf32>
    %c3_i32 = arith.constant 3 : i32
    %99 = arith.index_cast %c3_i32 : i32 to index
    %c0_24 = arith.constant 0 : index
    %c0_25 = arith.constant 0 : index
    %100 = vector.load %arg1[%99, %c0_24, %c0_25] : memref<8x2x128xf32, #tpu.memory_space<vmem>>, vector<1x2x128xf32>
    %101 = vector.shape_cast %100 : vector<1x2x128xf32> to vector<2x128xf32>
    %102 = arith.truncf %98 : vector<2x32xf32> to vector<2x32xbf16>
    %cst_26 = arith.constant dense<0.000000e+00> : vector<2x128xf32>
    %103 = tpu.matmul %102, %3, %cst_26 {dimension_numbers = #tpu.dot_dimension_numbers<[1], [0], [0], [1], [0, 0, 1, 1], [], []>} : vector<2x32xbf16>, vector<32x128xbf16>, vector<2x128xf32> -> vector<2x128xf32>
    %104 = arith.addf %101, %103 : vector<2x128xf32>
    %105 = vector.extract_strided_slice %104 {offsets = [0, 0], sizes = [2, 32], strides = [1, 1]} : vector<2x128xf32> to vector<2x32xf32>
    %106 = arith.negf %105 : vector<2x32xf32>
    %107 = math.exp %106 : vector<2x32xf32>
    %cst_27 = arith.constant 1.000000e+00 : f32
    %108 = vector.broadcast %cst_27 : f32 to vector<2x32xf32>
    %109 = arith.addf %108, %107 : vector<2x32xf32>
    %110 = arith.divf %108, %109 : vector<2x32xf32>
    %111 = vector.extract_strided_slice %104 {offsets = [0, 32], sizes = [2, 32], strides = [1, 1]} : vector<2x128xf32> to vector<2x32xf32>
    %112 = arith.negf %111 : vector<2x32xf32>
    %113 = math.exp %112 : vector<2x32xf32>
    %cst_28 = arith.constant 1.000000e+00 : f32
    %114 = vector.broadcast %cst_28 : f32 to vector<2x32xf32>
    %115 = arith.addf %114, %113 : vector<2x32xf32>
    %116 = arith.divf %114, %115 : vector<2x32xf32>
    %117 = vector.extract_strided_slice %104 {offsets = [0, 64], sizes = [2, 32], strides = [1, 1]} : vector<2x128xf32> to vector<2x32xf32>
    %118 = math.tanh %117 : vector<2x32xf32>
    %119 = vector.extract_strided_slice %104 {offsets = [0, 96], sizes = [2, 32], strides = [1, 1]} : vector<2x128xf32> to vector<2x32xf32>
    %120 = arith.negf %119 : vector<2x32xf32>
    %121 = math.exp %120 : vector<2x32xf32>
    %cst_29 = arith.constant 1.000000e+00 : f32
    %122 = vector.broadcast %cst_29 : f32 to vector<2x32xf32>
    %123 = arith.addf %122, %121 : vector<2x32xf32>
    %124 = arith.divf %122, %123 : vector<2x32xf32>
    %125 = arith.mulf %116, %96 : vector<2x32xf32>
    %126 = arith.mulf %110, %118 : vector<2x32xf32>
    %127 = arith.addf %125, %126 : vector<2x32xf32>
    %128 = math.tanh %127 : vector<2x32xf32>
    %129 = arith.mulf %124, %128 : vector<2x32xf32>
    %c4_i32 = arith.constant 4 : i32
    %130 = arith.index_cast %c4_i32 : i32 to index
    %c0_30 = arith.constant 0 : index
    %c0_31 = arith.constant 0 : index
    %131 = vector.load %arg1[%130, %c0_30, %c0_31] : memref<8x2x128xf32, #tpu.memory_space<vmem>>, vector<1x2x128xf32>
    %132 = vector.shape_cast %131 : vector<1x2x128xf32> to vector<2x128xf32>
    %133 = arith.truncf %129 : vector<2x32xf32> to vector<2x32xbf16>
    %cst_32 = arith.constant dense<0.000000e+00> : vector<2x128xf32>
    %134 = tpu.matmul %133, %3, %cst_32 {dimension_numbers = #tpu.dot_dimension_numbers<[1], [0], [0], [1], [0, 0, 1, 1], [], []>} : vector<2x32xbf16>, vector<32x128xbf16>, vector<2x128xf32> -> vector<2x128xf32>
    %135 = arith.addf %132, %134 : vector<2x128xf32>
    %136 = vector.extract_strided_slice %135 {offsets = [0, 0], sizes = [2, 32], strides = [1, 1]} : vector<2x128xf32> to vector<2x32xf32>
    %137 = arith.negf %136 : vector<2x32xf32>
    %138 = math.exp %137 : vector<2x32xf32>
    %cst_33 = arith.constant 1.000000e+00 : f32
    %139 = vector.broadcast %cst_33 : f32 to vector<2x32xf32>
    %140 = arith.addf %139, %138 : vector<2x32xf32>
    %141 = arith.divf %139, %140 : vector<2x32xf32>
    %142 = vector.extract_strided_slice %135 {offsets = [0, 32], sizes = [2, 32], strides = [1, 1]} : vector<2x128xf32> to vector<2x32xf32>
    %143 = arith.negf %142 : vector<2x32xf32>
    %144 = math.exp %143 : vector<2x32xf32>
    %cst_34 = arith.constant 1.000000e+00 : f32
    %145 = vector.broadcast %cst_34 : f32 to vector<2x32xf32>
    %146 = arith.addf %145, %144 : vector<2x32xf32>
    %147 = arith.divf %145, %146 : vector<2x32xf32>
    %148 = vector.extract_strided_slice %135 {offsets = [0, 64], sizes = [2, 32], strides = [1, 1]} : vector<2x128xf32> to vector<2x32xf32>
    %149 = math.tanh %148 : vector<2x32xf32>
    %150 = vector.extract_strided_slice %135 {offsets = [0, 96], sizes = [2, 32], strides = [1, 1]} : vector<2x128xf32> to vector<2x32xf32>
    %151 = arith.negf %150 : vector<2x32xf32>
    %152 = math.exp %151 : vector<2x32xf32>
    %cst_35 = arith.constant 1.000000e+00 : f32
    %153 = vector.broadcast %cst_35 : f32 to vector<2x32xf32>
    %154 = arith.addf %153, %152 : vector<2x32xf32>
    %155 = arith.divf %153, %154 : vector<2x32xf32>
    %156 = arith.mulf %147, %127 : vector<2x32xf32>
    %157 = arith.mulf %141, %149 : vector<2x32xf32>
    %158 = arith.addf %156, %157 : vector<2x32xf32>
    %159 = math.tanh %158 : vector<2x32xf32>
    %160 = arith.mulf %155, %159 : vector<2x32xf32>
    %c5_i32 = arith.constant 5 : i32
    %161 = arith.index_cast %c5_i32 : i32 to index
    %c0_36 = arith.constant 0 : index
    %c0_37 = arith.constant 0 : index
    %162 = vector.load %arg1[%161, %c0_36, %c0_37] : memref<8x2x128xf32, #tpu.memory_space<vmem>>, vector<1x2x128xf32>
    %163 = vector.shape_cast %162 : vector<1x2x128xf32> to vector<2x128xf32>
    %164 = arith.truncf %160 : vector<2x32xf32> to vector<2x32xbf16>
    %cst_38 = arith.constant dense<0.000000e+00> : vector<2x128xf32>
    %165 = tpu.matmul %164, %3, %cst_38 {dimension_numbers = #tpu.dot_dimension_numbers<[1], [0], [0], [1], [0, 0, 1, 1], [], []>} : vector<2x32xbf16>, vector<32x128xbf16>, vector<2x128xf32> -> vector<2x128xf32>
    %166 = arith.addf %163, %165 : vector<2x128xf32>
    %167 = vector.extract_strided_slice %166 {offsets = [0, 0], sizes = [2, 32], strides = [1, 1]} : vector<2x128xf32> to vector<2x32xf32>
    %168 = arith.negf %167 : vector<2x32xf32>
    %169 = math.exp %168 : vector<2x32xf32>
    %cst_39 = arith.constant 1.000000e+00 : f32
    %170 = vector.broadcast %cst_39 : f32 to vector<2x32xf32>
    %171 = arith.addf %170, %169 : vector<2x32xf32>
    %172 = arith.divf %170, %171 : vector<2x32xf32>
    %173 = vector.extract_strided_slice %166 {offsets = [0, 32], sizes = [2, 32], strides = [1, 1]} : vector<2x128xf32> to vector<2x32xf32>
    %174 = arith.negf %173 : vector<2x32xf32>
    %175 = math.exp %174 : vector<2x32xf32>
    %cst_40 = arith.constant 1.000000e+00 : f32
    %176 = vector.broadcast %cst_40 : f32 to vector<2x32xf32>
    %177 = arith.addf %176, %175 : vector<2x32xf32>
    %178 = arith.divf %176, %177 : vector<2x32xf32>
    %179 = vector.extract_strided_slice %166 {offsets = [0, 64], sizes = [2, 32], strides = [1, 1]} : vector<2x128xf32> to vector<2x32xf32>
    %180 = math.tanh %179 : vector<2x32xf32>
    %181 = vector.extract_strided_slice %166 {offsets = [0, 96], sizes = [2, 32], strides = [1, 1]} : vector<2x128xf32> to vector<2x32xf32>
    %182 = arith.negf %181 : vector<2x32xf32>
    %183 = math.exp %182 : vector<2x32xf32>
    %cst_41 = arith.constant 1.000000e+00 : f32
    %184 = vector.broadcast %cst_41 : f32 to vector<2x32xf32>
    %185 = arith.addf %184, %183 : vector<2x32xf32>
    %186 = arith.divf %184, %185 : vector<2x32xf32>
    %187 = arith.mulf %178, %158 : vector<2x32xf32>
    %188 = arith.mulf %172, %180 : vector<2x32xf32>
    %189 = arith.addf %187, %188 : vector<2x32xf32>
    %190 = math.tanh %189 : vector<2x32xf32>
    %191 = arith.mulf %186, %190 : vector<2x32xf32>
    %c6_i32 = arith.constant 6 : i32
    %192 = arith.index_cast %c6_i32 : i32 to index
    %c0_42 = arith.constant 0 : index
    %c0_43 = arith.constant 0 : index
    %193 = vector.load %arg1[%192, %c0_42, %c0_43] : memref<8x2x128xf32, #tpu.memory_space<vmem>>, vector<1x2x128xf32>
    %194 = vector.shape_cast %193 : vector<1x2x128xf32> to vector<2x128xf32>
    %195 = arith.truncf %191 : vector<2x32xf32> to vector<2x32xbf16>
    %cst_44 = arith.constant dense<0.000000e+00> : vector<2x128xf32>
    %196 = tpu.matmul %195, %3, %cst_44 {dimension_numbers = #tpu.dot_dimension_numbers<[1], [0], [0], [1], [0, 0, 1, 1], [], []>} : vector<2x32xbf16>, vector<32x128xbf16>, vector<2x128xf32> -> vector<2x128xf32>
    %197 = arith.addf %194, %196 : vector<2x128xf32>
    %198 = vector.extract_strided_slice %197 {offsets = [0, 0], sizes = [2, 32], strides = [1, 1]} : vector<2x128xf32> to vector<2x32xf32>
    %199 = arith.negf %198 : vector<2x32xf32>
    %200 = math.exp %199 : vector<2x32xf32>
    %cst_45 = arith.constant 1.000000e+00 : f32
    %201 = vector.broadcast %cst_45 : f32 to vector<2x32xf32>
    %202 = arith.addf %201, %200 : vector<2x32xf32>
    %203 = arith.divf %201, %202 : vector<2x32xf32>
    %204 = vector.extract_strided_slice %197 {offsets = [0, 32], sizes = [2, 32], strides = [1, 1]} : vector<2x128xf32> to vector<2x32xf32>
    %205 = arith.negf %204 : vector<2x32xf32>
    %206 = math.exp %205 : vector<2x32xf32>
    %cst_46 = arith.constant 1.000000e+00 : f32
    %207 = vector.broadcast %cst_46 : f32 to vector<2x32xf32>
    %208 = arith.addf %207, %206 : vector<2x32xf32>
    %209 = arith.divf %207, %208 : vector<2x32xf32>
    %210 = vector.extract_strided_slice %197 {offsets = [0, 64], sizes = [2, 32], strides = [1, 1]} : vector<2x128xf32> to vector<2x32xf32>
    %211 = math.tanh %210 : vector<2x32xf32>
    %212 = vector.extract_strided_slice %197 {offsets = [0, 96], sizes = [2, 32], strides = [1, 1]} : vector<2x128xf32> to vector<2x32xf32>
    %213 = arith.negf %212 : vector<2x32xf32>
    %214 = math.exp %213 : vector<2x32xf32>
    %cst_47 = arith.constant 1.000000e+00 : f32
    %215 = vector.broadcast %cst_47 : f32 to vector<2x32xf32>
    %216 = arith.addf %215, %214 : vector<2x32xf32>
    %217 = arith.divf %215, %216 : vector<2x32xf32>
    %218 = arith.mulf %209, %189 : vector<2x32xf32>
    %219 = arith.mulf %203, %211 : vector<2x32xf32>
    %220 = arith.addf %218, %219 : vector<2x32xf32>
    %221 = math.tanh %220 : vector<2x32xf32>
    %222 = arith.mulf %217, %221 : vector<2x32xf32>
    %c7_i32 = arith.constant 7 : i32
    %223 = arith.index_cast %c7_i32 : i32 to index
    %c0_48 = arith.constant 0 : index
    %c0_49 = arith.constant 0 : index
    %224 = vector.load %arg1[%223, %c0_48, %c0_49] : memref<8x2x128xf32, #tpu.memory_space<vmem>>, vector<1x2x128xf32>
    %225 = vector.shape_cast %224 : vector<1x2x128xf32> to vector<2x128xf32>
    %226 = arith.truncf %222 : vector<2x32xf32> to vector<2x32xbf16>
    %cst_50 = arith.constant dense<0.000000e+00> : vector<2x128xf32>
    %227 = tpu.matmul %226, %3, %cst_50 {dimension_numbers = #tpu.dot_dimension_numbers<[1], [0], [0], [1], [0, 0, 1, 1], [], []>} : vector<2x32xbf16>, vector<32x128xbf16>, vector<2x128xf32> -> vector<2x128xf32>
    %228 = arith.addf %225, %227 : vector<2x128xf32>
    %229 = vector.extract_strided_slice %228 {offsets = [0, 0], sizes = [2, 32], strides = [1, 1]} : vector<2x128xf32> to vector<2x32xf32>
    %230 = arith.negf %229 : vector<2x32xf32>
    %231 = math.exp %230 : vector<2x32xf32>
    %cst_51 = arith.constant 1.000000e+00 : f32
    %232 = vector.broadcast %cst_51 : f32 to vector<2x32xf32>
    %233 = arith.addf %232, %231 : vector<2x32xf32>
    %234 = arith.divf %232, %233 : vector<2x32xf32>
    %235 = vector.extract_strided_slice %228 {offsets = [0, 32], sizes = [2, 32], strides = [1, 1]} : vector<2x128xf32> to vector<2x32xf32>
    %236 = arith.negf %235 : vector<2x32xf32>
    %237 = math.exp %236 : vector<2x32xf32>
    %cst_52 = arith.constant 1.000000e+00 : f32
    %238 = vector.broadcast %cst_52 : f32 to vector<2x32xf32>
    %239 = arith.addf %238, %237 : vector<2x32xf32>
    %240 = arith.divf %238, %239 : vector<2x32xf32>
    %241 = vector.extract_strided_slice %228 {offsets = [0, 64], sizes = [2, 32], strides = [1, 1]} : vector<2x128xf32> to vector<2x32xf32>
    %242 = math.tanh %241 : vector<2x32xf32>
    %243 = vector.extract_strided_slice %228 {offsets = [0, 96], sizes = [2, 32], strides = [1, 1]} : vector<2x128xf32> to vector<2x32xf32>
    %244 = arith.negf %243 : vector<2x32xf32>
    %245 = math.exp %244 : vector<2x32xf32>
    %cst_53 = arith.constant 1.000000e+00 : f32
    %246 = vector.broadcast %cst_53 : f32 to vector<2x32xf32>
    %247 = arith.addf %246, %245 : vector<2x32xf32>
    %248 = arith.divf %246, %247 : vector<2x32xf32>
    %249 = arith.mulf %240, %220 : vector<2x32xf32>
    %250 = arith.mulf %234, %242 : vector<2x32xf32>
    %251 = arith.addf %249, %250 : vector<2x32xf32>
    %252 = math.tanh %251 : vector<2x32xf32>
    %253 = arith.mulf %248, %252 : vector<2x32xf32>
    %c8_i32 = arith.constant 8 : i32
    %c0_54 = arith.constant 0 : index
    %c0_55 = arith.constant 0 : index
    %254 = vector.load %arg7[%c0_54, %c0_55] : memref<2x32xf32, #tpu.memory_space<vmem>>, vector<2x32xf32>
    tpu.vector_store %arg7[%c0_54, %c0_55], %253 {strides = array<i32>} : memref<2x32xf32, #tpu.memory_space<vmem>>, vector<2x32xf32>,
    %c0_56 = arith.constant 0 : index
    %c0_57 = arith.constant 0 : index
    %255 = vector.load %arg8[%c0_56, %c0_57] : memref<2x32xf32, #tpu.memory_space<vmem>>, vector<2x32xf32>
    tpu.vector_store %arg8[%c0_56, %c0_57], %251 {strides = array<i32>} : memref<2x32xf32, #tpu.memory_space<vmem>>, vector<2x32xf32>,
    %c0_i32_58 = arith.constant 0 : i32
    %256 = arith.cmpi eq, %arg0, %c0_i32_58 : i32
    %257 = arith.extui %256 : i1 to i32
    %c0_i32_59 = arith.constant 0 : i32
    %258 = arith.cmpi ne, %257, %c0_i32_59 : i32
    scf.if %258 {
      %c7 = arith.constant 7 : index
      %c0_60 = arith.constant 0 : index
      %c0_61 = arith.constant 0 : index
      %259 = vector.load %arg2[%c7, %c0_60, %c0_61] : memref<8x2x128xf32, #tpu.memory_space<vmem>>, vector<1x2x128xf32>
      %260 = vector.shape_cast %259 : vector<1x2x128xf32> to vector<2x128xf32>
      %cst_62 = arith.constant 0.000000e+00 : f32
      %261 = vector.broadcast %cst_62 : f32 to vector<2x32xf32>
      %262 = vector.extract_strided_slice %260 {offsets = [0, 0], sizes = [2, 32], strides = [1, 1]} : vector<2x128xf32> to vector<2x32xf32>
      %263 = arith.negf %262 : vector<2x32xf32>
      %264 = math.exp %263 : vector<2x32xf32>
      %cst_63 = arith.constant 1.000000e+00 : f32
      %265 = vector.broadcast %cst_63 : f32 to vector<2x32xf32>
      %266 = arith.addf %265, %264 : vector<2x32xf32>
      %267 = arith.divf %265, %266 : vector<2x32xf32>
      %268 = vector.extract_strided_slice %260 {offsets = [0, 32], sizes = [2, 32], strides = [1, 1]} : vector<2x128xf32> to vector<2x32xf32>
      %269 = arith.negf %268 : vector<2x32xf32>
      %270 = math.exp %269 : vector<2x32xf32>
      %cst_64 = arith.constant 1.000000e+00 : f32
      %271 = vector.broadcast %cst_64 : f32 to vector<2x32xf32>
      %272 = arith.addf %271, %270 : vector<2x32xf32>
      %273 = arith.divf %271, %272 : vector<2x32xf32>
      %274 = vector.extract_strided_slice %260 {offsets = [0, 64], sizes = [2, 32], strides = [1, 1]} : vector<2x128xf32> to vector<2x32xf32>
      %275 = math.tanh %274 : vector<2x32xf32>
      %276 = vector.extract_strided_slice %260 {offsets = [0, 96], sizes = [2, 32], strides = [1, 1]} : vector<2x128xf32> to vector<2x32xf32>
      %277 = arith.negf %276 : vector<2x32xf32>
      %278 = math.exp %277 : vector<2x32xf32>
      %cst_65 = arith.constant 1.000000e+00 : f32
      %279 = vector.broadcast %cst_65 : f32 to vector<2x32xf32>
      %280 = arith.addf %279, %278 : vector<2x32xf32>
      %281 = arith.divf %279, %280 : vector<2x32xf32>
      %282 = arith.mulf %273, %261 : vector<2x32xf32>
      %283 = arith.mulf %267, %275 : vector<2x32xf32>
      %284 = arith.addf %282, %283 : vector<2x32xf32>
      %285 = math.tanh %284 : vector<2x32xf32>
      %286 = arith.mulf %281, %285 : vector<2x32xf32>
      %c0_66 = arith.constant 0 : index
      %c0_67 = arith.constant 0 : index
      %287 = vector.load %arg4[%c0_66, %c0_67] : memref<1x64xf32, #tpu.memory_space<vmem>>, vector<1x64xf32>
      %288 = vector.extract_strided_slice %287 {offsets = [0, 0], sizes = [1, 32], strides = [1, 1]} : vector<1x64xf32> to vector<1x32xf32>
      %289 = vector.broadcast %288 : vector<1x32xf32> to vector<2x32xf32>
      %290 = arith.mulf %253, %289 : vector<2x32xf32>
      %cst_68 = arith.constant dense<0.000000e+00> : vector<2xf32>
      %291 = vector.multi_reduction <add>, %290, %cst_68 [1] : vector<2x32xf32> to vector<2xf32>
      %292 = vector.shape_cast %291 : vector<2xf32> to vector<2x1xf32>
      %293 = vector.extract_strided_slice %287 {offsets = [0, 32], sizes = [1, 32], strides = [1, 1]} : vector<1x64xf32> to vector<1x32xf32>
      %294 = vector.broadcast %293 : vector<1x32xf32> to vector<2x32xf32>
      %295 = arith.mulf %286, %294 : vector<2x32xf32>
      %cst_69 = arith.constant dense<0.000000e+00> : vector<2xf32>
      %296 = vector.multi_reduction <add>, %295, %cst_69 [1] : vector<2x32xf32> to vector<2xf32>
      %297 = vector.shape_cast %296 : vector<2xf32> to vector<2x1xf32>
      %298 = arith.addf %292, %297 : vector<2x1xf32>
      %c0_70 = arith.constant 0 : index
      %c0_71 = arith.constant 0 : index
      %299 = vector.load %arg5[%c0_70, %c0_71] : memref<1x1xf32, #tpu.memory_space<vmem>>, vector<1x1xf32>
      %300 = vector.broadcast %299 : vector<1x1xf32> to vector<2x1xf32>
      %301 = arith.addf %298, %300 : vector<2x1xf32>
      %c0_72 = arith.constant 0 : index
      %c0_73 = arith.constant 0 : index
      %302 = vector.load %arg6[%c0_72, %c0_73] : memref<2x1xf32, #tpu.memory_space<vmem>>, vector<2x1xf32>
      tpu.vector_store %arg6[%c0_72, %c0_73], %301 {strides = array<i32>} : memref<2x1xf32, #tpu.memory_space<vmem>>, vector<2x1xf32>,
    } else {
    }
    return
  }
  func.func @transform_0(%arg0: i32) -> (i32, i32, i32) {
    %c0_i32 = arith.constant 0 : i32
    %c0_i32_0 = arith.constant 0 : i32
    %c0_i32_1 = arith.constant 0 : i32
    return %arg0, %c0_i32, %c0_i32_0 : i32, i32, i32
  }
  func.func @transform_1(%arg0: i32) -> (i32, i32, i32) {
    %c0_i32 = arith.constant 0 : i32
    %c0_i32_0 = arith.constant 0 : i32
    %c1_i32 = arith.constant 1 : i32
    %c0_i32_1 = arith.constant 0 : i32
    return %c0_i32, %c0_i32_0, %c1_i32 : i32, i32, i32
  }
  func.func @transform_2(%arg0: i32) -> (i32, i32) {
    %c0_i32 = arith.constant 0 : i32
    %c0_i32_0 = arith.constant 0 : i32
    %c0_i32_1 = arith.constant 0 : i32
    return %c0_i32, %c0_i32_0 : i32, i32
  }
  func.func @transform_3(%arg0: i32) -> (i32, i32) {
    %c0_i32 = arith.constant 0 : i32
    %c0_i32_0 = arith.constant 0 : i32
    %c0_i32_1 = arith.constant 0 : i32
    return %c0_i32, %c0_i32_0 : i32, i32
  }
  func.func @transform_4(%arg0: i32) -> (i32, i32) {
    %c0_i32 = arith.constant 0 : i32
    %c0_i32_0 = arith.constant 0 : i32
    %c0_i32_1 = arith.constant 0 : i32
    return %c0_i32, %c0_i32_0 : i32, i32
  }
  func.func @transform_5(%arg0: i32) -> (i32, i32) {
    %c0_i32 = arith.constant 0 : i32
    %c0_i32_0 = arith.constant 0 : i32
    %c0_i32_1 = arith.constant 0 : i32
    return %c0_i32, %c0_i32_0 : i32, i32
  }
}

module attributes {stable_mosaic.version = 11 : i64} {
  func.func @_bilstm_layer_kernel(%arg0: i32, %arg1: memref<8x2x128xf32, #tpu.memory_space<vmem>>, %arg2: memref<8x2x128xf32, #tpu.memory_space<vmem>>, %arg3: memref<32x128xbf16, #tpu.memory_space<vmem>>, %arg4: memref<32x128xbf16, #tpu.memory_space<vmem>>, %arg5: memref<8x2x32xbf16, #tpu.memory_space<vmem>>, %arg6: memref<8x2x32xbf16, #tpu.memory_space<vmem>>, %arg7: memref<2x32xf32, #tpu.memory_space<vmem>>, %arg8: memref<2x32xf32, #tpu.memory_space<vmem>>, %arg9: memref<2x32xf32, #tpu.memory_space<vmem>>, %arg10: memref<2x32xf32, #tpu.memory_space<vmem>>) attributes {dimension_semantics = [#tpu.dimension_semantics<arbitrary>], iteration_bounds = array<i64: 1>, scalar_prefetch = 0 : i64, scratch_operands = 4 : i64, tpu.core_type = #tpu.core_type<tc>, window_params = [{transform_indices = @transform_0, window_bounds = array<i64: 8, 2, 128>}, {transform_indices = @transform_1, window_bounds = array<i64: 8, 2, 128>}, {pipeline_mode = #tpu.pipeline_mode<synchronous>, transform_indices = @transform_2, window_bounds = array<i64: 32, 128>}, {pipeline_mode = #tpu.pipeline_mode<synchronous>, transform_indices = @transform_3, window_bounds = array<i64: 32, 128>}, {transform_indices = @transform_4, window_bounds = array<i64: 8, 2, 32>}, {transform_indices = @transform_5, window_bounds = array<i64: 8, 2, 32>}]} {
    %c0_i32 = arith.constant 0 : i32
    %0 = arith.cmpi eq, %arg0, %c0_i32 : i32
    %1 = arith.extui %0 : i1 to i32
    %c0_i32_0 = arith.constant 0 : i32
    %2 = arith.cmpi ne, %1, %c0_i32_0 : i32
    scf.if %2 {
      %cst_156 = arith.constant 0.000000e+00 : f32
      %597 = vector.broadcast %cst_156 : f32 to vector<2x32xf32>
      %c0_157 = arith.constant 0 : index
      %c0_158 = arith.constant 0 : index
      %598 = vector.load %arg7[%c0_157, %c0_158] : memref<2x32xf32, #tpu.memory_space<vmem>>, vector<2x32xf32>
      tpu.vector_store %arg7[%c0_157, %c0_158], %597 {strides = array<i32>} : memref<2x32xf32, #tpu.memory_space<vmem>>, vector<2x32xf32>,
      %cst_159 = arith.constant 0.000000e+00 : f32
      %599 = vector.broadcast %cst_159 : f32 to vector<2x32xf32>
      %c0_160 = arith.constant 0 : index
      %c0_161 = arith.constant 0 : index
      %600 = vector.load %arg8[%c0_160, %c0_161] : memref<2x32xf32, #tpu.memory_space<vmem>>, vector<2x32xf32>
      tpu.vector_store %arg8[%c0_160, %c0_161], %599 {strides = array<i32>} : memref<2x32xf32, #tpu.memory_space<vmem>>, vector<2x32xf32>,
      %cst_162 = arith.constant 0.000000e+00 : f32
      %601 = vector.broadcast %cst_162 : f32 to vector<2x32xf32>
      %c0_163 = arith.constant 0 : index
      %c0_164 = arith.constant 0 : index
      %602 = vector.load %arg9[%c0_163, %c0_164] : memref<2x32xf32, #tpu.memory_space<vmem>>, vector<2x32xf32>
      tpu.vector_store %arg9[%c0_163, %c0_164], %601 {strides = array<i32>} : memref<2x32xf32, #tpu.memory_space<vmem>>, vector<2x32xf32>,
      %cst_165 = arith.constant 0.000000e+00 : f32
      %603 = vector.broadcast %cst_165 : f32 to vector<2x32xf32>
      %c0_166 = arith.constant 0 : index
      %c0_167 = arith.constant 0 : index
      %604 = vector.load %arg10[%c0_166, %c0_167] : memref<2x32xf32, #tpu.memory_space<vmem>>, vector<2x32xf32>
      tpu.vector_store %arg10[%c0_166, %c0_167], %603 {strides = array<i32>} : memref<2x32xf32, #tpu.memory_space<vmem>>, vector<2x32xf32>,
    } else {
    }
    %c0 = arith.constant 0 : index
    %c0_1 = arith.constant 0 : index
    %3 = vector.load %arg3[%c0, %c0_1] : memref<32x128xbf16, #tpu.memory_space<vmem>>, vector<32x128xbf16>
    %c0_2 = arith.constant 0 : index
    %c0_3 = arith.constant 0 : index
    %4 = vector.load %arg4[%c0_2, %c0_3] : memref<32x128xbf16, #tpu.memory_space<vmem>>, vector<32x128xbf16>
    %c0_4 = arith.constant 0 : index
    %c0_5 = arith.constant 0 : index
    %5 = vector.load %arg7[%c0_4, %c0_5] : memref<2x32xf32, #tpu.memory_space<vmem>>, vector<2x32xf32>
    %c0_6 = arith.constant 0 : index
    %c0_7 = arith.constant 0 : index
    %6 = vector.load %arg8[%c0_6, %c0_7] : memref<2x32xf32, #tpu.memory_space<vmem>>, vector<2x32xf32>
    %c0_8 = arith.constant 0 : index
    %c0_9 = arith.constant 0 : index
    %7 = vector.load %arg9[%c0_8, %c0_9] : memref<2x32xf32, #tpu.memory_space<vmem>>, vector<2x32xf32>
    %c0_10 = arith.constant 0 : index
    %c0_11 = arith.constant 0 : index
    %8 = vector.load %arg10[%c0_10, %c0_11] : memref<2x32xf32, #tpu.memory_space<vmem>>, vector<2x32xf32>
    %c0_i32_12 = arith.constant 0 : i32
    %9 = arith.index_cast %c0_i32_12 : i32 to index
    %c0_13 = arith.constant 0 : index
    %c0_14 = arith.constant 0 : index
    %10 = vector.load %arg1[%9, %c0_13, %c0_14] : memref<8x2x128xf32, #tpu.memory_space<vmem>>, vector<1x2x128xf32>
    %11 = vector.shape_cast %10 : vector<1x2x128xf32> to vector<2x128xf32>
    %12 = arith.truncf %5 : vector<2x32xf32> to vector<2x32xbf16>
    %cst = arith.constant dense<0.000000e+00> : vector<2x128xf32>
    %13 = tpu.matmul %12, %3, %cst {dimension_numbers = #tpu.dot_dimension_numbers<[1], [0], [0], [1], [0, 0, 1, 1], [], []>} : vector<2x32xbf16>, vector<32x128xbf16>, vector<2x128xf32> -> vector<2x128xf32>
    %14 = arith.addf %11, %13 : vector<2x128xf32>
    %15 = vector.extract_strided_slice %14 {offsets = [0, 0], sizes = [2, 32], strides = [1, 1]} : vector<2x128xf32> to vector<2x32xf32>
    %16 = arith.negf %15 : vector<2x32xf32>
    %17 = math.exp %16 : vector<2x32xf32>
    %cst_15 = arith.constant 1.000000e+00 : f32
    %18 = vector.broadcast %cst_15 : f32 to vector<2x32xf32>
    %19 = arith.addf %18, %17 : vector<2x32xf32>
    %20 = arith.divf %18, %19 : vector<2x32xf32>
    %21 = vector.extract_strided_slice %14 {offsets = [0, 32], sizes = [2, 32], strides = [1, 1]} : vector<2x128xf32> to vector<2x32xf32>
    %22 = arith.negf %21 : vector<2x32xf32>
    %23 = math.exp %22 : vector<2x32xf32>
    %cst_16 = arith.constant 1.000000e+00 : f32
    %24 = vector.broadcast %cst_16 : f32 to vector<2x32xf32>
    %25 = arith.addf %24, %23 : vector<2x32xf32>
    %26 = arith.divf %24, %25 : vector<2x32xf32>
    %27 = vector.extract_strided_slice %14 {offsets = [0, 64], sizes = [2, 32], strides = [1, 1]} : vector<2x128xf32> to vector<2x32xf32>
    %28 = math.tanh %27 : vector<2x32xf32>
    %29 = vector.extract_strided_slice %14 {offsets = [0, 96], sizes = [2, 32], strides = [1, 1]} : vector<2x128xf32> to vector<2x32xf32>
    %30 = arith.negf %29 : vector<2x32xf32>
    %31 = math.exp %30 : vector<2x32xf32>
    %cst_17 = arith.constant 1.000000e+00 : f32
    %32 = vector.broadcast %cst_17 : f32 to vector<2x32xf32>
    %33 = arith.addf %32, %31 : vector<2x32xf32>
    %34 = arith.divf %32, %33 : vector<2x32xf32>
    %35 = arith.mulf %26, %6 : vector<2x32xf32>
    %36 = arith.mulf %20, %28 : vector<2x32xf32>
    %37 = arith.addf %35, %36 : vector<2x32xf32>
    %38 = math.tanh %37 : vector<2x32xf32>
    %39 = arith.mulf %34, %38 : vector<2x32xf32>
    %40 = arith.truncf %39 : vector<2x32xf32> to vector<2x32xbf16>
    %41 = arith.index_cast %c0_i32_12 : i32 to index
    %c0_18 = arith.constant 0 : index
    %c0_19 = arith.constant 0 : index
    %42 = vector.load %arg5[%41, %c0_18, %c0_19] : memref<8x2x32xbf16, #tpu.memory_space<vmem>>, vector<1x2x32xbf16>
    %43 = vector.shape_cast %42 : vector<1x2x32xbf16> to vector<2x32xbf16>
    %44 = vector.shape_cast %40 : vector<2x32xbf16> to vector<1x2x32xbf16>
    tpu.vector_store %arg5[%41, %c0_18, %c0_19], %44 {strides = array<i32>} : memref<8x2x32xbf16, #tpu.memory_space<vmem>>, vector<1x2x32xbf16>,
    %c7_i32 = arith.constant 7 : i32
    %45 = arith.subi %c7_i32, %c0_i32_12 : i32
    %46 = arith.index_cast %45 : i32 to index
    %c0_20 = arith.constant 0 : index
    %c0_21 = arith.constant 0 : index
    %47 = vector.load %arg2[%46, %c0_20, %c0_21] : memref<8x2x128xf32, #tpu.memory_space<vmem>>, vector<1x2x128xf32>
    %48 = vector.shape_cast %47 : vector<1x2x128xf32> to vector<2x128xf32>
    %49 = arith.truncf %7 : vector<2x32xf32> to vector<2x32xbf16>
    %cst_22 = arith.constant dense<0.000000e+00> : vector<2x128xf32>
    %50 = tpu.matmul %49, %4, %cst_22 {dimension_numbers = #tpu.dot_dimension_numbers<[1], [0], [0], [1], [0, 0, 1, 1], [], []>} : vector<2x32xbf16>, vector<32x128xbf16>, vector<2x128xf32> -> vector<2x128xf32>
    %51 = arith.addf %48, %50 : vector<2x128xf32>
    %52 = vector.extract_strided_slice %51 {offsets = [0, 0], sizes = [2, 32], strides = [1, 1]} : vector<2x128xf32> to vector<2x32xf32>
    %53 = arith.negf %52 : vector<2x32xf32>
    %54 = math.exp %53 : vector<2x32xf32>
    %cst_23 = arith.constant 1.000000e+00 : f32
    %55 = vector.broadcast %cst_23 : f32 to vector<2x32xf32>
    %56 = arith.addf %55, %54 : vector<2x32xf32>
    %57 = arith.divf %55, %56 : vector<2x32xf32>
    %58 = vector.extract_strided_slice %51 {offsets = [0, 32], sizes = [2, 32], strides = [1, 1]} : vector<2x128xf32> to vector<2x32xf32>
    %59 = arith.negf %58 : vector<2x32xf32>
    %60 = math.exp %59 : vector<2x32xf32>
    %cst_24 = arith.constant 1.000000e+00 : f32
    %61 = vector.broadcast %cst_24 : f32 to vector<2x32xf32>
    %62 = arith.addf %61, %60 : vector<2x32xf32>
    %63 = arith.divf %61, %62 : vector<2x32xf32>
    %64 = vector.extract_strided_slice %51 {offsets = [0, 64], sizes = [2, 32], strides = [1, 1]} : vector<2x128xf32> to vector<2x32xf32>
    %65 = math.tanh %64 : vector<2x32xf32>
    %66 = vector.extract_strided_slice %51 {offsets = [0, 96], sizes = [2, 32], strides = [1, 1]} : vector<2x128xf32> to vector<2x32xf32>
    %67 = arith.negf %66 : vector<2x32xf32>
    %68 = math.exp %67 : vector<2x32xf32>
    %cst_25 = arith.constant 1.000000e+00 : f32
    %69 = vector.broadcast %cst_25 : f32 to vector<2x32xf32>
    %70 = arith.addf %69, %68 : vector<2x32xf32>
    %71 = arith.divf %69, %70 : vector<2x32xf32>
    %72 = arith.mulf %63, %8 : vector<2x32xf32>
    %73 = arith.mulf %57, %65 : vector<2x32xf32>
    %74 = arith.addf %72, %73 : vector<2x32xf32>
    %75 = math.tanh %74 : vector<2x32xf32>
    %76 = arith.mulf %71, %75 : vector<2x32xf32>
    %77 = arith.truncf %76 : vector<2x32xf32> to vector<2x32xbf16>
    %78 = arith.index_cast %45 : i32 to index
    %c0_26 = arith.constant 0 : index
    %c0_27 = arith.constant 0 : index
    %79 = vector.load %arg6[%78, %c0_26, %c0_27] : memref<8x2x32xbf16, #tpu.memory_space<vmem>>, vector<1x2x32xbf16>
    %80 = vector.shape_cast %79 : vector<1x2x32xbf16> to vector<2x32xbf16>
    %81 = vector.shape_cast %77 : vector<2x32xbf16> to vector<1x2x32xbf16>
    tpu.vector_store %arg6[%78, %c0_26, %c0_27], %81 {strides = array<i32>} : memref<8x2x32xbf16, #tpu.memory_space<vmem>>, vector<1x2x32xbf16>,
    %c1_i32 = arith.constant 1 : i32
    %82 = arith.index_cast %c1_i32 : i32 to index
    %c0_28 = arith.constant 0 : index
    %c0_29 = arith.constant 0 : index
    %83 = vector.load %arg1[%82, %c0_28, %c0_29] : memref<8x2x128xf32, #tpu.memory_space<vmem>>, vector<1x2x128xf32>
    %84 = vector.shape_cast %83 : vector<1x2x128xf32> to vector<2x128xf32>
    %85 = arith.truncf %39 : vector<2x32xf32> to vector<2x32xbf16>
    %cst_30 = arith.constant dense<0.000000e+00> : vector<2x128xf32>
    %86 = tpu.matmul %85, %3, %cst_30 {dimension_numbers = #tpu.dot_dimension_numbers<[1], [0], [0], [1], [0, 0, 1, 1], [], []>} : vector<2x32xbf16>, vector<32x128xbf16>, vector<2x128xf32> -> vector<2x128xf32>
    %87 = arith.addf %84, %86 : vector<2x128xf32>
    %88 = vector.extract_strided_slice %87 {offsets = [0, 0], sizes = [2, 32], strides = [1, 1]} : vector<2x128xf32> to vector<2x32xf32>
    %89 = arith.negf %88 : vector<2x32xf32>
    %90 = math.exp %89 : vector<2x32xf32>
    %cst_31 = arith.constant 1.000000e+00 : f32
    %91 = vector.broadcast %cst_31 : f32 to vector<2x32xf32>
    %92 = arith.addf %91, %90 : vector<2x32xf32>
    %93 = arith.divf %91, %92 : vector<2x32xf32>
    %94 = vector.extract_strided_slice %87 {offsets = [0, 32], sizes = [2, 32], strides = [1, 1]} : vector<2x128xf32> to vector<2x32xf32>
    %95 = arith.negf %94 : vector<2x32xf32>
    %96 = math.exp %95 : vector<2x32xf32>
    %cst_32 = arith.constant 1.000000e+00 : f32
    %97 = vector.broadcast %cst_32 : f32 to vector<2x32xf32>
    %98 = arith.addf %97, %96 : vector<2x32xf32>
    %99 = arith.divf %97, %98 : vector<2x32xf32>
    %100 = vector.extract_strided_slice %87 {offsets = [0, 64], sizes = [2, 32], strides = [1, 1]} : vector<2x128xf32> to vector<2x32xf32>
    %101 = math.tanh %100 : vector<2x32xf32>
    %102 = vector.extract_strided_slice %87 {offsets = [0, 96], sizes = [2, 32], strides = [1, 1]} : vector<2x128xf32> to vector<2x32xf32>
    %103 = arith.negf %102 : vector<2x32xf32>
    %104 = math.exp %103 : vector<2x32xf32>
    %cst_33 = arith.constant 1.000000e+00 : f32
    %105 = vector.broadcast %cst_33 : f32 to vector<2x32xf32>
    %106 = arith.addf %105, %104 : vector<2x32xf32>
    %107 = arith.divf %105, %106 : vector<2x32xf32>
    %108 = arith.mulf %99, %37 : vector<2x32xf32>
    %109 = arith.mulf %93, %101 : vector<2x32xf32>
    %110 = arith.addf %108, %109 : vector<2x32xf32>
    %111 = math.tanh %110 : vector<2x32xf32>
    %112 = arith.mulf %107, %111 : vector<2x32xf32>
    %113 = arith.truncf %112 : vector<2x32xf32> to vector<2x32xbf16>
    %114 = arith.index_cast %c1_i32 : i32 to index
    %c0_34 = arith.constant 0 : index
    %c0_35 = arith.constant 0 : index
    %115 = vector.load %arg5[%114, %c0_34, %c0_35] : memref<8x2x32xbf16, #tpu.memory_space<vmem>>, vector<1x2x32xbf16>
    %116 = vector.shape_cast %115 : vector<1x2x32xbf16> to vector<2x32xbf16>
    %117 = vector.shape_cast %113 : vector<2x32xbf16> to vector<1x2x32xbf16>
    tpu.vector_store %arg5[%114, %c0_34, %c0_35], %117 {strides = array<i32>} : memref<8x2x32xbf16, #tpu.memory_space<vmem>>, vector<1x2x32xbf16>,
    %c7_i32_36 = arith.constant 7 : i32
    %118 = arith.subi %c7_i32_36, %c1_i32 : i32
    %119 = arith.index_cast %118 : i32 to index
    %c0_37 = arith.constant 0 : index
    %c0_38 = arith.constant 0 : index
    %120 = vector.load %arg2[%119, %c0_37, %c0_38] : memref<8x2x128xf32, #tpu.memory_space<vmem>>, vector<1x2x128xf32>
    %121 = vector.shape_cast %120 : vector<1x2x128xf32> to vector<2x128xf32>
    %122 = arith.truncf %76 : vector<2x32xf32> to vector<2x32xbf16>
    %cst_39 = arith.constant dense<0.000000e+00> : vector<2x128xf32>
    %123 = tpu.matmul %122, %4, %cst_39 {dimension_numbers = #tpu.dot_dimension_numbers<[1], [0], [0], [1], [0, 0, 1, 1], [], []>} : vector<2x32xbf16>, vector<32x128xbf16>, vector<2x128xf32> -> vector<2x128xf32>
    %124 = arith.addf %121, %123 : vector<2x128xf32>
    %125 = vector.extract_strided_slice %124 {offsets = [0, 0], sizes = [2, 32], strides = [1, 1]} : vector<2x128xf32> to vector<2x32xf32>
    %126 = arith.negf %125 : vector<2x32xf32>
    %127 = math.exp %126 : vector<2x32xf32>
    %cst_40 = arith.constant 1.000000e+00 : f32
    %128 = vector.broadcast %cst_40 : f32 to vector<2x32xf32>
    %129 = arith.addf %128, %127 : vector<2x32xf32>
    %130 = arith.divf %128, %129 : vector<2x32xf32>
    %131 = vector.extract_strided_slice %124 {offsets = [0, 32], sizes = [2, 32], strides = [1, 1]} : vector<2x128xf32> to vector<2x32xf32>
    %132 = arith.negf %131 : vector<2x32xf32>
    %133 = math.exp %132 : vector<2x32xf32>
    %cst_41 = arith.constant 1.000000e+00 : f32
    %134 = vector.broadcast %cst_41 : f32 to vector<2x32xf32>
    %135 = arith.addf %134, %133 : vector<2x32xf32>
    %136 = arith.divf %134, %135 : vector<2x32xf32>
    %137 = vector.extract_strided_slice %124 {offsets = [0, 64], sizes = [2, 32], strides = [1, 1]} : vector<2x128xf32> to vector<2x32xf32>
    %138 = math.tanh %137 : vector<2x32xf32>
    %139 = vector.extract_strided_slice %124 {offsets = [0, 96], sizes = [2, 32], strides = [1, 1]} : vector<2x128xf32> to vector<2x32xf32>
    %140 = arith.negf %139 : vector<2x32xf32>
    %141 = math.exp %140 : vector<2x32xf32>
    %cst_42 = arith.constant 1.000000e+00 : f32
    %142 = vector.broadcast %cst_42 : f32 to vector<2x32xf32>
    %143 = arith.addf %142, %141 : vector<2x32xf32>
    %144 = arith.divf %142, %143 : vector<2x32xf32>
    %145 = arith.mulf %136, %74 : vector<2x32xf32>
    %146 = arith.mulf %130, %138 : vector<2x32xf32>
    %147 = arith.addf %145, %146 : vector<2x32xf32>
    %148 = math.tanh %147 : vector<2x32xf32>
    %149 = arith.mulf %144, %148 : vector<2x32xf32>
    %150 = arith.truncf %149 : vector<2x32xf32> to vector<2x32xbf16>
    %151 = arith.index_cast %118 : i32 to index
    %c0_43 = arith.constant 0 : index
    %c0_44 = arith.constant 0 : index
    %152 = vector.load %arg6[%151, %c0_43, %c0_44] : memref<8x2x32xbf16, #tpu.memory_space<vmem>>, vector<1x2x32xbf16>
    %153 = vector.shape_cast %152 : vector<1x2x32xbf16> to vector<2x32xbf16>
    %154 = vector.shape_cast %150 : vector<2x32xbf16> to vector<1x2x32xbf16>
    tpu.vector_store %arg6[%151, %c0_43, %c0_44], %154 {strides = array<i32>} : memref<8x2x32xbf16, #tpu.memory_space<vmem>>, vector<1x2x32xbf16>,
    %c2_i32 = arith.constant 2 : i32
    %155 = arith.index_cast %c2_i32 : i32 to index
    %c0_45 = arith.constant 0 : index
    %c0_46 = arith.constant 0 : index
    %156 = vector.load %arg1[%155, %c0_45, %c0_46] : memref<8x2x128xf32, #tpu.memory_space<vmem>>, vector<1x2x128xf32>
    %157 = vector.shape_cast %156 : vector<1x2x128xf32> to vector<2x128xf32>
    %158 = arith.truncf %112 : vector<2x32xf32> to vector<2x32xbf16>
    %cst_47 = arith.constant dense<0.000000e+00> : vector<2x128xf32>
    %159 = tpu.matmul %158, %3, %cst_47 {dimension_numbers = #tpu.dot_dimension_numbers<[1], [0], [0], [1], [0, 0, 1, 1], [], []>} : vector<2x32xbf16>, vector<32x128xbf16>, vector<2x128xf32> -> vector<2x128xf32>
    %160 = arith.addf %157, %159 : vector<2x128xf32>
    %161 = vector.extract_strided_slice %160 {offsets = [0, 0], sizes = [2, 32], strides = [1, 1]} : vector<2x128xf32> to vector<2x32xf32>
    %162 = arith.negf %161 : vector<2x32xf32>
    %163 = math.exp %162 : vector<2x32xf32>
    %cst_48 = arith.constant 1.000000e+00 : f32
    %164 = vector.broadcast %cst_48 : f32 to vector<2x32xf32>
    %165 = arith.addf %164, %163 : vector<2x32xf32>
    %166 = arith.divf %164, %165 : vector<2x32xf32>
    %167 = vector.extract_strided_slice %160 {offsets = [0, 32], sizes = [2, 32], strides = [1, 1]} : vector<2x128xf32> to vector<2x32xf32>
    %168 = arith.negf %167 : vector<2x32xf32>
    %169 = math.exp %168 : vector<2x32xf32>
    %cst_49 = arith.constant 1.000000e+00 : f32
    %170 = vector.broadcast %cst_49 : f32 to vector<2x32xf32>
    %171 = arith.addf %170, %169 : vector<2x32xf32>
    %172 = arith.divf %170, %171 : vector<2x32xf32>
    %173 = vector.extract_strided_slice %160 {offsets = [0, 64], sizes = [2, 32], strides = [1, 1]} : vector<2x128xf32> to vector<2x32xf32>
    %174 = math.tanh %173 : vector<2x32xf32>
    %175 = vector.extract_strided_slice %160 {offsets = [0, 96], sizes = [2, 32], strides = [1, 1]} : vector<2x128xf32> to vector<2x32xf32>
    %176 = arith.negf %175 : vector<2x32xf32>
    %177 = math.exp %176 : vector<2x32xf32>
    %cst_50 = arith.constant 1.000000e+00 : f32
    %178 = vector.broadcast %cst_50 : f32 to vector<2x32xf32>
    %179 = arith.addf %178, %177 : vector<2x32xf32>
    %180 = arith.divf %178, %179 : vector<2x32xf32>
    %181 = arith.mulf %172, %110 : vector<2x32xf32>
    %182 = arith.mulf %166, %174 : vector<2x32xf32>
    %183 = arith.addf %181, %182 : vector<2x32xf32>
    %184 = math.tanh %183 : vector<2x32xf32>
    %185 = arith.mulf %180, %184 : vector<2x32xf32>
    %186 = arith.truncf %185 : vector<2x32xf32> to vector<2x32xbf16>
    %187 = arith.index_cast %c2_i32 : i32 to index
    %c0_51 = arith.constant 0 : index
    %c0_52 = arith.constant 0 : index
    %188 = vector.load %arg5[%187, %c0_51, %c0_52] : memref<8x2x32xbf16, #tpu.memory_space<vmem>>, vector<1x2x32xbf16>
    %189 = vector.shape_cast %188 : vector<1x2x32xbf16> to vector<2x32xbf16>
    %190 = vector.shape_cast %186 : vector<2x32xbf16> to vector<1x2x32xbf16>
    tpu.vector_store %arg5[%187, %c0_51, %c0_52], %190 {strides = array<i32>} : memref<8x2x32xbf16, #tpu.memory_space<vmem>>, vector<1x2x32xbf16>,
    %c7_i32_53 = arith.constant 7 : i32
    %191 = arith.subi %c7_i32_53, %c2_i32 : i32
    %192 = arith.index_cast %191 : i32 to index
    %c0_54 = arith.constant 0 : index
    %c0_55 = arith.constant 0 : index
    %193 = vector.load %arg2[%192, %c0_54, %c0_55] : memref<8x2x128xf32, #tpu.memory_space<vmem>>, vector<1x2x128xf32>
    %194 = vector.shape_cast %193 : vector<1x2x128xf32> to vector<2x128xf32>
    %195 = arith.truncf %149 : vector<2x32xf32> to vector<2x32xbf16>
    %cst_56 = arith.constant dense<0.000000e+00> : vector<2x128xf32>
    %196 = tpu.matmul %195, %4, %cst_56 {dimension_numbers = #tpu.dot_dimension_numbers<[1], [0], [0], [1], [0, 0, 1, 1], [], []>} : vector<2x32xbf16>, vector<32x128xbf16>, vector<2x128xf32> -> vector<2x128xf32>
    %197 = arith.addf %194, %196 : vector<2x128xf32>
    %198 = vector.extract_strided_slice %197 {offsets = [0, 0], sizes = [2, 32], strides = [1, 1]} : vector<2x128xf32> to vector<2x32xf32>
    %199 = arith.negf %198 : vector<2x32xf32>
    %200 = math.exp %199 : vector<2x32xf32>
    %cst_57 = arith.constant 1.000000e+00 : f32
    %201 = vector.broadcast %cst_57 : f32 to vector<2x32xf32>
    %202 = arith.addf %201, %200 : vector<2x32xf32>
    %203 = arith.divf %201, %202 : vector<2x32xf32>
    %204 = vector.extract_strided_slice %197 {offsets = [0, 32], sizes = [2, 32], strides = [1, 1]} : vector<2x128xf32> to vector<2x32xf32>
    %205 = arith.negf %204 : vector<2x32xf32>
    %206 = math.exp %205 : vector<2x32xf32>
    %cst_58 = arith.constant 1.000000e+00 : f32
    %207 = vector.broadcast %cst_58 : f32 to vector<2x32xf32>
    %208 = arith.addf %207, %206 : vector<2x32xf32>
    %209 = arith.divf %207, %208 : vector<2x32xf32>
    %210 = vector.extract_strided_slice %197 {offsets = [0, 64], sizes = [2, 32], strides = [1, 1]} : vector<2x128xf32> to vector<2x32xf32>
    %211 = math.tanh %210 : vector<2x32xf32>
    %212 = vector.extract_strided_slice %197 {offsets = [0, 96], sizes = [2, 32], strides = [1, 1]} : vector<2x128xf32> to vector<2x32xf32>
    %213 = arith.negf %212 : vector<2x32xf32>
    %214 = math.exp %213 : vector<2x32xf32>
    %cst_59 = arith.constant 1.000000e+00 : f32
    %215 = vector.broadcast %cst_59 : f32 to vector<2x32xf32>
    %216 = arith.addf %215, %214 : vector<2x32xf32>
    %217 = arith.divf %215, %216 : vector<2x32xf32>
    %218 = arith.mulf %209, %147 : vector<2x32xf32>
    %219 = arith.mulf %203, %211 : vector<2x32xf32>
    %220 = arith.addf %218, %219 : vector<2x32xf32>
    %221 = math.tanh %220 : vector<2x32xf32>
    %222 = arith.mulf %217, %221 : vector<2x32xf32>
    %223 = arith.truncf %222 : vector<2x32xf32> to vector<2x32xbf16>
    %224 = arith.index_cast %191 : i32 to index
    %c0_60 = arith.constant 0 : index
    %c0_61 = arith.constant 0 : index
    %225 = vector.load %arg6[%224, %c0_60, %c0_61] : memref<8x2x32xbf16, #tpu.memory_space<vmem>>, vector<1x2x32xbf16>
    %226 = vector.shape_cast %225 : vector<1x2x32xbf16> to vector<2x32xbf16>
    %227 = vector.shape_cast %223 : vector<2x32xbf16> to vector<1x2x32xbf16>
    tpu.vector_store %arg6[%224, %c0_60, %c0_61], %227 {strides = array<i32>} : memref<8x2x32xbf16, #tpu.memory_space<vmem>>, vector<1x2x32xbf16>,
    %c3_i32 = arith.constant 3 : i32
    %228 = arith.index_cast %c3_i32 : i32 to index
    %c0_62 = arith.constant 0 : index
    %c0_63 = arith.constant 0 : index
    %229 = vector.load %arg1[%228, %c0_62, %c0_63] : memref<8x2x128xf32, #tpu.memory_space<vmem>>, vector<1x2x128xf32>
    %230 = vector.shape_cast %229 : vector<1x2x128xf32> to vector<2x128xf32>
    %231 = arith.truncf %185 : vector<2x32xf32> to vector<2x32xbf16>
    %cst_64 = arith.constant dense<0.000000e+00> : vector<2x128xf32>
    %232 = tpu.matmul %231, %3, %cst_64 {dimension_numbers = #tpu.dot_dimension_numbers<[1], [0], [0], [1], [0, 0, 1, 1], [], []>} : vector<2x32xbf16>, vector<32x128xbf16>, vector<2x128xf32> -> vector<2x128xf32>
    %233 = arith.addf %230, %232 : vector<2x128xf32>
    %234 = vector.extract_strided_slice %233 {offsets = [0, 0], sizes = [2, 32], strides = [1, 1]} : vector<2x128xf32> to vector<2x32xf32>
    %235 = arith.negf %234 : vector<2x32xf32>
    %236 = math.exp %235 : vector<2x32xf32>
    %cst_65 = arith.constant 1.000000e+00 : f32
    %237 = vector.broadcast %cst_65 : f32 to vector<2x32xf32>
    %238 = arith.addf %237, %236 : vector<2x32xf32>
    %239 = arith.divf %237, %238 : vector<2x32xf32>
    %240 = vector.extract_strided_slice %233 {offsets = [0, 32], sizes = [2, 32], strides = [1, 1]} : vector<2x128xf32> to vector<2x32xf32>
    %241 = arith.negf %240 : vector<2x32xf32>
    %242 = math.exp %241 : vector<2x32xf32>
    %cst_66 = arith.constant 1.000000e+00 : f32
    %243 = vector.broadcast %cst_66 : f32 to vector<2x32xf32>
    %244 = arith.addf %243, %242 : vector<2x32xf32>
    %245 = arith.divf %243, %244 : vector<2x32xf32>
    %246 = vector.extract_strided_slice %233 {offsets = [0, 64], sizes = [2, 32], strides = [1, 1]} : vector<2x128xf32> to vector<2x32xf32>
    %247 = math.tanh %246 : vector<2x32xf32>
    %248 = vector.extract_strided_slice %233 {offsets = [0, 96], sizes = [2, 32], strides = [1, 1]} : vector<2x128xf32> to vector<2x32xf32>
    %249 = arith.negf %248 : vector<2x32xf32>
    %250 = math.exp %249 : vector<2x32xf32>
    %cst_67 = arith.constant 1.000000e+00 : f32
    %251 = vector.broadcast %cst_67 : f32 to vector<2x32xf32>
    %252 = arith.addf %251, %250 : vector<2x32xf32>
    %253 = arith.divf %251, %252 : vector<2x32xf32>
    %254 = arith.mulf %245, %183 : vector<2x32xf32>
    %255 = arith.mulf %239, %247 : vector<2x32xf32>
    %256 = arith.addf %254, %255 : vector<2x32xf32>
    %257 = math.tanh %256 : vector<2x32xf32>
    %258 = arith.mulf %253, %257 : vector<2x32xf32>
    %259 = arith.truncf %258 : vector<2x32xf32> to vector<2x32xbf16>
    %260 = arith.index_cast %c3_i32 : i32 to index
    %c0_68 = arith.constant 0 : index
    %c0_69 = arith.constant 0 : index
    %261 = vector.load %arg5[%260, %c0_68, %c0_69] : memref<8x2x32xbf16, #tpu.memory_space<vmem>>, vector<1x2x32xbf16>
    %262 = vector.shape_cast %261 : vector<1x2x32xbf16> to vector<2x32xbf16>
    %263 = vector.shape_cast %259 : vector<2x32xbf16> to vector<1x2x32xbf16>
    tpu.vector_store %arg5[%260, %c0_68, %c0_69], %263 {strides = array<i32>} : memref<8x2x32xbf16, #tpu.memory_space<vmem>>, vector<1x2x32xbf16>,
    %c7_i32_70 = arith.constant 7 : i32
    %264 = arith.subi %c7_i32_70, %c3_i32 : i32
    %265 = arith.index_cast %264 : i32 to index
    %c0_71 = arith.constant 0 : index
    %c0_72 = arith.constant 0 : index
    %266 = vector.load %arg2[%265, %c0_71, %c0_72] : memref<8x2x128xf32, #tpu.memory_space<vmem>>, vector<1x2x128xf32>
    %267 = vector.shape_cast %266 : vector<1x2x128xf32> to vector<2x128xf32>
    %268 = arith.truncf %222 : vector<2x32xf32> to vector<2x32xbf16>
    %cst_73 = arith.constant dense<0.000000e+00> : vector<2x128xf32>
    %269 = tpu.matmul %268, %4, %cst_73 {dimension_numbers = #tpu.dot_dimension_numbers<[1], [0], [0], [1], [0, 0, 1, 1], [], []>} : vector<2x32xbf16>, vector<32x128xbf16>, vector<2x128xf32> -> vector<2x128xf32>
    %270 = arith.addf %267, %269 : vector<2x128xf32>
    %271 = vector.extract_strided_slice %270 {offsets = [0, 0], sizes = [2, 32], strides = [1, 1]} : vector<2x128xf32> to vector<2x32xf32>
    %272 = arith.negf %271 : vector<2x32xf32>
    %273 = math.exp %272 : vector<2x32xf32>
    %cst_74 = arith.constant 1.000000e+00 : f32
    %274 = vector.broadcast %cst_74 : f32 to vector<2x32xf32>
    %275 = arith.addf %274, %273 : vector<2x32xf32>
    %276 = arith.divf %274, %275 : vector<2x32xf32>
    %277 = vector.extract_strided_slice %270 {offsets = [0, 32], sizes = [2, 32], strides = [1, 1]} : vector<2x128xf32> to vector<2x32xf32>
    %278 = arith.negf %277 : vector<2x32xf32>
    %279 = math.exp %278 : vector<2x32xf32>
    %cst_75 = arith.constant 1.000000e+00 : f32
    %280 = vector.broadcast %cst_75 : f32 to vector<2x32xf32>
    %281 = arith.addf %280, %279 : vector<2x32xf32>
    %282 = arith.divf %280, %281 : vector<2x32xf32>
    %283 = vector.extract_strided_slice %270 {offsets = [0, 64], sizes = [2, 32], strides = [1, 1]} : vector<2x128xf32> to vector<2x32xf32>
    %284 = math.tanh %283 : vector<2x32xf32>
    %285 = vector.extract_strided_slice %270 {offsets = [0, 96], sizes = [2, 32], strides = [1, 1]} : vector<2x128xf32> to vector<2x32xf32>
    %286 = arith.negf %285 : vector<2x32xf32>
    %287 = math.exp %286 : vector<2x32xf32>
    %cst_76 = arith.constant 1.000000e+00 : f32
    %288 = vector.broadcast %cst_76 : f32 to vector<2x32xf32>
    %289 = arith.addf %288, %287 : vector<2x32xf32>
    %290 = arith.divf %288, %289 : vector<2x32xf32>
    %291 = arith.mulf %282, %220 : vector<2x32xf32>
    %292 = arith.mulf %276, %284 : vector<2x32xf32>
    %293 = arith.addf %291, %292 : vector<2x32xf32>
    %294 = math.tanh %293 : vector<2x32xf32>
    %295 = arith.mulf %290, %294 : vector<2x32xf32>
    %296 = arith.truncf %295 : vector<2x32xf32> to vector<2x32xbf16>
    %297 = arith.index_cast %264 : i32 to index
    %c0_77 = arith.constant 0 : index
    %c0_78 = arith.constant 0 : index
    %298 = vector.load %arg6[%297, %c0_77, %c0_78] : memref<8x2x32xbf16, #tpu.memory_space<vmem>>, vector<1x2x32xbf16>
    %299 = vector.shape_cast %298 : vector<1x2x32xbf16> to vector<2x32xbf16>
    %300 = vector.shape_cast %296 : vector<2x32xbf16> to vector<1x2x32xbf16>
    tpu.vector_store %arg6[%297, %c0_77, %c0_78], %300 {strides = array<i32>} : memref<8x2x32xbf16, #tpu.memory_space<vmem>>, vector<1x2x32xbf16>,
    %c4_i32 = arith.constant 4 : i32
    %301 = arith.index_cast %c4_i32 : i32 to index
    %c0_79 = arith.constant 0 : index
    %c0_80 = arith.constant 0 : index
    %302 = vector.load %arg1[%301, %c0_79, %c0_80] : memref<8x2x128xf32, #tpu.memory_space<vmem>>, vector<1x2x128xf32>
    %303 = vector.shape_cast %302 : vector<1x2x128xf32> to vector<2x128xf32>
    %304 = arith.truncf %258 : vector<2x32xf32> to vector<2x32xbf16>
    %cst_81 = arith.constant dense<0.000000e+00> : vector<2x128xf32>
    %305 = tpu.matmul %304, %3, %cst_81 {dimension_numbers = #tpu.dot_dimension_numbers<[1], [0], [0], [1], [0, 0, 1, 1], [], []>} : vector<2x32xbf16>, vector<32x128xbf16>, vector<2x128xf32> -> vector<2x128xf32>
    %306 = arith.addf %303, %305 : vector<2x128xf32>
    %307 = vector.extract_strided_slice %306 {offsets = [0, 0], sizes = [2, 32], strides = [1, 1]} : vector<2x128xf32> to vector<2x32xf32>
    %308 = arith.negf %307 : vector<2x32xf32>
    %309 = math.exp %308 : vector<2x32xf32>
    %cst_82 = arith.constant 1.000000e+00 : f32
    %310 = vector.broadcast %cst_82 : f32 to vector<2x32xf32>
    %311 = arith.addf %310, %309 : vector<2x32xf32>
    %312 = arith.divf %310, %311 : vector<2x32xf32>
    %313 = vector.extract_strided_slice %306 {offsets = [0, 32], sizes = [2, 32], strides = [1, 1]} : vector<2x128xf32> to vector<2x32xf32>
    %314 = arith.negf %313 : vector<2x32xf32>
    %315 = math.exp %314 : vector<2x32xf32>
    %cst_83 = arith.constant 1.000000e+00 : f32
    %316 = vector.broadcast %cst_83 : f32 to vector<2x32xf32>
    %317 = arith.addf %316, %315 : vector<2x32xf32>
    %318 = arith.divf %316, %317 : vector<2x32xf32>
    %319 = vector.extract_strided_slice %306 {offsets = [0, 64], sizes = [2, 32], strides = [1, 1]} : vector<2x128xf32> to vector<2x32xf32>
    %320 = math.tanh %319 : vector<2x32xf32>
    %321 = vector.extract_strided_slice %306 {offsets = [0, 96], sizes = [2, 32], strides = [1, 1]} : vector<2x128xf32> to vector<2x32xf32>
    %322 = arith.negf %321 : vector<2x32xf32>
    %323 = math.exp %322 : vector<2x32xf32>
    %cst_84 = arith.constant 1.000000e+00 : f32
    %324 = vector.broadcast %cst_84 : f32 to vector<2x32xf32>
    %325 = arith.addf %324, %323 : vector<2x32xf32>
    %326 = arith.divf %324, %325 : vector<2x32xf32>
    %327 = arith.mulf %318, %256 : vector<2x32xf32>
    %328 = arith.mulf %312, %320 : vector<2x32xf32>
    %329 = arith.addf %327, %328 : vector<2x32xf32>
    %330 = math.tanh %329 : vector<2x32xf32>
    %331 = arith.mulf %326, %330 : vector<2x32xf32>
    %332 = arith.truncf %331 : vector<2x32xf32> to vector<2x32xbf16>
    %333 = arith.index_cast %c4_i32 : i32 to index
    %c0_85 = arith.constant 0 : index
    %c0_86 = arith.constant 0 : index
    %334 = vector.load %arg5[%333, %c0_85, %c0_86] : memref<8x2x32xbf16, #tpu.memory_space<vmem>>, vector<1x2x32xbf16>
    %335 = vector.shape_cast %334 : vector<1x2x32xbf16> to vector<2x32xbf16>
    %336 = vector.shape_cast %332 : vector<2x32xbf16> to vector<1x2x32xbf16>
    tpu.vector_store %arg5[%333, %c0_85, %c0_86], %336 {strides = array<i32>} : memref<8x2x32xbf16, #tpu.memory_space<vmem>>, vector<1x2x32xbf16>,
    %c7_i32_87 = arith.constant 7 : i32
    %337 = arith.subi %c7_i32_87, %c4_i32 : i32
    %338 = arith.index_cast %337 : i32 to index
    %c0_88 = arith.constant 0 : index
    %c0_89 = arith.constant 0 : index
    %339 = vector.load %arg2[%338, %c0_88, %c0_89] : memref<8x2x128xf32, #tpu.memory_space<vmem>>, vector<1x2x128xf32>
    %340 = vector.shape_cast %339 : vector<1x2x128xf32> to vector<2x128xf32>
    %341 = arith.truncf %295 : vector<2x32xf32> to vector<2x32xbf16>
    %cst_90 = arith.constant dense<0.000000e+00> : vector<2x128xf32>
    %342 = tpu.matmul %341, %4, %cst_90 {dimension_numbers = #tpu.dot_dimension_numbers<[1], [0], [0], [1], [0, 0, 1, 1], [], []>} : vector<2x32xbf16>, vector<32x128xbf16>, vector<2x128xf32> -> vector<2x128xf32>
    %343 = arith.addf %340, %342 : vector<2x128xf32>
    %344 = vector.extract_strided_slice %343 {offsets = [0, 0], sizes = [2, 32], strides = [1, 1]} : vector<2x128xf32> to vector<2x32xf32>
    %345 = arith.negf %344 : vector<2x32xf32>
    %346 = math.exp %345 : vector<2x32xf32>
    %cst_91 = arith.constant 1.000000e+00 : f32
    %347 = vector.broadcast %cst_91 : f32 to vector<2x32xf32>
    %348 = arith.addf %347, %346 : vector<2x32xf32>
    %349 = arith.divf %347, %348 : vector<2x32xf32>
    %350 = vector.extract_strided_slice %343 {offsets = [0, 32], sizes = [2, 32], strides = [1, 1]} : vector<2x128xf32> to vector<2x32xf32>
    %351 = arith.negf %350 : vector<2x32xf32>
    %352 = math.exp %351 : vector<2x32xf32>
    %cst_92 = arith.constant 1.000000e+00 : f32
    %353 = vector.broadcast %cst_92 : f32 to vector<2x32xf32>
    %354 = arith.addf %353, %352 : vector<2x32xf32>
    %355 = arith.divf %353, %354 : vector<2x32xf32>
    %356 = vector.extract_strided_slice %343 {offsets = [0, 64], sizes = [2, 32], strides = [1, 1]} : vector<2x128xf32> to vector<2x32xf32>
    %357 = math.tanh %356 : vector<2x32xf32>
    %358 = vector.extract_strided_slice %343 {offsets = [0, 96], sizes = [2, 32], strides = [1, 1]} : vector<2x128xf32> to vector<2x32xf32>
    %359 = arith.negf %358 : vector<2x32xf32>
    %360 = math.exp %359 : vector<2x32xf32>
    %cst_93 = arith.constant 1.000000e+00 : f32
    %361 = vector.broadcast %cst_93 : f32 to vector<2x32xf32>
    %362 = arith.addf %361, %360 : vector<2x32xf32>
    %363 = arith.divf %361, %362 : vector<2x32xf32>
    %364 = arith.mulf %355, %293 : vector<2x32xf32>
    %365 = arith.mulf %349, %357 : vector<2x32xf32>
    %366 = arith.addf %364, %365 : vector<2x32xf32>
    %367 = math.tanh %366 : vector<2x32xf32>
    %368 = arith.mulf %363, %367 : vector<2x32xf32>
    %369 = arith.truncf %368 : vector<2x32xf32> to vector<2x32xbf16>
    %370 = arith.index_cast %337 : i32 to index
    %c0_94 = arith.constant 0 : index
    %c0_95 = arith.constant 0 : index
    %371 = vector.load %arg6[%370, %c0_94, %c0_95] : memref<8x2x32xbf16, #tpu.memory_space<vmem>>, vector<1x2x32xbf16>
    %372 = vector.shape_cast %371 : vector<1x2x32xbf16> to vector<2x32xbf16>
    %373 = vector.shape_cast %369 : vector<2x32xbf16> to vector<1x2x32xbf16>
    tpu.vector_store %arg6[%370, %c0_94, %c0_95], %373 {strides = array<i32>} : memref<8x2x32xbf16, #tpu.memory_space<vmem>>, vector<1x2x32xbf16>,
    %c5_i32 = arith.constant 5 : i32
    %374 = arith.index_cast %c5_i32 : i32 to index
    %c0_96 = arith.constant 0 : index
    %c0_97 = arith.constant 0 : index
    %375 = vector.load %arg1[%374, %c0_96, %c0_97] : memref<8x2x128xf32, #tpu.memory_space<vmem>>, vector<1x2x128xf32>
    %376 = vector.shape_cast %375 : vector<1x2x128xf32> to vector<2x128xf32>
    %377 = arith.truncf %331 : vector<2x32xf32> to vector<2x32xbf16>
    %cst_98 = arith.constant dense<0.000000e+00> : vector<2x128xf32>
    %378 = tpu.matmul %377, %3, %cst_98 {dimension_numbers = #tpu.dot_dimension_numbers<[1], [0], [0], [1], [0, 0, 1, 1], [], []>} : vector<2x32xbf16>, vector<32x128xbf16>, vector<2x128xf32> -> vector<2x128xf32>
    %379 = arith.addf %376, %378 : vector<2x128xf32>
    %380 = vector.extract_strided_slice %379 {offsets = [0, 0], sizes = [2, 32], strides = [1, 1]} : vector<2x128xf32> to vector<2x32xf32>
    %381 = arith.negf %380 : vector<2x32xf32>
    %382 = math.exp %381 : vector<2x32xf32>
    %cst_99 = arith.constant 1.000000e+00 : f32
    %383 = vector.broadcast %cst_99 : f32 to vector<2x32xf32>
    %384 = arith.addf %383, %382 : vector<2x32xf32>
    %385 = arith.divf %383, %384 : vector<2x32xf32>
    %386 = vector.extract_strided_slice %379 {offsets = [0, 32], sizes = [2, 32], strides = [1, 1]} : vector<2x128xf32> to vector<2x32xf32>
    %387 = arith.negf %386 : vector<2x32xf32>
    %388 = math.exp %387 : vector<2x32xf32>
    %cst_100 = arith.constant 1.000000e+00 : f32
    %389 = vector.broadcast %cst_100 : f32 to vector<2x32xf32>
    %390 = arith.addf %389, %388 : vector<2x32xf32>
    %391 = arith.divf %389, %390 : vector<2x32xf32>
    %392 = vector.extract_strided_slice %379 {offsets = [0, 64], sizes = [2, 32], strides = [1, 1]} : vector<2x128xf32> to vector<2x32xf32>
    %393 = math.tanh %392 : vector<2x32xf32>
    %394 = vector.extract_strided_slice %379 {offsets = [0, 96], sizes = [2, 32], strides = [1, 1]} : vector<2x128xf32> to vector<2x32xf32>
    %395 = arith.negf %394 : vector<2x32xf32>
    %396 = math.exp %395 : vector<2x32xf32>
    %cst_101 = arith.constant 1.000000e+00 : f32
    %397 = vector.broadcast %cst_101 : f32 to vector<2x32xf32>
    %398 = arith.addf %397, %396 : vector<2x32xf32>
    %399 = arith.divf %397, %398 : vector<2x32xf32>
    %400 = arith.mulf %391, %329 : vector<2x32xf32>
    %401 = arith.mulf %385, %393 : vector<2x32xf32>
    %402 = arith.addf %400, %401 : vector<2x32xf32>
    %403 = math.tanh %402 : vector<2x32xf32>
    %404 = arith.mulf %399, %403 : vector<2x32xf32>
    %405 = arith.truncf %404 : vector<2x32xf32> to vector<2x32xbf16>
    %406 = arith.index_cast %c5_i32 : i32 to index
    %c0_102 = arith.constant 0 : index
    %c0_103 = arith.constant 0 : index
    %407 = vector.load %arg5[%406, %c0_102, %c0_103] : memref<8x2x32xbf16, #tpu.memory_space<vmem>>, vector<1x2x32xbf16>
    %408 = vector.shape_cast %407 : vector<1x2x32xbf16> to vector<2x32xbf16>
    %409 = vector.shape_cast %405 : vector<2x32xbf16> to vector<1x2x32xbf16>
    tpu.vector_store %arg5[%406, %c0_102, %c0_103], %409 {strides = array<i32>} : memref<8x2x32xbf16, #tpu.memory_space<vmem>>, vector<1x2x32xbf16>,
    %c7_i32_104 = arith.constant 7 : i32
    %410 = arith.subi %c7_i32_104, %c5_i32 : i32
    %411 = arith.index_cast %410 : i32 to index
    %c0_105 = arith.constant 0 : index
    %c0_106 = arith.constant 0 : index
    %412 = vector.load %arg2[%411, %c0_105, %c0_106] : memref<8x2x128xf32, #tpu.memory_space<vmem>>, vector<1x2x128xf32>
    %413 = vector.shape_cast %412 : vector<1x2x128xf32> to vector<2x128xf32>
    %414 = arith.truncf %368 : vector<2x32xf32> to vector<2x32xbf16>
    %cst_107 = arith.constant dense<0.000000e+00> : vector<2x128xf32>
    %415 = tpu.matmul %414, %4, %cst_107 {dimension_numbers = #tpu.dot_dimension_numbers<[1], [0], [0], [1], [0, 0, 1, 1], [], []>} : vector<2x32xbf16>, vector<32x128xbf16>, vector<2x128xf32> -> vector<2x128xf32>
    %416 = arith.addf %413, %415 : vector<2x128xf32>
    %417 = vector.extract_strided_slice %416 {offsets = [0, 0], sizes = [2, 32], strides = [1, 1]} : vector<2x128xf32> to vector<2x32xf32>
    %418 = arith.negf %417 : vector<2x32xf32>
    %419 = math.exp %418 : vector<2x32xf32>
    %cst_108 = arith.constant 1.000000e+00 : f32
    %420 = vector.broadcast %cst_108 : f32 to vector<2x32xf32>
    %421 = arith.addf %420, %419 : vector<2x32xf32>
    %422 = arith.divf %420, %421 : vector<2x32xf32>
    %423 = vector.extract_strided_slice %416 {offsets = [0, 32], sizes = [2, 32], strides = [1, 1]} : vector<2x128xf32> to vector<2x32xf32>
    %424 = arith.negf %423 : vector<2x32xf32>
    %425 = math.exp %424 : vector<2x32xf32>
    %cst_109 = arith.constant 1.000000e+00 : f32
    %426 = vector.broadcast %cst_109 : f32 to vector<2x32xf32>
    %427 = arith.addf %426, %425 : vector<2x32xf32>
    %428 = arith.divf %426, %427 : vector<2x32xf32>
    %429 = vector.extract_strided_slice %416 {offsets = [0, 64], sizes = [2, 32], strides = [1, 1]} : vector<2x128xf32> to vector<2x32xf32>
    %430 = math.tanh %429 : vector<2x32xf32>
    %431 = vector.extract_strided_slice %416 {offsets = [0, 96], sizes = [2, 32], strides = [1, 1]} : vector<2x128xf32> to vector<2x32xf32>
    %432 = arith.negf %431 : vector<2x32xf32>
    %433 = math.exp %432 : vector<2x32xf32>
    %cst_110 = arith.constant 1.000000e+00 : f32
    %434 = vector.broadcast %cst_110 : f32 to vector<2x32xf32>
    %435 = arith.addf %434, %433 : vector<2x32xf32>
    %436 = arith.divf %434, %435 : vector<2x32xf32>
    %437 = arith.mulf %428, %366 : vector<2x32xf32>
    %438 = arith.mulf %422, %430 : vector<2x32xf32>
    %439 = arith.addf %437, %438 : vector<2x32xf32>
    %440 = math.tanh %439 : vector<2x32xf32>
    %441 = arith.mulf %436, %440 : vector<2x32xf32>
    %442 = arith.truncf %441 : vector<2x32xf32> to vector<2x32xbf16>
    %443 = arith.index_cast %410 : i32 to index
    %c0_111 = arith.constant 0 : index
    %c0_112 = arith.constant 0 : index
    %444 = vector.load %arg6[%443, %c0_111, %c0_112] : memref<8x2x32xbf16, #tpu.memory_space<vmem>>, vector<1x2x32xbf16>
    %445 = vector.shape_cast %444 : vector<1x2x32xbf16> to vector<2x32xbf16>
    %446 = vector.shape_cast %442 : vector<2x32xbf16> to vector<1x2x32xbf16>
    tpu.vector_store %arg6[%443, %c0_111, %c0_112], %446 {strides = array<i32>} : memref<8x2x32xbf16, #tpu.memory_space<vmem>>, vector<1x2x32xbf16>,
    %c6_i32 = arith.constant 6 : i32
    %447 = arith.index_cast %c6_i32 : i32 to index
    %c0_113 = arith.constant 0 : index
    %c0_114 = arith.constant 0 : index
    %448 = vector.load %arg1[%447, %c0_113, %c0_114] : memref<8x2x128xf32, #tpu.memory_space<vmem>>, vector<1x2x128xf32>
    %449 = vector.shape_cast %448 : vector<1x2x128xf32> to vector<2x128xf32>
    %450 = arith.truncf %404 : vector<2x32xf32> to vector<2x32xbf16>
    %cst_115 = arith.constant dense<0.000000e+00> : vector<2x128xf32>
    %451 = tpu.matmul %450, %3, %cst_115 {dimension_numbers = #tpu.dot_dimension_numbers<[1], [0], [0], [1], [0, 0, 1, 1], [], []>} : vector<2x32xbf16>, vector<32x128xbf16>, vector<2x128xf32> -> vector<2x128xf32>
    %452 = arith.addf %449, %451 : vector<2x128xf32>
    %453 = vector.extract_strided_slice %452 {offsets = [0, 0], sizes = [2, 32], strides = [1, 1]} : vector<2x128xf32> to vector<2x32xf32>
    %454 = arith.negf %453 : vector<2x32xf32>
    %455 = math.exp %454 : vector<2x32xf32>
    %cst_116 = arith.constant 1.000000e+00 : f32
    %456 = vector.broadcast %cst_116 : f32 to vector<2x32xf32>
    %457 = arith.addf %456, %455 : vector<2x32xf32>
    %458 = arith.divf %456, %457 : vector<2x32xf32>
    %459 = vector.extract_strided_slice %452 {offsets = [0, 32], sizes = [2, 32], strides = [1, 1]} : vector<2x128xf32> to vector<2x32xf32>
    %460 = arith.negf %459 : vector<2x32xf32>
    %461 = math.exp %460 : vector<2x32xf32>
    %cst_117 = arith.constant 1.000000e+00 : f32
    %462 = vector.broadcast %cst_117 : f32 to vector<2x32xf32>
    %463 = arith.addf %462, %461 : vector<2x32xf32>
    %464 = arith.divf %462, %463 : vector<2x32xf32>
    %465 = vector.extract_strided_slice %452 {offsets = [0, 64], sizes = [2, 32], strides = [1, 1]} : vector<2x128xf32> to vector<2x32xf32>
    %466 = math.tanh %465 : vector<2x32xf32>
    %467 = vector.extract_strided_slice %452 {offsets = [0, 96], sizes = [2, 32], strides = [1, 1]} : vector<2x128xf32> to vector<2x32xf32>
    %468 = arith.negf %467 : vector<2x32xf32>
    %469 = math.exp %468 : vector<2x32xf32>
    %cst_118 = arith.constant 1.000000e+00 : f32
    %470 = vector.broadcast %cst_118 : f32 to vector<2x32xf32>
    %471 = arith.addf %470, %469 : vector<2x32xf32>
    %472 = arith.divf %470, %471 : vector<2x32xf32>
    %473 = arith.mulf %464, %402 : vector<2x32xf32>
    %474 = arith.mulf %458, %466 : vector<2x32xf32>
    %475 = arith.addf %473, %474 : vector<2x32xf32>
    %476 = math.tanh %475 : vector<2x32xf32>
    %477 = arith.mulf %472, %476 : vector<2x32xf32>
    %478 = arith.truncf %477 : vector<2x32xf32> to vector<2x32xbf16>
    %479 = arith.index_cast %c6_i32 : i32 to index
    %c0_119 = arith.constant 0 : index
    %c0_120 = arith.constant 0 : index
    %480 = vector.load %arg5[%479, %c0_119, %c0_120] : memref<8x2x32xbf16, #tpu.memory_space<vmem>>, vector<1x2x32xbf16>
    %481 = vector.shape_cast %480 : vector<1x2x32xbf16> to vector<2x32xbf16>
    %482 = vector.shape_cast %478 : vector<2x32xbf16> to vector<1x2x32xbf16>
    tpu.vector_store %arg5[%479, %c0_119, %c0_120], %482 {strides = array<i32>} : memref<8x2x32xbf16, #tpu.memory_space<vmem>>, vector<1x2x32xbf16>,
    %c7_i32_121 = arith.constant 7 : i32
    %483 = arith.subi %c7_i32_121, %c6_i32 : i32
    %484 = arith.index_cast %483 : i32 to index
    %c0_122 = arith.constant 0 : index
    %c0_123 = arith.constant 0 : index
    %485 = vector.load %arg2[%484, %c0_122, %c0_123] : memref<8x2x128xf32, #tpu.memory_space<vmem>>, vector<1x2x128xf32>
    %486 = vector.shape_cast %485 : vector<1x2x128xf32> to vector<2x128xf32>
    %487 = arith.truncf %441 : vector<2x32xf32> to vector<2x32xbf16>
    %cst_124 = arith.constant dense<0.000000e+00> : vector<2x128xf32>
    %488 = tpu.matmul %487, %4, %cst_124 {dimension_numbers = #tpu.dot_dimension_numbers<[1], [0], [0], [1], [0, 0, 1, 1], [], []>} : vector<2x32xbf16>, vector<32x128xbf16>, vector<2x128xf32> -> vector<2x128xf32>
    %489 = arith.addf %486, %488 : vector<2x128xf32>
    %490 = vector.extract_strided_slice %489 {offsets = [0, 0], sizes = [2, 32], strides = [1, 1]} : vector<2x128xf32> to vector<2x32xf32>
    %491 = arith.negf %490 : vector<2x32xf32>
    %492 = math.exp %491 : vector<2x32xf32>
    %cst_125 = arith.constant 1.000000e+00 : f32
    %493 = vector.broadcast %cst_125 : f32 to vector<2x32xf32>
    %494 = arith.addf %493, %492 : vector<2x32xf32>
    %495 = arith.divf %493, %494 : vector<2x32xf32>
    %496 = vector.extract_strided_slice %489 {offsets = [0, 32], sizes = [2, 32], strides = [1, 1]} : vector<2x128xf32> to vector<2x32xf32>
    %497 = arith.negf %496 : vector<2x32xf32>
    %498 = math.exp %497 : vector<2x32xf32>
    %cst_126 = arith.constant 1.000000e+00 : f32
    %499 = vector.broadcast %cst_126 : f32 to vector<2x32xf32>
    %500 = arith.addf %499, %498 : vector<2x32xf32>
    %501 = arith.divf %499, %500 : vector<2x32xf32>
    %502 = vector.extract_strided_slice %489 {offsets = [0, 64], sizes = [2, 32], strides = [1, 1]} : vector<2x128xf32> to vector<2x32xf32>
    %503 = math.tanh %502 : vector<2x32xf32>
    %504 = vector.extract_strided_slice %489 {offsets = [0, 96], sizes = [2, 32], strides = [1, 1]} : vector<2x128xf32> to vector<2x32xf32>
    %505 = arith.negf %504 : vector<2x32xf32>
    %506 = math.exp %505 : vector<2x32xf32>
    %cst_127 = arith.constant 1.000000e+00 : f32
    %507 = vector.broadcast %cst_127 : f32 to vector<2x32xf32>
    %508 = arith.addf %507, %506 : vector<2x32xf32>
    %509 = arith.divf %507, %508 : vector<2x32xf32>
    %510 = arith.mulf %501, %439 : vector<2x32xf32>
    %511 = arith.mulf %495, %503 : vector<2x32xf32>
    %512 = arith.addf %510, %511 : vector<2x32xf32>
    %513 = math.tanh %512 : vector<2x32xf32>
    %514 = arith.mulf %509, %513 : vector<2x32xf32>
    %515 = arith.truncf %514 : vector<2x32xf32> to vector<2x32xbf16>
    %516 = arith.index_cast %483 : i32 to index
    %c0_128 = arith.constant 0 : index
    %c0_129 = arith.constant 0 : index
    %517 = vector.load %arg6[%516, %c0_128, %c0_129] : memref<8x2x32xbf16, #tpu.memory_space<vmem>>, vector<1x2x32xbf16>
    %518 = vector.shape_cast %517 : vector<1x2x32xbf16> to vector<2x32xbf16>
    %519 = vector.shape_cast %515 : vector<2x32xbf16> to vector<1x2x32xbf16>
    tpu.vector_store %arg6[%516, %c0_128, %c0_129], %519 {strides = array<i32>} : memref<8x2x32xbf16, #tpu.memory_space<vmem>>, vector<1x2x32xbf16>,
    %c7_i32_130 = arith.constant 7 : i32
    %520 = arith.index_cast %c7_i32_130 : i32 to index
    %c0_131 = arith.constant 0 : index
    %c0_132 = arith.constant 0 : index
    %521 = vector.load %arg1[%520, %c0_131, %c0_132] : memref<8x2x128xf32, #tpu.memory_space<vmem>>, vector<1x2x128xf32>
    %522 = vector.shape_cast %521 : vector<1x2x128xf32> to vector<2x128xf32>
    %523 = arith.truncf %477 : vector<2x32xf32> to vector<2x32xbf16>
    %cst_133 = arith.constant dense<0.000000e+00> : vector<2x128xf32>
    %524 = tpu.matmul %523, %3, %cst_133 {dimension_numbers = #tpu.dot_dimension_numbers<[1], [0], [0], [1], [0, 0, 1, 1], [], []>} : vector<2x32xbf16>, vector<32x128xbf16>, vector<2x128xf32> -> vector<2x128xf32>
    %525 = arith.addf %522, %524 : vector<2x128xf32>
    %526 = vector.extract_strided_slice %525 {offsets = [0, 0], sizes = [2, 32], strides = [1, 1]} : vector<2x128xf32> to vector<2x32xf32>
    %527 = arith.negf %526 : vector<2x32xf32>
    %528 = math.exp %527 : vector<2x32xf32>
    %cst_134 = arith.constant 1.000000e+00 : f32
    %529 = vector.broadcast %cst_134 : f32 to vector<2x32xf32>
    %530 = arith.addf %529, %528 : vector<2x32xf32>
    %531 = arith.divf %529, %530 : vector<2x32xf32>
    %532 = vector.extract_strided_slice %525 {offsets = [0, 32], sizes = [2, 32], strides = [1, 1]} : vector<2x128xf32> to vector<2x32xf32>
    %533 = arith.negf %532 : vector<2x32xf32>
    %534 = math.exp %533 : vector<2x32xf32>
    %cst_135 = arith.constant 1.000000e+00 : f32
    %535 = vector.broadcast %cst_135 : f32 to vector<2x32xf32>
    %536 = arith.addf %535, %534 : vector<2x32xf32>
    %537 = arith.divf %535, %536 : vector<2x32xf32>
    %538 = vector.extract_strided_slice %525 {offsets = [0, 64], sizes = [2, 32], strides = [1, 1]} : vector<2x128xf32> to vector<2x32xf32>
    %539 = math.tanh %538 : vector<2x32xf32>
    %540 = vector.extract_strided_slice %525 {offsets = [0, 96], sizes = [2, 32], strides = [1, 1]} : vector<2x128xf32> to vector<2x32xf32>
    %541 = arith.negf %540 : vector<2x32xf32>
    %542 = math.exp %541 : vector<2x32xf32>
    %cst_136 = arith.constant 1.000000e+00 : f32
    %543 = vector.broadcast %cst_136 : f32 to vector<2x32xf32>
    %544 = arith.addf %543, %542 : vector<2x32xf32>
    %545 = arith.divf %543, %544 : vector<2x32xf32>
    %546 = arith.mulf %537, %475 : vector<2x32xf32>
    %547 = arith.mulf %531, %539 : vector<2x32xf32>
    %548 = arith.addf %546, %547 : vector<2x32xf32>
    %549 = math.tanh %548 : vector<2x32xf32>
    %550 = arith.mulf %545, %549 : vector<2x32xf32>
    %551 = arith.truncf %550 : vector<2x32xf32> to vector<2x32xbf16>
    %552 = arith.index_cast %c7_i32_130 : i32 to index
    %c0_137 = arith.constant 0 : index
    %c0_138 = arith.constant 0 : index
    %553 = vector.load %arg5[%552, %c0_137, %c0_138] : memref<8x2x32xbf16, #tpu.memory_space<vmem>>, vector<1x2x32xbf16>
    %554 = vector.shape_cast %553 : vector<1x2x32xbf16> to vector<2x32xbf16>
    %555 = vector.shape_cast %551 : vector<2x32xbf16> to vector<1x2x32xbf16>
    tpu.vector_store %arg5[%552, %c0_137, %c0_138], %555 {strides = array<i32>} : memref<8x2x32xbf16, #tpu.memory_space<vmem>>, vector<1x2x32xbf16>,
    %c7_i32_139 = arith.constant 7 : i32
    %556 = arith.subi %c7_i32_139, %c7_i32_130 : i32
    %557 = arith.index_cast %556 : i32 to index
    %c0_140 = arith.constant 0 : index
    %c0_141 = arith.constant 0 : index
    %558 = vector.load %arg2[%557, %c0_140, %c0_141] : memref<8x2x128xf32, #tpu.memory_space<vmem>>, vector<1x2x128xf32>
    %559 = vector.shape_cast %558 : vector<1x2x128xf32> to vector<2x128xf32>
    %560 = arith.truncf %514 : vector<2x32xf32> to vector<2x32xbf16>
    %cst_142 = arith.constant dense<0.000000e+00> : vector<2x128xf32>
    %561 = tpu.matmul %560, %4, %cst_142 {dimension_numbers = #tpu.dot_dimension_numbers<[1], [0], [0], [1], [0, 0, 1, 1], [], []>} : vector<2x32xbf16>, vector<32x128xbf16>, vector<2x128xf32> -> vector<2x128xf32>
    %562 = arith.addf %559, %561 : vector<2x128xf32>
    %563 = vector.extract_strided_slice %562 {offsets = [0, 0], sizes = [2, 32], strides = [1, 1]} : vector<2x128xf32> to vector<2x32xf32>
    %564 = arith.negf %563 : vector<2x32xf32>
    %565 = math.exp %564 : vector<2x32xf32>
    %cst_143 = arith.constant 1.000000e+00 : f32
    %566 = vector.broadcast %cst_143 : f32 to vector<2x32xf32>
    %567 = arith.addf %566, %565 : vector<2x32xf32>
    %568 = arith.divf %566, %567 : vector<2x32xf32>
    %569 = vector.extract_strided_slice %562 {offsets = [0, 32], sizes = [2, 32], strides = [1, 1]} : vector<2x128xf32> to vector<2x32xf32>
    %570 = arith.negf %569 : vector<2x32xf32>
    %571 = math.exp %570 : vector<2x32xf32>
    %cst_144 = arith.constant 1.000000e+00 : f32
    %572 = vector.broadcast %cst_144 : f32 to vector<2x32xf32>
    %573 = arith.addf %572, %571 : vector<2x32xf32>
    %574 = arith.divf %572, %573 : vector<2x32xf32>
    %575 = vector.extract_strided_slice %562 {offsets = [0, 64], sizes = [2, 32], strides = [1, 1]} : vector<2x128xf32> to vector<2x32xf32>
    %576 = math.tanh %575 : vector<2x32xf32>
    %577 = vector.extract_strided_slice %562 {offsets = [0, 96], sizes = [2, 32], strides = [1, 1]} : vector<2x128xf32> to vector<2x32xf32>
    %578 = arith.negf %577 : vector<2x32xf32>
    %579 = math.exp %578 : vector<2x32xf32>
    %cst_145 = arith.constant 1.000000e+00 : f32
    %580 = vector.broadcast %cst_145 : f32 to vector<2x32xf32>
    %581 = arith.addf %580, %579 : vector<2x32xf32>
    %582 = arith.divf %580, %581 : vector<2x32xf32>
    %583 = arith.mulf %574, %512 : vector<2x32xf32>
    %584 = arith.mulf %568, %576 : vector<2x32xf32>
    %585 = arith.addf %583, %584 : vector<2x32xf32>
    %586 = math.tanh %585 : vector<2x32xf32>
    %587 = arith.mulf %582, %586 : vector<2x32xf32>
    %588 = arith.truncf %587 : vector<2x32xf32> to vector<2x32xbf16>
    %589 = arith.index_cast %556 : i32 to index
    %c0_146 = arith.constant 0 : index
    %c0_147 = arith.constant 0 : index
    %590 = vector.load %arg6[%589, %c0_146, %c0_147] : memref<8x2x32xbf16, #tpu.memory_space<vmem>>, vector<1x2x32xbf16>
    %591 = vector.shape_cast %590 : vector<1x2x32xbf16> to vector<2x32xbf16>
    %592 = vector.shape_cast %588 : vector<2x32xbf16> to vector<1x2x32xbf16>
    tpu.vector_store %arg6[%589, %c0_146, %c0_147], %592 {strides = array<i32>} : memref<8x2x32xbf16, #tpu.memory_space<vmem>>, vector<1x2x32xbf16>,
    %c8_i32 = arith.constant 8 : i32
    %c0_148 = arith.constant 0 : index
    %c0_149 = arith.constant 0 : index
    %593 = vector.load %arg7[%c0_148, %c0_149] : memref<2x32xf32, #tpu.memory_space<vmem>>, vector<2x32xf32>
    tpu.vector_store %arg7[%c0_148, %c0_149], %550 {strides = array<i32>} : memref<2x32xf32, #tpu.memory_space<vmem>>, vector<2x32xf32>,
    %c0_150 = arith.constant 0 : index
    %c0_151 = arith.constant 0 : index
    %594 = vector.load %arg8[%c0_150, %c0_151] : memref<2x32xf32, #tpu.memory_space<vmem>>, vector<2x32xf32>
    tpu.vector_store %arg8[%c0_150, %c0_151], %548 {strides = array<i32>} : memref<2x32xf32, #tpu.memory_space<vmem>>, vector<2x32xf32>,
    %c0_152 = arith.constant 0 : index
    %c0_153 = arith.constant 0 : index
    %595 = vector.load %arg9[%c0_152, %c0_153] : memref<2x32xf32, #tpu.memory_space<vmem>>, vector<2x32xf32>
    tpu.vector_store %arg9[%c0_152, %c0_153], %587 {strides = array<i32>} : memref<2x32xf32, #tpu.memory_space<vmem>>, vector<2x32xf32>,
    %c0_154 = arith.constant 0 : index
    %c0_155 = arith.constant 0 : index
    %596 = vector.load %arg10[%c0_154, %c0_155] : memref<2x32xf32, #tpu.memory_space<vmem>>, vector<2x32xf32>
    tpu.vector_store %arg10[%c0_154, %c0_155], %585 {strides = array<i32>} : memref<2x32xf32, #tpu.memory_space<vmem>>, vector<2x32xf32>,
    return
  }
  func.func @transform_0(%arg0: i32) -> (i32, i32, i32) {
    %c0_i32 = arith.constant 0 : i32
    %c0_i32_0 = arith.constant 0 : i32
    %c0_i32_1 = arith.constant 0 : i32
    return %arg0, %c0_i32, %c0_i32_0 : i32, i32, i32
  }
  func.func @transform_1(%arg0: i32) -> (i32, i32, i32) {
    %c0_i32 = arith.constant 0 : i32
    %0 = arith.subi %c0_i32, %arg0 : i32
    %c0_i32_0 = arith.constant 0 : i32
    %c1_i32 = arith.constant 1 : i32
    %c0_i32_1 = arith.constant 0 : i32
    return %0, %c0_i32_0, %c1_i32 : i32, i32, i32
  }
  func.func @transform_2(%arg0: i32) -> (i32, i32) {
    %c0_i32 = arith.constant 0 : i32
    %c0_i32_0 = arith.constant 0 : i32
    %c0_i32_1 = arith.constant 0 : i32
    return %c0_i32, %c0_i32_0 : i32, i32
  }
  func.func @transform_3(%arg0: i32) -> (i32, i32) {
    %c0_i32 = arith.constant 0 : i32
    %c0_i32_0 = arith.constant 0 : i32
    %c0_i32_1 = arith.constant 0 : i32
    return %c0_i32, %c0_i32_0 : i32, i32
  }
  func.func @transform_4(%arg0: i32) -> (i32, i32, i32) {
    %c0_i32 = arith.constant 0 : i32
    %c0_i32_0 = arith.constant 0 : i32
    %c0_i32_1 = arith.constant 0 : i32
    return %arg0, %c0_i32, %c0_i32_0 : i32, i32, i32
  }
  func.func @transform_5(%arg0: i32) -> (i32, i32, i32) {
    %c0_i32 = arith.constant 0 : i32
    %0 = arith.subi %c0_i32, %arg0 : i32
    %c0_i32_0 = arith.constant 0 : i32
    %c0_i32_1 = arith.constant 0 : i32
    %c0_i32_2 = arith.constant 0 : i32
    return %0, %c0_i32_0, %c0_i32_1 : i32, i32, i32
  }
}

</mosaic_0001>

<llo_original>
// kernel: sentence_classifier2_forward.6
$region0: #{sentence_classifier2_forward.6}
  #allocation0 [shape = 'u32[]', space=smem, size = 0x4, offset = 0x4, fixed_abs, tag = 'smem constant byte address 0x4 - core index']
  #allocation1 [shape = 'u32[144,128]{1,0:T(1,128)}', space=vmem, size = 0x12000, scoped, tag = 'internal scratch']
  %s0 = inlined_call_operand.vmem [shape: bf16[16,32], index: 0, kind: input, shape index: {}]
  %s1 = inlined_call_operand.vmem [shape: bf16[16,32], index: 1, kind: input, shape index: {}]
  %s2 = inlined_call_operand.vmem [shape: bf16[32,256], index: 2, kind: input, shape index: {}]
  %s3 = inlined_call_operand.vmem [shape: bf16[32,256], index: 3, kind: input, shape index: {}]
  %s4 = inlined_call_operand.vmem [shape: f32[1,256], index: 4, kind: input, shape index: {}]
  %s5 = inlined_call_operand.vmem [shape: f32[16,256], index: 5, kind: output, shape index: {}]
  %s6 = sld [smem:[#allocation0]]
  $region30: #{sentence_classifier2_forward.6} parent=0
    _
  %s8 = ssub.s32 1, %s6
  %s9 = scalar_select 0, %s8, %s6
  // Predicated region
  $region2: #{sentence_classifier2_forward.6} parent=0 // pred_check
    _
  $region3: #{sentence_classifier2_forward.6} parent=0 // pred_check_branch
    %11 = sbr.rel (0) target = $region5
  $region4: #{sentence_classifier2_forward.6} parent=0 // pred_region
    _
  $region5: #{sentence_classifier2_forward.6} parent=0 // pred_fallthru
    _
  // Predicated region
  $region6: #{sentence_classifier2_forward.6} parent=0 // pred_check
    _
  $region7: #{sentence_classifier2_forward.6} parent=0 // pred_check_branch
    %13 = sbr.rel (0) target = $region9
  $region8: #{sentence_classifier2_forward.6} parent=0 // pred_region
    _
  $region9: #{sentence_classifier2_forward.6} parent=0 // pred_fallthru
    _
  // Predicated region
  $region10: #{sentence_classifier2_forward.6} parent=0 // pred_check
    _
  $region11: #{sentence_classifier2_forward.6} parent=0 // pred_check_branch
    %15 = sbr.rel (0) target = $region13
  $region12: #{sentence_classifier2_forward.6} parent=0 // pred_region
    _
  $region13: #{sentence_classifier2_forward.6} parent=0 // pred_fallthru
    _
  // Predicated region
  $region14: #{sentence_classifier2_forward.6} parent=0 // pred_check
    _
  $region15: #{sentence_classifier2_forward.6} parent=0 // pred_check_branch
    %17 = sbr.rel (0) target = $region17
  $region16: #{sentence_classifier2_forward.6} parent=0 // pred_region
    _
  $region17: #{sentence_classifier2_forward.6} parent=0 // pred_fallthru
    _
  // Predicated region
  $region18: #{sentence_classifier2_forward.6} parent=0 // pred_check
    _
  $region19: #{sentence_classifier2_forward.6} parent=0 // pred_check_branch
    %19 = sbr.rel (0) target = $region21
  $region20: #{sentence_classifier2_forward.6} parent=0 // pred_region
    _
  $region21: #{sentence_classifier2_forward.6} parent=0 // pred_fallthru
    _
  %v21 = vld [vmem:[%s0] sm:$0xf]
  %v22 = vld [vmem:[%s0 + $0x4] sm:$0xf]
  %v23 = vld [vmem:[%s2] sm:$0xff]
  %v24 = vld [vmem:[%s2 + $0x8] sm:$0xff]
  %v25 = vld [vmem:[%s2 + $0x10] sm:$0xff]
  %v26 = vld [vmem:[%s2 + $0x18] sm:$0xff]
  %v27 = vld [vmem:[%s1] sm:$0xf]
  %v28 = vld [vmem:[%s1 + $0x4] sm:$0xf]
  %v29 = vld [vmem:[%s3] sm:$0xff]
  %v30 = vld [vmem:[%s3 + $0x8] sm:$0xff]
  %v31 = vld [vmem:[%s3 + $0x10] sm:$0xff]
  %v32 = vld [vmem:[%s3 + $0x18] sm:$0xff]
  %v35 = vunpack.c.l.b16 %v27
  %v36 = vunpack.c.l.b16 %v28
  %v37 = vpack.c.b16 %v36, %v35
  %v42 = vunpack.c.l.b16 %v29
  %v43 = vunpack.c.h.b16 %v29
  %v44 = vunpack.c.l.b16 %v30
  %v45 = vunpack.c.h.b16 %v30
  %v46 = vunpack.c.l.b16 %v31
  %v47 = vunpack.c.h.b16 %v31
  %v48 = vunpack.c.l.b16 %v32
  %v49 = vunpack.c.h.b16 %v32
  %v50 = vpack.c.b16 %v44, %v42
  %v51 = vpack.c.b16 %v45, %v43
  %v52 = vpack.c.b16 %v48, %v46
  %v53 = vpack.c.b16 %v49, %v47
  %vm58 = vcmask 261120
  %v60 = vsel %vm58, %v37, 0
  %62 = vmatprep.subr.bf16.mxu0 %v51
  %63 = vmatpush1.bf16.msra.mxu0 %v50
  %64 = vmatprep.subr.bf16.mxu0 %v53
  %65 = vmatpush1.bf16.msra.mxu0 %v52
  %66 = vmatprep.subr.bf16.mxu0 0
  %67 = vmatpush1.bf16.msra.mxu0 0
  %68 = vmatprep.subr.bf16.mxu0 0
  %69 = vmatpush1.bf16.msra.mxu0 0
  %70 = vmatprep.subr.bf16.mxu0 0
  %71 = vmatpush1.bf16.msra.mxu0 0
  %72 = vmatprep.subr.bf16.mxu0 0
  %73 = vmatpush1.bf16.msra.mxu0 0
  %74 = vmatprep.subr.bf16.mxu0 0
  %75 = vmatpush1.bf16.msra.mxu0 0
  %76 = vmatprep.subr.bf16.mxu0 0
  %77 = vmatpush1.bf16.msra.mxu0 0
  %78 = vmatprep.subr.bf16.mxu0 0
  %79 = vmatpush1.bf16.msra.mxu0 0
  %80 = vmatprep.subr.bf16.mxu0 0
  %81 = vmatpush1.bf16.msra.mxu0 0
  %82 = vmatprep.subr.bf16.mxu0 0
  %83 = vmatpush1.bf16.msra.mxu0 0
  %84 = vmatprep.subr.bf16.mxu0 0
  %85 = vmatpush1.bf16.msra.mxu0 0
  %86 = vmatprep.subr.bf16.mxu0 0
  %87 = vmatpush1.bf16.msra.mxu0 0
  %88 = vmatprep.subr.bf16.mxu0 0
  %89 = vmatpush1.bf16.msra.mxu0 0
  %90 = vmatprep.subr.bf16.mxu0 0
  %91 = vmatpush1.bf16.msra.mxu0 0
  %92 = vmatprep.subr.bf16.mxu0 0
  %93 = vmatpush1.bf16.msra.mxu0 0
  %94 = vmatprep.mubr.bf16.mxu0 0
  %95 = vmatmul.mubr.bf16.gmra.mrb[0].mxu0 %v60
  %v96 = vpop.f32.mrb[0].mxu0
  %v97 = vadd.f32 0.0, %v96
  %v98 = vpop.f32.mrb[0].mxu0
  %v99 = vadd.f32 0.0, %v98
  %v100 = vpop.f32.mrb[0].mxu0
  %v101 = vadd.f32 0.0, %v100
  %v102 = vpop.f32.mrb[0].mxu0
  %v103 = vadd.f32 0.0, %v102
  %104 = vdwg.mxu0
  %v107 = vunpack.c.l.b16 %v21
  %v108 = vunpack.c.l.b16 %v22
  %v109 = vpack.c.b16 %v108, %v107
  %v114 = vunpack.c.l.b16 %v23
  %v115 = vunpack.c.h.b16 %v23
  %v116 = vunpack.c.l.b16 %v24
  %v117 = vunpack.c.h.b16 %v24
  %v118 = vunpack.c.l.b16 %v25
  %v119 = vunpack.c.h.b16 %v25
  %v120 = vunpack.c.l.b16 %v26
  %v121 = vunpack.c.h.b16 %v26
  %v122 = vpack.c.b16 %v116, %v114
  %v123 = vpack.c.b16 %v117, %v115
  %v124 = vpack.c.b16 %v120, %v118
  %v125 = vpack.c.b16 %v121, %v119
  %v131 = vsel %vm58, %v109, 0
  %133 = vmatprep.subr.bf16.mxu0 %v123
  %134 = vmatpush1.bf16.msra.mxu0 %v122
  %135 = vmatprep.subr.bf16.mxu0 %v125
  %136 = vmatpush1.bf16.msra.mxu0 %v124
  %137 = vmatprep.subr.bf16.mxu0 0
  %138 = vmatpush1.bf16.msra.mxu0 0
  %139 = vmatprep.subr.bf16.mxu0 0
  %140 = vmatpush1.bf16.msra.mxu0 0
  %141 = vmatprep.subr.bf16.mxu0 0
  %142 = vmatpush1.bf16.msra.mxu0 0
  %143 = vmatprep.subr.bf16.mxu0 0
  %144 = vmatpush1.bf16.msra.mxu0 0
  %145 = vmatprep.subr.bf16.mxu0 0
  %146 = vmatpush1.bf16.msra.mxu0 0
  %147 = vmatprep.subr.bf16.mxu0 0
  %148 = vmatpush1.bf16.msra.mxu0 0
  %149 = vmatprep.subr.bf16.mxu0 0
  %150 = vmatpush1.bf16.msra.mxu0 0
  %151 = vmatprep.subr.bf16.mxu0 0
  %152 = vmatpush1.bf16.msra.mxu0 0
  %153 = vmatprep.subr.bf16.mxu0 0
  %154 = vmatpush1.bf16.msra.mxu0 0
  %155 = vmatprep.subr.bf16.mxu0 0
  %156 = vmatpush1.bf16.msra.mxu0 0
  %157 = vmatprep.subr.bf16.mxu0 0
  %158 = vmatpush1.bf16.msra.mxu0 0
  %159 = vmatprep.subr.bf16.mxu0 0
  %160 = vmatpush1.bf16.msra.mxu0 0
  %161 = vmatprep.subr.bf16.mxu0 0
  %162 = vmatpush1.bf16.msra.mxu0 0
  %163 = vmatprep.subr.bf16.mxu0 0
  %164 = vmatpush1.bf16.msra.mxu0 0
  %165 = vmatprep.mubr.bf16.mxu0 0
  %166 = vmatmul.mubr.bf16.gmra.mrb[0].mxu0 %v131
  %v167 = vpop.f32.mrb[0].mxu0
  %v168 = vadd.f32 %v97, %v167
  %v169 = vpop.f32.mrb[0].mxu0
  %v170 = vadd.f32 %v99, %v169
  %v171 = vpop.f32.mrb[0].mxu0
  %v172 = vadd.f32 %v101, %v171
  %v173 = vpop.f32.mrb[0].mxu0
  %v174 = vadd.f32 %v103, %v173
  %175 = vdwg.mxu0
  %v176 = vld [vmem:[%s4] sm:$0x3]
  %v178 = vlaneseq
  %v179 = vshrl.u32 %v178, 7
  %v180 = vsub.s32 0, %v179
  %v181 = vrot.slane %v176, %v180
  %v182 = vlaneseq
  %v183 = vshrl.u32 %v182, 7
  %v184 = vsub.s32 1, %v183
  %v185 = vrot.slane %v176, %v184
  %v188 = vadd.f32 %v168, %v181
  %v189 = vadd.f32 %v170, %v185
  %v190 = vadd.f32 %v172, %v181
  %v191 = vadd.f32 %v174, %v185
  %192 = vst [vmem:[%s5] sm:$0xff] %v188
  %193 = vst [vmem:[%s5 + $0x8] sm:$0xff] %v189
  %194 = vst [vmem:[%s5 + $0x10] sm:$0xff] %v190
  %195 = vst [vmem:[%s5 + $0x18] sm:$0xff] %v191
  // Predicated region
  $region22: #{sentence_classifier2_forward.6} parent=0 // pred_check
    _
  $region23: #{sentence_classifier2_forward.6} parent=0 // pred_check_branch
    %197 = sbr.rel (0) target = $region25
  $region24: #{sentence_classifier2_forward.6} parent=0 // pred_region
    _
  $region25: #{sentence_classifier2_forward.6} parent=0 // pred_fallthru
    _
  // Predicated region
  $region26: #{sentence_classifier2_forward.6} parent=0 // pred_check
    _
  $region27: #{sentence_classifier2_forward.6} parent=0 // pred_check_branch
    %199 = sbr.rel (0) target = $region29
  $region28: #{sentence_classifier2_forward.6} parent=0 // pred_region
    _
  $region29: #{sentence_classifier2_forward.6} parent=0 // pred_fallthru
    _

// kernel: sentence_classifier2_forward.4
$region0: #{sentence_classifier2_forward.4}
  #allocation0 [shape = 'u32[]', space=smem, size = 0x4, offset = 0x4, fixed_abs, tag = 'smem constant byte address 0x4 - core index']
  #allocation1 [shape = 'u32[144,128]{1,0:T(1,128)}', space=vmem, size = 0x12000, scoped, tag = 'internal scratch']
  %s0 = inlined_call_operand.vmem [shape: f32[16,32], index: 0, kind: input, shape index: {}]
  %s1 = inlined_call_operand.vmem [shape: bf16[32,256], index: 1, kind: input, shape index: {}]
  %s2 = inlined_call_operand.vmem [shape: f32[1,256], index: 2, kind: input, shape index: {}]
  %s3 = inlined_call_operand.vmem [shape: f32[16,256], index: 3, kind: output, shape index: {}]
  %s4 = sld [smem:[#allocation0]]
  $region22: #{sentence_classifier2_forward.4} parent=0
    _
  %s6 = ssub.s32 1, %s4
  %s7 = scalar_select 0, %s6, %s4
  // Predicated region
  $region2: #{sentence_classifier2_forward.4} parent=0 // pred_check
    _
  $region3: #{sentence_classifier2_forward.4} parent=0 // pred_check_branch
    %9 = sbr.rel (0) target = $region5
  $region4: #{sentence_classifier2_forward.4} parent=0 // pred_region
    _
  $region5: #{sentence_classifier2_forward.4} parent=0 // pred_fallthru
    _
  // Predicated region
  $region6: #{sentence_classifier2_forward.4} parent=0 // pred_check
    _
  $region7: #{sentence_classifier2_forward.4} parent=0 // pred_check_branch
    %11 = sbr.rel (0) target = $region9
  $region8: #{sentence_classifier2_forward.4} parent=0 // pred_region
    _
  $region9: #{sentence_classifier2_forward.4} parent=0 // pred_fallthru
    _
  // Predicated region
  $region10: #{sentence_classifier2_forward.4} parent=0 // pred_check
    _
  $region11: #{sentence_classifier2_forward.4} parent=0 // pred_check_branch
    %13 = sbr.rel (0) target = $region13
  $region12: #{sentence_classifier2_forward.4} parent=0 // pred_region
    _
  $region13: #{sentence_classifier2_forward.4} parent=0 // pred_fallthru
    _
  %v15 = vld [vmem:[%s0] sm:$0xff]
  %v16 = vld [vmem:[%s0 + $0x8] sm:$0xff]
  %v17 = vpack.c.bf16 %v16, %v15
  %v18 = vld [vmem:[%s1] sm:$0xff]
  %v19 = vld [vmem:[%s1 + $0x8] sm:$0xff]
  %v20 = vld [vmem:[%s1 + $0x10] sm:$0xff]
  %v21 = vld [vmem:[%s1 + $0x18] sm:$0xff]
  %v22 = vld [vmem:[%s2] sm:$0x3]
  %v24 = vlaneseq
  %v25 = vshrl.u32 %v24, 7
  %v26 = vsub.s32 0, %v25
  %v27 = vrot.slane %v22, %v26
  %v28 = vlaneseq
  %v29 = vshrl.u32 %v28, 7
  %v30 = vsub.s32 1, %v29
  %v31 = vrot.slane %v22, %v30
  %v38 = vunpack.c.l.b16 %v18
  %v39 = vunpack.c.h.b16 %v18
  %v40 = vunpack.c.l.b16 %v19
  %v41 = vunpack.c.h.b16 %v19
  %v42 = vunpack.c.l.b16 %v20
  %v43 = vunpack.c.h.b16 %v20
  %v44 = vunpack.c.l.b16 %v21
  %v45 = vunpack.c.h.b16 %v21
  %v46 = vpack.c.b16 %v40, %v38
  %v47 = vpack.c.b16 %v41, %v39
  %v48 = vpack.c.b16 %v44, %v42
  %v49 = vpack.c.b16 %v45, %v43
  %vm54 = vcmask 261120
  %v56 = vsel %vm54, %v17, 0
  %58 = vmatprep.subr.bf16.mxu0 %v47
  %59 = vmatpush1.bf16.msra.mxu0 %v46
  %60 = vmatprep.subr.bf16.mxu0 %v49
  %61 = vmatpush1.bf16.msra.mxu0 %v48
  %62 = vmatprep.subr.bf16.mxu0 0
  %63 = vmatpush1.bf16.msra.mxu0 0
  %64 = vmatprep.subr.bf16.mxu0 0
  %65 = vmatpush1.bf16.msra.mxu0 0
  %66 = vmatprep.subr.bf16.mxu0 0
  %67 = vmatpush1.bf16.msra.mxu0 0
  %68 = vmatprep.subr.bf16.mxu0 0
  %69 = vmatpush1.bf16.msra.mxu0 0
  %70 = vmatprep.subr.bf16.mxu0 0
  %71 = vmatpush1.bf16.msra.mxu0 0
  %72 = vmatprep.subr.bf16.mxu0 0
  %73 = vmatpush1.bf16.msra.mxu0 0
  %74 = vmatprep.subr.bf16.mxu0 0
  %75 = vmatpush1.bf16.msra.mxu0 0
  %76 = vmatprep.subr.bf16.mxu0 0
  %77 = vmatpush1.bf16.msra.mxu0 0
  %78 = vmatprep.subr.bf16.mxu0 0
  %79 = vmatpush1.bf16.msra.mxu0 0
  %80 = vmatprep.subr.bf16.mxu0 0
  %81 = vmatpush1.bf16.msra.mxu0 0
  %82 = vmatprep.subr.bf16.mxu0 0
  %83 = vmatpush1.bf16.msra.mxu0 0
  %84 = vmatprep.subr.bf16.mxu0 0
  %85 = vmatpush1.bf16.msra.mxu0 0
  %86 = vmatprep.subr.bf16.mxu0 0
  %87 = vmatpush1.bf16.msra.mxu0 0
  %88 = vmatprep.subr.bf16.mxu0 0
  %89 = vmatpush1.bf16.msra.mxu0 0
  %90 = vmatprep.mubr.bf16.mxu0 0
  %91 = vmatmul.mubr.bf16.gmra.mrb[0].mxu0 %v56
  %v92 = vpop.f32.mrb[0].mxu0
  %v93 = vadd.f32 %v27, %v92
  %v94 = vpop.f32.mrb[0].mxu0
  %v95 = vadd.f32 %v31, %v94
  %v96 = vpop.f32.mrb[0].mxu0
  %v97 = vadd.f32 %v27, %v96
  %v98 = vpop.f32.mrb[0].mxu0
  %v99 = vadd.f32 %v31, %v98
  %100 = vdwg.mxu0
  %101 = vst [vmem:[%s3] sm:$0xff] %v93
  %102 = vst [vmem:[%s3 + $0x8] sm:$0xff] %v95
  %103 = vst [vmem:[%s3 + $0x10] sm:$0xff] %v97
  %104 = vst [vmem:[%s3 + $0x18] sm:$0xff] %v99
  // Predicated region
  $region14: #{sentence_classifier2_forward.4} parent=0 // pred_check
    _
  $region15: #{sentence_classifier2_forward.4} parent=0 // pred_check_branch
    %106 = sbr.rel (0) target = $region17
  $region16: #{sentence_classifier2_forward.4} parent=0 // pred_region
    _
  $region17: #{sentence_classifier2_forward.4} parent=0 // pred_fallthru
    _
  // Predicated region
  $region18: #{sentence_classifier2_forward.4} parent=0 // pred_check
    _
  $region19: #{sentence_classifier2_forward.4} parent=0 // pred_check_branch
    %108 = sbr.rel (0) target = $region21
  $region20: #{sentence_classifier2_forward.4} parent=0 // pred_region
    _
  $region21: #{sentence_classifier2_forward.4} parent=0 // pred_fallthru
    _

// kernel: sentence_classifier2_forward.7
$region0: #{sentence_classifier2_forward.7}
  #allocation0 [shape = 'u32[]', space=smem, size = 0x4, offset = 0x4, fixed_abs, tag = 'smem constant byte address 0x4 - core index']
  #allocation1 [shape = 'u32[144,128]{1,0:T(1,128)}', space=vmem, size = 0x12000, scoped, tag = 'internal scratch']
  #allocation2 [shape = 'f32[2,32]{1,0:T(2,128)}', space=vmem, size = 0x400, scoped, tag = 'scratch operand']
  #allocation3 [shape = 'f32[2,32]{1,0:T(2,128)}', space=vmem, size = 0x400, scoped, tag = 'scratch operand']
  #allocation4 [shape = 'f32[1,1]{1,0:T(1,128)S(1)}', space=vmem, size = 0x200, scoped, tag = 'scoped memory for sentence_classifier2_forward.7']
  %s0 = inlined_call_operand.vmem [shape: f32[8,2,256], index: 0, kind: input, shape index: {}, may-alias: {0,1}]
  %s1 = inlined_call_operand.vmem [shape: f32[8,2,256], index: 1, kind: input, shape index: {}, may-alias: {0,1}]
  %s2 = inlined_call_operand.vmem [shape: bf16[32,128], index: 2, kind: input, shape index: {}]
  %s3 = inlined_call_operand.vmem [shape: f32[1,64], index: 3, kind: input, shape index: {}]
  %s4 = inlined_call_operand.<no memory space> [shape: f32[1,1], index: 4, kind: input, shape index: {}]
  %s5 = inlined_call_operand.vmem [shape: f32[2,1], index: 5, kind: output, shape index: {}]
  %s6 = sld [smem:[#allocation0]]
  $region120: #{sentence_classifier2_forward.7} parent=0
    _
  %s8 = ssub.s32 1, %s6
  %s9 = scalar_select 0, %s8, %s6
  %v10 = vstv %s4
  %11 = vst [vmem:[#allocation4] sm:$0x1] %v10
  $region1: #{sentence_classifier2_forward.7} parent=0
    #allocation5 [shape = 'u8[8192]{0}', space=vmem, size = 0x2000, scoped, tag = 'input window, operand 0, single buffered']
    #allocation6 [shape = 'u8[8192]{0}', space=vmem, size = 0x2000, scoped, tag = 'input window, operand 1, single buffered']
    // Predicated region
    $region2: #{sentence_classifier2_forward.7} parent=1 // pred_check
      _
    $region3: #{sentence_classifier2_forward.7} parent=1 // pred_check_branch
      %13 = sbr.rel (0) target = $region5
    $region4: #{sentence_classifier2_forward.7} parent=1 // pred_region
      // Predicated region
      $region6: #{sentence_classifier2_forward.7} parent=4 // pred_check
        _
      $region7: #{sentence_classifier2_forward.7} parent=4 // pred_check_branch
        %15 = sbr.rel (0) target = $region9
      $region8: #{sentence_classifier2_forward.7} parent=4 // pred_region
        // Predicated region
        $region10: #{sentence_classifier2_forward.7} parent=8 // pred_check
          _
        $region11: #{sentence_classifier2_forward.7} parent=8 // pred_check_branch
          %17 = sbr.rel target = $region13
        $region12: #{sentence_classifier2_forward.7} parent=8 // pred_region
          // Predicated region
          $region25: #{sentence_classifier2_forward.7} parent=12 // pred_check
            _
          $region26: #{sentence_classifier2_forward.7} parent=12 // pred_check_branch
            %46 = sbr.rel (0) target = $region28
          $region27: #{sentence_classifier2_forward.7} parent=12 // pred_region
            loop: start=0, step=1, limit=1
            $region29: #{sentence_classifier2_forward.7} parent=27 // loop_pre_header
              _
            $region30: #{sentence_classifier2_forward.7} parent=27 // loop_header
              %s48 = sphi 0, %s52
              %p49 = scmp.ge.s32.totalorder %s48, 1
              %s53 = sphi %s0, %s0
              %s54 = sphi [#allocation5], [#allocation5]
            $region31: #{sentence_classifier2_forward.7} parent=27 // loop_header_branch
              %51 = sbr.rel (%p49) target = $region35
            $region32: #{sentence_classifier2_forward.7} parent=27 // loop_body
              _
            $region33: #{sentence_classifier2_forward.7} parent=27 // loop_footer
              %s52 = sadd.s32 1, %s48
            $region34: #{sentence_classifier2_forward.7} parent=27 // loop_footer_branch
              %47 = sbr.rel target = $region30
            $region35: #{sentence_classifier2_forward.7} parent=27 // loop_exit
              _
            loop: start=0, step=1, limit=1
            $region36: #{sentence_classifier2_forward.7} parent=27 // loop_pre_header
              _
            $region37: #{sentence_classifier2_forward.7} parent=27 // loop_header
              %s57 = sphi 0, %s61
              %p58 = scmp.ge.s32.totalorder %s57, 1
              %s62 = sphi %s0, %s0
              %s63 = sphi [#allocation5], [#allocation5]
            $region38: #{sentence_classifier2_forward.7} parent=27 // loop_header_branch
              %60 = sbr.rel (%p58) target = $region42
            $region39: #{sentence_classifier2_forward.7} parent=27 // loop_body
              %v64 = vld [vmem:[%s62] sm:$0x3]
              %65 = vst [vmem:[%s63] sm:$0x3] %v64
              %v66 = vld [vmem:[%s62 + $0x4] sm:$0x3]
              %67 = vst [vmem:[%s63 + $0x2] sm:$0x3] %v66
              %v68 = vld [vmem:[%s62 + $0x8] sm:$0x3]
              %69 = vst [vmem:[%s63 + $0x4] sm:$0x3] %v68
              %v70 = vld [vmem:[%s62 + $0xc] sm:$0x3]
              %71 = vst [vmem:[%s63 + $0x6] sm:$0x3] %v70
              %v72 = vld [vmem:[%s62 + $0x10] sm:$0x3]
              %73 = vst [vmem:[%s63 + $0x8] sm:$0x3] %v72
              %v74 = vld [vmem:[%s62 + $0x14] sm:$0x3]
              %75 = vst [vmem:[%s63 + $0xa] sm:$0x3] %v74
              %v76 = vld [vmem:[%s62 + $0x18] sm:$0x3]
              %77 = vst [vmem:[%s63 + $0xc] sm:$0x3] %v76
              %v78 = vld [vmem:[%s62 + $0x1c] sm:$0x3]
              %79 = vst [vmem:[%s63 + $0xe] sm:$0x3] %v78
            $region40: #{sentence_classifier2_forward.7} parent=27 // loop_footer
              %s61 = sadd.s32 1, %s57
            $region41: #{sentence_classifier2_forward.7} parent=27 // loop_footer_branch
              %56 = sbr.rel target = $region37
            $region42: #{sentence_classifier2_forward.7} parent=27 // loop_exit
              _
          $region28: #{sentence_classifier2_forward.7} parent=12 // pred_fallthru
            _
        $region13: #{sentence_classifier2_forward.7} parent=8 // pred_fallthru
          _
        // Predicated region
        $region14: #{sentence_classifier2_forward.7} parent=8 // pred_check
          _
        $region15: #{sentence_classifier2_forward.7} parent=8 // pred_check_branch
          %19 = sbr.rel (0) target = $region17
        $region16: #{sentence_classifier2_forward.7} parent=8 // pred_region
          loop: start=0, step=1, limit=1
          $region18: #{sentence_classifier2_forward.7} parent=16 // loop_pre_header
            _
          $region19: #{sentence_classifier2_forward.7} parent=16 // loop_header
            %s22 = sphi 0, %s26
            %p23 = scmp.ge.s32.totalorder %s22, 1
            %s27 = sphi %s0, %s0
            %s28 = sphi [#allocation5], [#allocation5]
          $region20: #{sentence_classifier2_forward.7} parent=16 // loop_header_branch
            %25 = sbr.rel (%p23) target = $region24
          $region21: #{sentence_classifier2_forward.7} parent=16 // loop_body
            %v29 = vld [vmem:[%s27] sm:$0x3]
            %30 = vst [vmem:[%s28] sm:$0x3] %v29
            %v31 = vld [vmem:[%s27 + $0x4] sm:$0x3]
            %32 = vst [vmem:[%s28 + $0x2] sm:$0x3] %v31
            %v33 = vld [vmem:[%s27 + $0x8] sm:$0x3]
            %34 = vst [vmem:[%s28 + $0x4] sm:$0x3] %v33
            %v35 = vld [vmem:[%s27 + $0xc] sm:$0x3]
            %36 = vst [vmem:[%s28 + $0x6] sm:$0x3] %v35
            %v37 = vld [vmem:[%s27 + $0x10] sm:$0x3]
            %38 = vst [vmem:[%s28 + $0x8] sm:$0x3] %v37
            %v39 = vld [vmem:[%s27 + $0x14] sm:$0x3]
            %40 = vst [vmem:[%s28 + $0xa] sm:$0x3] %v39
            %v41 = vld [vmem:[%s27 + $0x18] sm:$0x3]
            %42 = vst [vmem:[%s28 + $0xc] sm:$0x3] %v41
            %v43 = vld [vmem:[%s27 + $0x1c] sm:$0x3]
            %44 = vst [vmem:[%s28 + $0xe] sm:$0x3] %v43
          $region22: #{sentence_classifier2_forward.7} parent=16 // loop_footer
            %s26 = sadd.s32 1, %s22
          $region23: #{sentence_classifier2_forward.7} parent=16 // loop_footer_branch
            %21 = sbr.rel target = $region19
          $region24: #{sentence_classifier2_forward.7} parent=16 // loop_exit
            _
        $region17: #{sentence_classifier2_forward.7} parent=8 // pred_fallthru
          _
      $region9: #{sentence_classifier2_forward.7} parent=4 // pred_fallthru
        _
      %80 = vnop
    $region5: #{sentence_classifier2_forward.7} parent=1 // pred_fallthru
      _
    // Predicated region
    $region43: #{sentence_classifier2_forward.7} parent=1 // pred_check
      _
    $region44: #{sentence_classifier2_forward.7} parent=1 // pred_check_branch
      %82 = sbr.rel (0) target = $region46
    $region45: #{sentence_classifier2_forward.7} parent=1 // pred_region
      %s83 = scalar_lea.vmem %s1, 2
      // Predicated region
      $region47: #{sentence_classifier2_forward.7} parent=45 // pred_check
        _
      $region48: #{sentence_classifier2_forward.7} parent=45 // pred_check_branch
        %85 = sbr.rel (0) target = $region50
      $region49: #{sentence_classifier2_forward.7} parent=45 // pred_region
        // Predicated region
        $region51: #{sentence_classifier2_forward.7} parent=49 // pred_check
          _
        $region52: #{sentence_classifier2_forward.7} parent=49 // pred_check_branch
          %87 = sbr.rel target = $region54
        $region53: #{sentence_classifier2_forward.7} parent=49 // pred_region
          // Predicated region
          $region66: #{sentence_classifier2_forward.7} parent=53 // pred_check
            _
          $region67: #{sentence_classifier2_forward.7} parent=53 // pred_check_branch
            %116 = sbr.rel (0) target = $region69
          $region68: #{sentence_classifier2_forward.7} parent=53 // pred_region
            loop: start=0, step=1, limit=1
            $region70: #{sentence_classifier2_forward.7} parent=68 // loop_pre_header
              _
            $region71: #{sentence_classifier2_forward.7} parent=68 // loop_header
              %s118 = sphi 0, %s122
              %p119 = scmp.ge.s32.totalorder %s118, 1
              %s123 = sphi %s83, %s83
              %s124 = sphi [#allocation6], [#allocation6]
            $region72: #{sentence_classifier2_forward.7} parent=68 // loop_header_branch
              %121 = sbr.rel (%p119) target = $region76
            $region73: #{sentence_classifier2_forward.7} parent=68 // loop_body
              _
            $region74: #{sentence_classifier2_forward.7} parent=68 // loop_footer
              %s122 = sadd.s32 1, %s118
            $region75: #{sentence_classifier2_forward.7} parent=68 // loop_footer_branch
              %117 = sbr.rel target = $region71
            $region76: #{sentence_classifier2_forward.7} parent=68 // loop_exit
              _
            loop: start=0, step=1, limit=1
            $region77: #{sentence_classifier2_forward.7} parent=68 // loop_pre_header
              _
            $region78: #{sentence_classifier2_forward.7} parent=68 // loop_header
              %s127 = sphi 0, %s131
              %p128 = scmp.ge.s32.totalorder %s127, 1
              %s132 = sphi %s83, %s83
              %s133 = sphi [#allocation6], [#allocation6]
            $region79: #{sentence_classifier2_forward.7} parent=68 // loop_header_branch
              %130 = sbr.rel (%p128) target = $region83
            $region80: #{sentence_classifier2_forward.7} parent=68 // loop_body
              %v134 = vld [vmem:[%s132] sm:$0x3]
              %135 = vst [vmem:[%s133] sm:$0x3] %v134
              %v136 = vld [vmem:[%s132 + $0x4] sm:$0x3]
              %137 = vst [vmem:[%s133 + $0x2] sm:$0x3] %v136
              %v138 = vld [vmem:[%s132 + $0x8] sm:$0x3]
              %139 = vst [vmem:[%s133 + $0x4] sm:$0x3] %v138
              %v140 = vld [vmem:[%s132 + $0xc] sm:$0x3]
              %141 = vst [vmem:[%s133 + $0x6] sm:$0x3] %v140
              %v142 = vld [vmem:[%s132 + $0x10] sm:$0x3]
              %143 = vst [vmem:[%s133 + $0x8] sm:$0x3] %v142
              %v144 = vld [vmem:[%s132 + $0x14] sm:$0x3]
              %145 = vst [vmem:[%s133 + $0xa] sm:$0x3] %v144
              %v146 = vld [vmem:[%s132 + $0x18] sm:$0x3]
              %147 = vst [vmem:[%s133 + $0xc] sm:$0x3] %v146
              %v148 = vld [vmem:[%s132 + $0x1c] sm:$0x3]
              %149 = vst [vmem:[%s133 + $0xe] sm:$0x3] %v148
            $region81: #{sentence_classifier2_forward.7} parent=68 // loop_footer
              %s131 = sadd.s32 1, %s127
            $region82: #{sentence_classifier2_forward.7} parent=68 // loop_footer_branch
              %126 = sbr.rel target = $region78
            $region83: #{sentence_classifier2_forward.7} parent=68 // loop_exit
              _
          $region69: #{sentence_classifier2_forward.7} parent=53 // pred_fallthru
            _
        $region54: #{sentence_classifier2_forward.7} parent=49 // pred_fallthru
          _
        // Predicated region
        $region55: #{sentence_classifier2_forward.7} parent=49 // pred_check
          _
        $region56: #{sentence_classifier2_forward.7} parent=49 // pred_check_branch
          %89 = sbr.rel (0) target = $region58
        $region57: #{sentence_classifier2_forward.7} parent=49 // pred_region
          loop: start=0, step=1, limit=1
          $region59: #{sentence_classifier2_forward.7} parent=57 // loop_pre_header
            _
          $region60: #{sentence_classifier2_forward.7} parent=57 // loop_header
            %s92 = sphi 0, %s96
            %p93 = scmp.ge.s32.totalorder %s92, 1
            %s97 = sphi %s83, %s83
            %s98 = sphi [#allocation6], [#allocation6]
          $region61: #{sentence_classifier2_forward.7} parent=57 // loop_header_branch
            %95 = sbr.rel (%p93) target = $region65
          $region62: #{sentence_classifier2_forward.7} parent=57 // loop_body
            %v99 = vld [vmem:[%s97] sm:$0x3]
            %100 = vst [vmem:[%s98] sm:$0x3] %v99
            %v101 = vld [vmem:[%s97 + $0x4] sm:$0x3]
            %102 = vst [vmem:[%s98 + $0x2] sm:$0x3] %v101
            %v103 = vld [vmem:[%s97 + $0x8] sm:$0x3]
            %104 = vst [vmem:[%s98 + $0x4] sm:$0x3] %v103
            %v105 = vld [vmem:[%s97 + $0xc] sm:$0x3]
            %106 = vst [vmem:[%s98 + $0x6] sm:$0x3] %v105
            %v107 = vld [vmem:[%s97 + $0x10] sm:$0x3]
            %108 = vst [vmem:[%s98 + $0x8] sm:$0x3] %v107
            %v109 = vld [vmem:[%s97 + $0x14] sm:$0x3]
            %110 = vst [vmem:[%s98 + $0xa] sm:$0x3] %v109
            %v111 = vld [vmem:[%s97 + $0x18] sm:$0x3]
            %112 = vst [vmem:[%s98 + $0xc] sm:$0x3] %v111
            %v113 = vld [vmem:[%s97 + $0x1c] sm:$0x3]
            %114 = vst [vmem:[%s98 + $0xe] sm:$0x3] %v113
          $region63: #{sentence_classifier2_forward.7} parent=57 // loop_footer
            %s96 = sadd.s32 1, %s92
          $region64: #{sentence_classifier2_forward.7} parent=57 // loop_footer_branch
            %91 = sbr.rel target = $region60
          $region65: #{sentence_classifier2_forward.7} parent=57 // loop_exit
            _
        $region58: #{sentence_classifier2_forward.7} parent=49 // pred_fallthru
          _
      $region50: #{sentence_classifier2_forward.7} parent=45 // pred_fallthru
        _
      %150 = vnop
    $region46: #{sentence_classifier2_forward.7} parent=1 // pred_fallthru
      _
    // Predicated region
    $region84: #{sentence_classifier2_forward.7} parent=1 // pred_check
      _
    $region85: #{sentence_classifier2_forward.7} parent=1 // pred_check_branch
      %152 = sbr.rel (0) target = $region87
    $region86: #{sentence_classifier2_forward.7} parent=1 // pred_region
      _
    $region87: #{sentence_classifier2_forward.7} parent=1 // pred_fallthru
      _
    // Predicated region
    $region88: #{sentence_classifier2_forward.7} parent=1 // pred_check
      _
    $region89: #{sentence_classifier2_forward.7} parent=1 // pred_check_branch
      %154 = sbr.rel (0) target = $region91
    $region90: #{sentence_classifier2_forward.7} parent=1 // pred_region
      _
    $region91: #{sentence_classifier2_forward.7} parent=1 // pred_fallthru
      _
    // Predicated region
    $region92: #{sentence_classifier2_forward.7} parent=1 // pred_check
      _
    $region93: #{sentence_classifier2_forward.7} parent=1 // pred_check_branch
      %156 = sbr.rel (0) target = $region95
    $region94: #{sentence_classifier2_forward.7} parent=1 // pred_region
      _
    $region95: #{sentence_classifier2_forward.7} parent=1 // pred_fallthru
      _
    // Predicated region
    $region96: #{sentence_classifier2_forward.7} parent=1 // pred_check
      _
    $region97: #{sentence_classifier2_forward.7} parent=1 // pred_check_branch
      %158 = sbr.rel (0) target = $region99
    $region98: #{sentence_classifier2_forward.7} parent=1 // pred_region
      _
    $region99: #{sentence_classifier2_forward.7} parent=1 // pred_fallthru
      _
    // Predicated region
    $region100: #{sentence_classifier2_forward.7} parent=1 // pred_check
      _
    $region101: #{sentence_classifier2_forward.7} parent=1 // pred_check_branch
      %160 = sbr.rel (0) target = $region103
    $region102: #{sentence_classifier2_forward.7} parent=1 // pred_region
      _
    $region103: #{sentence_classifier2_forward.7} parent=1 // pred_fallthru
      _
    %p162 = scmp.eq.s32.totalorder 0, 0
    // Predicated region
    $region104: #{sentence_classifier2_forward.7} parent=1 // pred_check
      %p163 = pneg %p162
    $region105: #{sentence_classifier2_forward.7} parent=1 // pred_check_branch
      %165 = sbr.rel (%p163) target = $region107
    $region106: #{sentence_classifier2_forward.7} parent=1 // pred_region
      %vm166 = vcmask 254976
      %167 = vst.msk [vmem:[#allocation2] sm:$0x3] %vm166, 0.0
      %168 = vst.msk [vmem:[#allocation3] sm:$0x3] %vm166, 0.0
    $region107: #{sentence_classifier2_forward.7} parent=1 // pred_fallthru
      _
    %v169 = vld [vmem:[%s2] sm:$0xf]
    %v170 = vld [vmem:[%s2 + $0x4] sm:$0xf]
    %v171 = vld [vmem:[%s2 + $0x8] sm:$0xf]
    %v172 = vld [vmem:[%s2 + $0xc] sm:$0xf]
    %v173 = vld [vmem:[#allocation2] sm:$0x3]
    %v174 = vld [vmem:[#allocation3] sm:$0x3]
    %v175 = vld [vmem:[#allocation5] sm:$0x3]
    %v176 = vpack.c.bf16 %v173, %v173
    %v181 = vunpack.c.l.b16 %v169
    %v182 = vunpack.c.l.b16 %v170
    %v183 = vunpack.c.l.b16 %v171
    %v184 = vunpack.c.l.b16 %v172
    %v185 = vpack.c.b16 %v182, %v181
    %v186 = vpack.c.b16 %v184, %v183
    %vm189 = vcmask 261120
    %v191 = vsel %vm189, %v176, 0
    %193 = vmatprep.subr.bf16.mxu0 0
    %194 = vmatpush1.bf16.msra.mxu0 %v185
    %195 = vmatprep.subr.bf16.mxu0 0
    %196 = vmatpush1.bf16.msra.mxu0 %v186
    %197 = vmatprep.subr.bf16.mxu0 0
    %198 = vmatpush1.bf16.msra.mxu0 0
    %199 = vmatprep.subr.bf16.mxu0 0
    %200 = vmatpush1.bf16.msra.mxu0 0
    %201 = vmatprep.subr.bf16.mxu0 0
    %202 = vmatpush1.bf16.msra.mxu0 0
    %203 = vmatprep.subr.bf16.mxu0 0
    %204 = vmatpush1.bf16.msra.mxu0 0
    %205 = vmatprep.subr.bf16.mxu0 0
    %206 = vmatpush1.bf16.msra.mxu0 0
    %207 = vmatprep.subr.bf16.mxu0 0
    %208 = vmatpush1.bf16.msra.mxu0 0
    %209 = vmatprep.subr.bf16.mxu0 0
    %210 = vmatpush1.bf16.msra.mxu0 0
    %211 = vmatprep.subr.bf16.mxu0 0
    %212 = vmatpush1.bf16.msra.mxu0 0
    %213 = vmatprep.subr.bf16.mxu0 0
    %214 = vmatpush1.bf16.msra.mxu0 0
    %215 = vmatprep.subr.bf16.mxu0 0
    %216 = vmatpush1.bf16.msra.mxu0 0
    %217 = vmatprep.subr.bf16.mxu0 0
    %218 = vmatpush1.bf16.msra.mxu0 0
    %219 = vmatprep.subr.bf16.mxu0 0
    %220 = vmatpush1.bf16.msra.mxu0 0
    %221 = vmatprep.subr.bf16.mxu0 0
    %222 = vmatpush1.bf16.msra.mxu0 0
    %223 = vmatprep.subr.bf16.mxu0 0
    %224 = vmatpush1.bf16.msra.mxu0 0
    %225 = vmatprep.mubr.bf16.mxu0 0
    %226 = vmatmul.mubr.bf16.gmra.mrb[0].mxu0 %v191
    %v227 = vpop.f32.mrb[0].mxu0
    %v228 = vadd.f32 0.0, %v227
    %v229 = vpop.f32.mrb[0].mxu0
    %v230 = vpop.f32.mrb[0].mxu0
    %v231 = vpop.f32.mrb[0].mxu0
    %232 = vdwg.mxu0
    %v233 = vadd.f32 %v175, %v228
    %v234 = vxor.u32 %v233, 2147483648
    %v235 = vmul.f32 %v234, 1.442695
    %v236 = vpow.pop %v235
    %v237 = vadd.f32 %v236, 1.0
    %v238 = vrcp.pop %v237
    %v239 = vmul.f32 1.0, %v238
    %v240 = vtanh.pop %v233
    %242 = vrot.lane.b32.xlu0 %v174, 32
    %v243 = vpop.permute.xlu0 %242
    %v245 = vmul.f32 %v239, %v243
    %247 = vrot.lane.b32.xlu0 %v240, 64
    %v248 = vpop.permute.xlu0 %247
    %v250 = vmul.f32 %v239, %v248
    %252 = vrot.lane.b32.xlu0 %v250, 32
    %v253 = vpop.permute.xlu0 %252
    %v255 = vadd.f32 %v245, %v253
    %v256 = vtanh.pop %v255
    %258 = vrot.lane.b32.xlu0 %v256, 64
    %v259 = vpop.permute.xlu0 %258
    %v261 = vmul.f32 %v239, %v259
    %s262 = scalar_lea.vmem [#allocation5], 2
    %v263 = vld [vmem:[%s262] sm:$0x3]
    %v264 = vpack.c.bf16 %v261, %v261
    %266 = vrot.lane.b32.xlu0 %v264, 32
    %v267 = vpop.permute.xlu0 %266
    %v269 = vsel %vm189, %v267, 0
    %271 = vmatprep.subr.bf16.mxu0 0
    %272 = vmatpush1.bf16.msra.mxu0 %v185
    %273 = vmatprep.subr.bf16.mxu0 0
    %274 = vmatpush1.bf16.msra.mxu0 %v186
    %275 = vmatprep.subr.bf16.mxu0 0
    %276 = vmatpush1.bf16.msra.mxu0 0
    %277 = vmatprep.subr.bf16.mxu0 0
    %278 = vmatpush1.bf16.msra.mxu0 0
    %279 = vmatprep.subr.bf16.mxu0 0
    %280 = vmatpush1.bf16.msra.mxu0 0
    %281 = vmatprep.subr.bf16.mxu0 0
    %282 = vmatpush1.bf16.msra.mxu0 0
    %283 = vmatprep.subr.bf16.mxu0 0
    %284 = vmatpush1.bf16.msra.mxu0 0
    %285 = vmatprep.subr.bf16.mxu0 0
    %286 = vmatpush1.bf16.msra.mxu0 0
    %287 = vmatprep.subr.bf16.mxu0 0
    %288 = vmatpush1.bf16.msra.mxu0 0
    %289 = vmatprep.subr.bf16.mxu0 0
    %290 = vmatpush1.bf16.msra.mxu0 0
    %291 = vmatprep.subr.bf16.mxu0 0
    %292 = vmatpush1.bf16.msra.mxu0 0
    %293 = vmatprep.subr.bf16.mxu0 0
    %294 = vmatpush1.bf16.msra.mxu0 0
    %295 = vmatprep.subr.bf16.mxu0 0
    %296 = vmatpush1.bf16.msra.mxu0 0
    %297 = vmatprep.subr.bf16.mxu0 0
    %298 = vmatpush1.bf16.msra.mxu0 0
    %299 = vmatprep.subr.bf16.mxu0 0
    %300 = vmatpush1.bf16.msra.mxu0 0
    %301 = vmatprep.subr.bf16.mxu0 0
    %302 = vmatpush1.bf16.msra.mxu0 0
    %303 = vmatprep.mubr.bf16.mxu0 0
    %304 = vmatmul.mubr.bf16.gmra.mrb[0].mxu0 %v269
    %v305 = vpop.f32.mrb[0].mxu0
    %v306 = vadd.f32 0.0, %v305
    %v307 = vpop.f32.mrb[0].mxu0
    %v308 = vpop.f32.mrb[0].mxu0
    %v309 = vpop.f32.mrb[0].mxu0
    %310 = vdwg.mxu0
    %v311 = vadd.f32 %v263, %v306
    %v312 = vxor.u32 %v311, 2147483648
    %v313 = vmul.f32 %v312, 1.442695
    %v314 = vpow.pop %v313
    %v315 = vadd.f32 %v314, 1.0
    %v316 = vrcp.pop %v315
    %v317 = vmul.f32 1.0, %v316
    %v318 = vtanh.pop %v311
    %v319 = vmul.f32 %v317, %v255
    %321 = vrot.lane.b32.xlu0 %v318, 64
    %v322 = vpop.permute.xlu0 %321
    %v324 = vmul.f32 %v317, %v322
    %326 = vrot.lane.b32.xlu0 %v324, 32
    %v327 = vpop.permute.xlu0 %326
    %v329 = vadd.f32 %v319, %v327
    %v330 = vtanh.pop %v329
    %332 = vrot.lane.b32.xlu0 %v330, 64
    %v333 = vpop.permute.xlu0 %332
    %v335 = vmul.f32 %v317, %v333
    %s336 = scalar_lea.vmem [#allocation5], 4
    %v337 = vld [vmem:[%s336] sm:$0x3]
    %v338 = vpack.c.bf16 %v335, %v335
    %340 = vrot.lane.b32.xlu0 %v338, 32
    %v341 = vpop.permute.xlu0 %340
    %v343 = vsel %vm189, %v341, 0
    %345 = vmatprep.subr.bf16.mxu0 0
    %346 = vmatpush1.bf16.msra.mxu0 %v185
    %347 = vmatprep.subr.bf16.mxu0 0
    %348 = vmatpush1.bf16.msra.mxu0 %v186
    %349 = vmatprep.subr.bf16.mxu0 0
    %350 = vmatpush1.bf16.msra.mxu0 0
    %351 = vmatprep.subr.bf16.mxu0 0
    %352 = vmatpush1.bf16.msra.mxu0 0
    %353 = vmatprep.subr.bf16.mxu0 0
    %354 = vmatpush1.bf16.msra.mxu0 0
    %355 = vmatprep.subr.bf16.mxu0 0
    %356 = vmatpush1.bf16.msra.mxu0 0
    %357 = vmatprep.subr.bf16.mxu0 0
    %358 = vmatpush1.bf16.msra.mxu0 0
    %359 = vmatprep.subr.bf16.mxu0 0
    %360 = vmatpush1.bf16.msra.mxu0 0
    %361 = vmatprep.subr.bf16.mxu0 0
    %362 = vmatpush1.bf16.msra.mxu0 0
    %363 = vmatprep.subr.bf16.mxu0 0
    %364 = vmatpush1.bf16.msra.mxu0 0
    %365 = vmatprep.subr.bf16.mxu0 0
    %366 = vmatpush1.bf16.msra.mxu0 0
    %367 = vmatprep.subr.bf16.mxu0 0
    %368 = vmatpush1.bf16.msra.mxu0 0
    %369 = vmatprep.subr.bf16.mxu0 0
    %370 = vmatpush1.bf16.msra.mxu0 0
    %371 = vmatprep.subr.bf16.mxu0 0
    %372 = vmatpush1.bf16.msra.mxu0 0
    %373 = vmatprep.subr.bf16.mxu0 0
    %374 = vmatpush1.bf16.msra.mxu0 0
    %375 = vmatprep.subr.bf16.mxu0 0
    %376 = vmatpush1.bf16.msra.mxu0 0
    %377 = vmatprep.mubr.bf16.mxu0 0
    %378 = vmatmul.mubr.bf16.gmra.mrb[0].mxu0 %v343
    %v379 = vpop.f32.mrb[0].mxu0
    %v380 = vadd.f32 0.0, %v379
    %v381 = vpop.f32.mrb[0].mxu0
    %v382 = vpop.f32.mrb[0].mxu0
    %v383 = vpop.f32.mrb[0].mxu0
    %384 = vdwg.mxu0
    %v385 = vadd.f32 %v337, %v380
    %v386 = vxor.u32 %v385, 2147483648
    %v387 = vmul.f32 %v386, 1.442695
    %v388 = vpow.pop %v387
    %v389 = vadd.f32 %v388, 1.0
    %v390 = vrcp.pop %v389
    %v391 = vmul.f32 1.0, %v390
    %v392 = vtanh.pop %v385
    %v393 = vmul.f32 %v391, %v329
    %395 = vrot.lane.b32.xlu0 %v392, 64
    %v396 = vpop.permute.xlu0 %395
    %v398 = vmul.f32 %v391, %v396
    %400 = vrot.lane.b32.xlu0 %v398, 32
    %v401 = vpop.permute.xlu0 %400
    %v403 = vadd.f32 %v393, %v401
    %v404 = vtanh.pop %v403
    %406 = vrot.lane.b32.xlu0 %v404, 64
    %v407 = vpop.permute.xlu0 %406
    %v409 = vmul.f32 %v391, %v407
    %s410 = scalar_lea.vmem [#allocation5], 6
    %v411 = vld [vmem:[%s410] sm:$0x3]
    %v412 = vpack.c.bf16 %v409, %v409
    %414 = vrot.lane.b32.xlu0 %v412, 32
    %v415 = vpop.permute.xlu0 %414
    %v417 = vsel %vm189, %v415, 0
    %419 = vmatprep.subr.bf16.mxu0 0
    %420 = vmatpush1.bf16.msra.mxu0 %v185
    %421 = vmatprep.subr.bf16.mxu0 0
    %422 = vmatpush1.bf16.msra.mxu0 %v186
    %423 = vmatprep.subr.bf16.mxu0 0
    %424 = vmatpush1.bf16.msra.mxu0 0
    %425 = vmatprep.subr.bf16.mxu0 0
    %426 = vmatpush1.bf16.msra.mxu0 0
    %427 = vmatprep.subr.bf16.mxu0 0
    %428 = vmatpush1.bf16.msra.mxu0 0
    %429 = vmatprep.subr.bf16.mxu0 0
    %430 = vmatpush1.bf16.msra.mxu0 0
    %431 = vmatprep.subr.bf16.mxu0 0
    %432 = vmatpush1.bf16.msra.mxu0 0
    %433 = vmatprep.subr.bf16.mxu0 0
    %434 = vmatpush1.bf16.msra.mxu0 0
    %435 = vmatprep.subr.bf16.mxu0 0
    %436 = vmatpush1.bf16.msra.mxu0 0
    %437 = vmatprep.subr.bf16.mxu0 0
    %438 = vmatpush1.bf16.msra.mxu0 0
    %439 = vmatprep.subr.bf16.mxu0 0
    %440 = vmatpush1.bf16.msra.mxu0 0
    %441 = vmatprep.subr.bf16.mxu0 0
    %442 = vmatpush1.bf16.msra.mxu0 0
    %443 = vmatprep.subr.bf16.mxu0 0
    %444 = vmatpush1.bf16.msra.mxu0 0
    %445 = vmatprep.subr.bf16.mxu0 0
    %446 = vmatpush1.bf16.msra.mxu0 0
    %447 = vmatprep.subr.bf16.mxu0 0
    %448 = vmatpush1.bf16.msra.mxu0 0
    %449 = vmatprep.subr.bf16.mxu0 0
    %450 = vmatpush1.bf16.msra.mxu0 0
    %451 = vmatprep.mubr.bf16.mxu0 0
    %452 = vmatmul.mubr.bf16.gmra.mrb[0].mxu0 %v417
    %v453 = vpop.f32.mrb[0].mxu0
    %v454 = vadd.f32 0.0, %v453
    %v455 = vpop.f32.mrb[0].mxu0
    %v456 = vpop.f32.mrb[0].mxu0
    %v457 = vpop.f32.mrb[0].mxu0
    %458 = vdwg.mxu0
    %v459 = vadd.f32 %v411, %v454
    %v460 = vxor.u32 %v459, 2147483648
    %v461 = vmul.f32 %v460, 1.442695
    %v462 = vpow.pop %v461
    %v463 = vadd.f32 %v462, 1.0
    %v464 = vrcp.pop %v463
    %v465 = vmul.f32 1.0, %v464
    %v466 = vtanh.pop %v459
    %v467 = vmul.f32 %v465, %v403
    %469 = vrot.lane.b32.xlu0 %v466, 64
    %v470 = vpop.permute.xlu0 %469
    %v472 = vmul.f32 %v465, %v470
    %474 = vrot.lane.b32.xlu0 %v472, 32
    %v475 = vpop.permute.xlu0 %474
    %v477 = vadd.f32 %v467, %v475
    %v478 = vtanh.pop %v477
    %480 = vrot.lane.b32.xlu0 %v478, 64
    %v481 = vpop.permute.xlu0 %480
    %v483 = vmul.f32 %v465, %v481
    %s484 = scalar_lea.vmem [#allocation5], 8
    %v485 = vld [vmem:[%s484] sm:$0x3]
    %v486 = vpack.c.bf16 %v483, %v483
    %488 = vrot.lane.b32.xlu0 %v486, 32
    %v489 = vpop.permute.xlu0 %488
    %v491 = vsel %vm189, %v489, 0
    %493 = vmatprep.subr.bf16.mxu0 0
    %494 = vmatpush1.bf16.msra.mxu0 %v185
    %495 = vmatprep.subr.bf16.mxu0 0
    %496 = vmatpush1.bf16.msra.mxu0 %v186
    %497 = vmatprep.subr.bf16.mxu0 0
    %498 = vmatpush1.bf16.msra.mxu0 0
    %499 = vmatprep.subr.bf16.mxu0 0
    %500 = vmatpush1.bf16.msra.mxu0 0
    %501 = vmatprep.subr.bf16.mxu0 0
    %502 = vmatpush1.bf16.msra.mxu0 0
    %503 = vmatprep.subr.bf16.mxu0 0
    %504 = vmatpush1.bf16.msra.mxu0 0
    %505 = vmatprep.subr.bf16.mxu0 0
    %506 = vmatpush1.bf16.msra.mxu0 0
    %507 = vmatprep.subr.bf16.mxu0 0
    %508 = vmatpush1.bf16.msra.mxu0 0
    %509 = vmatprep.subr.bf16.mxu0 0
    %510 = vmatpush1.bf16.msra.mxu0 0
    %511 = vmatprep.subr.bf16.mxu0 0
    %512 = vmatpush1.bf16.msra.mxu0 0
    %513 = vmatprep.subr.bf16.mxu0 0
    %514 = vmatpush1.bf16.msra.mxu0 0
    %515 = vmatprep.subr.bf16.mxu0 0
    %516 = vmatpush1.bf16.msra.mxu0 0
    %517 = vmatprep.subr.bf16.mxu0 0
    %518 = vmatpush1.bf16.msra.mxu0 0
    %519 = vmatprep.subr.bf16.mxu0 0
    %520 = vmatpush1.bf16.msra.mxu0 0
    %521 = vmatprep.subr.bf16.mxu0 0
    %522 = vmatpush1.bf16.msra.mxu0 0
    %523 = vmatprep.subr.bf16.mxu0 0
    %524 = vmatpush1.bf16.msra.mxu0 0
    %525 = vmatprep.mubr.bf16.mxu0 0
    %526 = vmatmul.mubr.bf16.gmra.mrb[0].mxu0 %v491
    %v527 = vpop.f32.mrb[0].mxu0
    %v528 = vadd.f32 0.0, %v527
    %v529 = vpop.f32.mrb[0].mxu0
    %v530 = vpop.f32.mrb[0].mxu0
    %v531 = vpop.f32.mrb[0].mxu0
    %532 = vdwg.mxu0
    %v533 = vadd.f32 %v485, %v528
    %v534 = vxor.u32 %v533, 2147483648
    %v535 = vmul.f32 %v534, 1.442695
    %v536 = vpow.pop %v535
    %v537 = vadd.f32 %v536, 1.0
    %v538 = vrcp.pop %v537
    %v539 = vmul.f32 1.0, %v538
    %v540 = vtanh.pop %v533
    %v541 = vmul.f32 %v539, %v477
    %543 = vrot.lane.b32.xlu0 %v540, 64
    %v544 = vpop.permute.xlu0 %543
    %v546 = vmul.f32 %v539, %v544
    %548 = vrot.lane.b32.xlu0 %v546, 32
    %v549 = vpop.permute.xlu0 %548
    %v551 = vadd.f32 %v541, %v549
    %v552 = vtanh.pop %v551
    %554 = vrot.lane.b32.xlu0 %v552, 64
    %v555 = vpop.permute.xlu0 %554
    %v557 = vmul.f32 %v539, %v555
    %s558 = scalar_lea.vmem [#allocation5], 10
    %v559 = vld [vmem:[%s558] sm:$0x3]
    %v560 = vpack.c.bf16 %v557, %v557
    %562 = vrot.lane.b32.xlu0 %v560, 32
    %v563 = vpop.permute.xlu0 %562
    %v565 = vsel %vm189, %v563, 0
    %567 = vmatprep.subr.bf16.mxu0 0
    %568 = vmatpush1.bf16.msra.mxu0 %v185
    %569 = vmatprep.subr.bf16.mxu0 0
    %570 = vmatpush1.bf16.msra.mxu0 %v186
    %571 = vmatprep.subr.bf16.mxu0 0
    %572 = vmatpush1.bf16.msra.mxu0 0
    %573 = vmatprep.subr.bf16.mxu0 0
    %574 = vmatpush1.bf16.msra.mxu0 0
    %575 = vmatprep.subr.bf16.mxu0 0
    %576 = vmatpush1.bf16.msra.mxu0 0
    %577 = vmatprep.subr.bf16.mxu0 0
    %578 = vmatpush1.bf16.msra.mxu0 0
    %579 = vmatprep.subr.bf16.mxu0 0
    %580 = vmatpush1.bf16.msra.mxu0 0
    %581 = vmatprep.subr.bf16.mxu0 0
    %582 = vmatpush1.bf16.msra.mxu0 0
    %583 = vmatprep.subr.bf16.mxu0 0
    %584 = vmatpush1.bf16.msra.mxu0 0
    %585 = vmatprep.subr.bf16.mxu0 0
    %586 = vmatpush1.bf16.msra.mxu0 0
    %587 = vmatprep.subr.bf16.mxu0 0
    %588 = vmatpush1.bf16.msra.mxu0 0
    %589 = vmatprep.subr.bf16.mxu0 0
    %590 = vmatpush1.bf16.msra.mxu0 0
    %591 = vmatprep.subr.bf16.mxu0 0
    %592 = vmatpush1.bf16.msra.mxu0 0
    %593 = vmatprep.subr.bf16.mxu0 0
    %594 = vmatpush1.bf16.msra.mxu0 0
    %595 = vmatprep.subr.bf16.mxu0 0
    %596 = vmatpush1.bf16.msra.mxu0 0
    %597 = vmatprep.subr.bf16.mxu0 0
    %598 = vmatpush1.bf16.msra.mxu0 0
    %599 = vmatprep.mubr.bf16.mxu0 0
    %600 = vmatmul.mubr.bf16.gmra.mrb[0].mxu0 %v565
    %v601 = vpop.f32.mrb[0].mxu0
    %v602 = vadd.f32 0.0, %v601
    %v603 = vpop.f32.mrb[0].mxu0
    %v604 = vpop.f32.mrb[0].mxu0
    %v605 = vpop.f32.mrb[0].mxu0
    %606 = vdwg.mxu0
    %v607 = vadd.f32 %v559, %v602
    %v608 = vxor.u32 %v607, 2147483648
    %v609 = vmul.f32 %v608, 1.442695
    %v610 = vpow.pop %v609
    %v611 = vadd.f32 %v610, 1.0
    %v612 = vrcp.pop %v611
    %v613 = vmul.f32 1.0, %v612
    %v614 = vtanh.pop %v607
    %v615 = vmul.f32 %v613, %v551
    %617 = vrot.lane.b32.xlu0 %v614, 64
    %v618 = vpop.permute.xlu0 %617
    %v620 = vmul.f32 %v613, %v618
    %622 = vrot.lane.b32.xlu0 %v620, 32
    %v623 = vpop.permute.xlu0 %622
    %v625 = vadd.f32 %v615, %v623
    %v626 = vtanh.pop %v625
    %628 = vrot.lane.b32.xlu0 %v626, 64
    %v629 = vpop.permute.xlu0 %628
    %v631 = vmul.f32 %v613, %v629
    %s632 = scalar_lea.vmem [#allocation5], 12
    %v633 = vld [vmem:[%s632] sm:$0x3]
    %v634 = vpack.c.bf16 %v631, %v631
    %636 = vrot.lane.b32.xlu0 %v634, 32
    %v637 = vpop.permute.xlu0 %636
    %v639 = vsel %vm189, %v637, 0
    %641 = vmatprep.subr.bf16.mxu0 0
    %642 = vmatpush1.bf16.msra.mxu0 %v185
    %643 = vmatprep.subr.bf16.mxu0 0
    %644 = vmatpush1.bf16.msra.mxu0 %v186
    %645 = vmatprep.subr.bf16.mxu0 0
    %646 = vmatpush1.bf16.msra.mxu0 0
    %647 = vmatprep.subr.bf16.mxu0 0
    %648 = vmatpush1.bf16.msra.mxu0 0
    %649 = vmatprep.subr.bf16.mxu0 0
    %650 = vmatpush1.bf16.msra.mxu0 0
    %651 = vmatprep.subr.bf16.mxu0 0
    %652 = vmatpush1.bf16.msra.mxu0 0
    %653 = vmatprep.subr.bf16.mxu0 0
    %654 = vmatpush1.bf16.msra.mxu0 0
    %655 = vmatprep.subr.bf16.mxu0 0
    %656 = vmatpush1.bf16.msra.mxu0 0
    %657 = vmatprep.subr.bf16.mxu0 0
    %658 = vmatpush1.bf16.msra.mxu0 0
    %659 = vmatprep.subr.bf16.mxu0 0
    %660 = vmatpush1.bf16.msra.mxu0 0
    %661 = vmatprep.subr.bf16.mxu0 0
    %662 = vmatpush1.bf16.msra.mxu0 0
    %663 = vmatprep.subr.bf16.mxu0 0
    %664 = vmatpush1.bf16.msra.mxu0 0
    %665 = vmatprep.subr.bf16.mxu0 0
    %666 = vmatpush1.bf16.msra.mxu0 0
    %667 = vmatprep.subr.bf16.mxu0 0
    %668 = vmatpush1.bf16.msra.mxu0 0
    %669 = vmatprep.subr.bf16.mxu0 0
    %670 = vmatpush1.bf16.msra.mxu0 0
    %671 = vmatprep.subr.bf16.mxu0 0
    %672 = vmatpush1.bf16.msra.mxu0 0
    %673 = vmatprep.mubr.bf16.mxu0 0
    %674 = vmatmul.mubr.bf16.gmra.mrb[0].mxu0 %v639
    %v675 = vpop.f32.mrb[0].mxu0
    %v676 = vadd.f32 0.0, %v675
    %v677 = vpop.f32.mrb[0].mxu0
    %v678 = vpop.f32.mrb[0].mxu0
    %v679 = vpop.f32.mrb[0].mxu0
    %680 = vdwg.mxu0
    %v681 = vadd.f32 %v633, %v676
    %v682 = vxor.u32 %v681, 2147483648
    %v683 = vmul.f32 %v682, 1.442695
    %v684 = vpow.pop %v683
    %v685 = vadd.f32 %v684, 1.0
    %v686 = vrcp.pop %v685
    %v687 = vmul.f32 1.0, %v686
    %v688 = vtanh.pop %v681
    %v689 = vmul.f32 %v687, %v625
    %691 = vrot.lane.b32.xlu0 %v688, 64
    %v692 = vpop.permute.xlu0 %691
    %v694 = vmul.f32 %v687, %v692
    %696 = vrot.lane.b32.xlu0 %v694, 32
    %v697 = vpop.permute.xlu0 %696
    %v699 = vadd.f32 %v689, %v697
    %v700 = vtanh.pop %v699
    %702 = vrot.lane.b32.xlu0 %v700, 64
    %v703 = vpop.permute.xlu0 %702
    %v705 = vmul.f32 %v687, %v703
    %s706 = scalar_lea.vmem [#allocation5], 14
    %v707 = vld [vmem:[%s706] sm:$0x3]
    %v708 = vpack.c.bf16 %v705, %v705
    %710 = vrot.lane.b32.xlu0 %v708, 32
    %v711 = vpop.permute.xlu0 %710
    %v713 = vsel %vm189, %v711, 0
    %715 = vmatprep.subr.bf16.mxu0 0
    %716 = vmatpush1.bf16.msra.mxu0 %v185
    %717 = vmatprep.subr.bf16.mxu0 0
    %718 = vmatpush1.bf16.msra.mxu0 %v186
    %719 = vmatprep.subr.bf16.mxu0 0
    %720 = vmatpush1.bf16.msra.mxu0 0
    %721 = vmatprep.subr.bf16.mxu0 0
    %722 = vmatpush1.bf16.msra.mxu0 0
    %723 = vmatprep.subr.bf16.mxu0 0
    %724 = vmatpush1.bf16.msra.mxu0 0
    %725 = vmatprep.subr.bf16.mxu0 0
    %726 = vmatpush1.bf16.msra.mxu0 0
    %727 = vmatprep.subr.bf16.mxu0 0
    %728 = vmatpush1.bf16.msra.mxu0 0
    %729 = vmatprep.subr.bf16.mxu0 0
    %730 = vmatpush1.bf16.msra.mxu0 0
    %731 = vmatprep.subr.bf16.mxu0 0
    %732 = vmatpush1.bf16.msra.mxu0 0
    %733 = vmatprep.subr.bf16.mxu0 0
    %734 = vmatpush1.bf16.msra.mxu0 0
    %735 = vmatprep.subr.bf16.mxu0 0
    %736 = vmatpush1.bf16.msra.mxu0 0
    %737 = vmatprep.subr.bf16.mxu0 0
    %738 = vmatpush1.bf16.msra.mxu0 0
    %739 = vmatprep.subr.bf16.mxu0 0
    %740 = vmatpush1.bf16.msra.mxu0 0
    %741 = vmatprep.subr.bf16.mxu0 0
    %742 = vmatpush1.bf16.msra.mxu0 0
    %743 = vmatprep.subr.bf16.mxu0 0
    %744 = vmatpush1.bf16.msra.mxu0 0
    %745 = vmatprep.subr.bf16.mxu0 0
    %746 = vmatpush1.bf16.msra.mxu0 0
    %747 = vmatprep.mubr.bf16.mxu0 0
    %748 = vmatmul.mubr.bf16.gmra.mrb[0].mxu0 %v713
    %v749 = vpop.f32.mrb[0].mxu0
    %v750 = vadd.f32 0.0, %v749
    %v751 = vpop.f32.mrb[0].mxu0
    %v752 = vpop.f32.mrb[0].mxu0
    %v753 = vpop.f32.mrb[0].mxu0
    %754 = vdwg.mxu0
    %v755 = vadd.f32 %v707, %v750
    %v756 = vxor.u32 %v755, 2147483648
    %v757 = vmul.f32 %v756, 1.442695
    %v758 = vpow.pop %v757
    %v759 = vadd.f32 %v758, 1.0
    %v760 = vrcp.pop %v759
    %v761 = vmul.f32 1.0, %v760
    %v762 = vtanh.pop %v755
    %v763 = vmul.f32 %v761, %v699
    %765 = vrot.lane.b32.xlu0 %v762, 64
    %v766 = vpop.permute.xlu0 %765
    %v768 = vmul.f32 %v761, %v766
    %770 = vrot.lane.b32.xlu0 %v768, 32
    %v771 = vpop.permute.xlu0 %770
    %v773 = vadd.f32 %v763, %v771
    %v774 = vtanh.pop %v773
    %776 = vrot.lane.b32.xlu0 %v774, 64
    %v777 = vpop.permute.xlu0 %776
    %v779 = vmul.f32 %v761, %v777
    %781 = vrot.lane.b32.xlu0 %v779, 32
    %v782 = vpop.permute.xlu0 %781
    %vm784 = vcmask 254976
    %785 = vst.msk [vmem:[#allocation2] sm:$0x3] %vm784, %v782
    %787 = vrot.lane.b32.xlu0 %v773, 96
    %v788 = vpop.permute.xlu0 %787
    %790 = vst.msk [vmem:[#allocation3] sm:$0x3] %vm784, %v788
    // Predicated region
    $region108: #{sentence_classifier2_forward.7} parent=1 // pred_check
      %p791 = pneg %p162
    $region109: #{sentence_classifier2_forward.7} parent=1 // pred_check_branch
      %793 = sbr.rel (%p791) target = $region111
    $region110: #{sentence_classifier2_forward.7} parent=1 // pred_region
      %s794 = scalar_lea.vmem [#allocation6], 14
      %v795 = vld [vmem:[%s794] sm:$0x3]
      %v796 = vxor.u32 %v795, 2147483648
      %v797 = vmul.f32 %v796, 1.442695
      %v798 = vpow.pop %v797
      %v799 = vadd.f32 %v798, 1.0
      %v800 = vrcp.pop %v799
      %v801 = vmul.f32 1.0, %v800
      %v802 = vtanh.pop %v795
      %v803 = vmul.f32 %v801, 0.0
      %805 = vrot.lane.b32.xlu0 %v802, 64
      %v806 = vpop.permute.xlu0 %805
      %v808 = vmul.f32 %v801, %v806
      %810 = vrot.lane.b32.xlu0 %v808, 32
      %v811 = vpop.permute.xlu0 %810
      %v813 = vadd.f32 %v803, %v811
      %v814 = vtanh.pop %v813
      %816 = vrot.lane.b32.xlu0 %v814, 64
      %v817 = vpop.permute.xlu0 %816
      %v819 = vmul.f32 %v801, %v817
      %v820 = vld [vmem:[%s3] sm:$0x1]
      %v822 = vlaneseq
      %v823 = vshrl.u32 %v822, 7
      %v824 = vsub.s32 0, %v823
      %v825 = vrot.slane %v820, %v824
      %826 = vrot.lane.b32.xlu0 %v825, 96
      %v827 = vpop.permute.xlu0 %826
      %v829 = vmul.f32 %v779, %v827
      %831 = vrot.lane.b32.xlu0 %v829, 32
      %v832 = vpop.permute.xlu0 %831
      %v834 = vsel %vm784, %v832, 0.0
      %835 = vadd.xlane.f32.xlu0 %v834
      %v836 = vpop.xlane.xlu0 %835
      %837 = vrot.lane.b32.xlu0 %v825, 64
      %v838 = vpop.permute.xlu0 %837
      %v840 = vmul.f32 %v819, %v838
      %842 = vrot.lane.b32.xlu0 %v840, 32
      %v843 = vpop.permute.xlu0 %842
      %v845 = vsel %vm784, %v843, 0.0
      %846 = vadd.xlane.f32.xlu0 %v845
      %v847 = vpop.xlane.xlu0 %846
      %v848 = vadd.f32 %v836, %v847
      %v849 = vld [vmem:[#allocation4] sm:$0x1]
      %v851 = vlaneseq
      %v852 = vshrl.u32 %v851, 7
      %v853 = vsub.s32 0, %v852
      %v854 = vrot.slane %v849, %v853
      %v856 = vadd.f32 %v848, %v854
      %vm857 = vcmask 1024
      %858 = vst.msk [vmem:[%s5] sm:$0x3] %vm857, %v856
    $region111: #{sentence_classifier2_forward.7} parent=1 // pred_fallthru
      _
    // Predicated region
    $region112: #{sentence_classifier2_forward.7} parent=1 // pred_check
      _
    $region113: #{sentence_classifier2_forward.7} parent=1 // pred_check_branch
      %860 = sbr.rel (0) target = $region115
    $region114: #{sentence_classifier2_forward.7} parent=1 // pred_region
      _
    $region115: #{sentence_classifier2_forward.7} parent=1 // pred_fallthru
      _
    // Predicated region
    $region116: #{sentence_classifier2_forward.7} parent=1 // pred_check
      _
    $region117: #{sentence_classifier2_forward.7} parent=1 // pred_check_branch
      %862 = sbr.rel (0) target = $region119
    $region118: #{sentence_classifier2_forward.7} parent=1 // pred_region
      _
    $region119: #{sentence_classifier2_forward.7} parent=1 // pred_fallthru
      _

// kernel: sentence_classifier2_forward.5
$region0: #{sentence_classifier2_forward.5}
  #allocation0 [shape = 'u32[]', space=smem, size = 0x4, offset = 0x4, fixed_abs, tag = 'smem constant byte address 0x4 - core index']
  #allocation1 [shape = 'u32[144,128]{1,0:T(1,128)}', space=vmem, size = 0x12000, scoped, tag = 'internal scratch']
  #allocation2 [shape = 'f32[2,32]{1,0:T(2,128)}', space=vmem, size = 0x400, scoped, tag = 'scratch operand']
  #allocation3 [shape = 'f32[2,32]{1,0:T(2,128)}', space=vmem, size = 0x400, scoped, tag = 'scratch operand']
  #allocation4 [shape = 'f32[2,32]{1,0:T(2,128)}', space=vmem, size = 0x400, scoped, tag = 'scratch operand']
  #allocation5 [shape = 'f32[2,32]{1,0:T(2,128)}', space=vmem, size = 0x400, scoped, tag = 'scratch operand']
  %s0 = inlined_call_operand.vmem [shape: f32[8,2,256], index: 0, kind: input, shape index: {}, may-alias: {0,1}]
  %s1 = inlined_call_operand.vmem [shape: f32[8,2,256], index: 1, kind: input, shape index: {}, may-alias: {0,1}]
  %s2 = inlined_call_operand.vmem [shape: bf16[32,128], index: 2, kind: input, shape index: {}]
  %s3 = inlined_call_operand.vmem [shape: bf16[32,128], index: 3, kind: input, shape index: {}]
  %s4 = inlined_call_operand.vmem [shape: bf16[8,2,32], index: 4, kind: output, shape index: {0}]
  %s5 = inlined_call_operand.vmem [shape: bf16[8,2,32], index: 5, kind: output, shape index: {1}]
  %6 = xla_tuple %s4, %s5
  %s7 = sld [smem:[#allocation0]]
  $region120: #{sentence_classifier2_forward.5} parent=0
    _
  %s9 = ssub.s32 1, %s7
  %s10 = scalar_select 0, %s9, %s7
  $region1: #{sentence_classifier2_forward.5} parent=0
    #allocation6 [shape = 'u8[8192]{0}', space=vmem, size = 0x2000, scoped, tag = 'input window, operand 0, single buffered']
    #allocation7 [shape = 'u8[8192]{0}', space=vmem, size = 0x2000, scoped, tag = 'input window, operand 1, single buffered']
    // Predicated region
    $region2: #{sentence_classifier2_forward.5} parent=1 // pred_check
      _
    $region3: #{sentence_classifier2_forward.5} parent=1 // pred_check_branch
      %12 = sbr.rel (0) target = $region5
    $region4: #{sentence_classifier2_forward.5} parent=1 // pred_region
      // Predicated region
      $region6: #{sentence_classifier2_forward.5} parent=4 // pred_check
        _
      $region7: #{sentence_classifier2_forward.5} parent=4 // pred_check_branch
        %14 = sbr.rel (0) target = $region9
      $region8: #{sentence_classifier2_forward.5} parent=4 // pred_region
        // Predicated region
        $region10: #{sentence_classifier2_forward.5} parent=8 // pred_check
          _
        $region11: #{sentence_classifier2_forward.5} parent=8 // pred_check_branch
          %16 = sbr.rel target = $region13
        $region12: #{sentence_classifier2_forward.5} parent=8 // pred_region
          // Predicated region
          $region25: #{sentence_classifier2_forward.5} parent=12 // pred_check
            _
          $region26: #{sentence_classifier2_forward.5} parent=12 // pred_check_branch
            %45 = sbr.rel (0) target = $region28
          $region27: #{sentence_classifier2_forward.5} parent=12 // pred_region
            loop: start=0, step=1, limit=1
            $region29: #{sentence_classifier2_forward.5} parent=27 // loop_pre_header
              _
            $region30: #{sentence_classifier2_forward.5} parent=27 // loop_header
              %s47 = sphi 0, %s51
              %p48 = scmp.ge.s32.totalorder %s47, 1
              %s52 = sphi %s0, %s0
              %s53 = sphi [#allocation6], [#allocation6]
            $region31: #{sentence_classifier2_forward.5} parent=27 // loop_header_branch
              %50 = sbr.rel (%p48) target = $region35
            $region32: #{sentence_classifier2_forward.5} parent=27 // loop_body
              _
            $region33: #{sentence_classifier2_forward.5} parent=27 // loop_footer
              %s51 = sadd.s32 1, %s47
            $region34: #{sentence_classifier2_forward.5} parent=27 // loop_footer_branch
              %46 = sbr.rel target = $region30
            $region35: #{sentence_classifier2_forward.5} parent=27 // loop_exit
              _
            loop: start=0, step=1, limit=1
            $region36: #{sentence_classifier2_forward.5} parent=27 // loop_pre_header
              _
            $region37: #{sentence_classifier2_forward.5} parent=27 // loop_header
              %s56 = sphi 0, %s60
              %p57 = scmp.ge.s32.totalorder %s56, 1
              %s61 = sphi %s0, %s0
              %s62 = sphi [#allocation6], [#allocation6]
            $region38: #{sentence_classifier2_forward.5} parent=27 // loop_header_branch
              %59 = sbr.rel (%p57) target = $region42
            $region39: #{sentence_classifier2_forward.5} parent=27 // loop_body
              %v63 = vld [vmem:[%s61] sm:$0x3]
              %64 = vst [vmem:[%s62] sm:$0x3] %v63
              %v65 = vld [vmem:[%s61 + $0x4] sm:$0x3]
              %66 = vst [vmem:[%s62 + $0x2] sm:$0x3] %v65
              %v67 = vld [vmem:[%s61 + $0x8] sm:$0x3]
              %68 = vst [vmem:[%s62 + $0x4] sm:$0x3] %v67
              %v69 = vld [vmem:[%s61 + $0xc] sm:$0x3]
              %70 = vst [vmem:[%s62 + $0x6] sm:$0x3] %v69
              %v71 = vld [vmem:[%s61 + $0x10] sm:$0x3]
              %72 = vst [vmem:[%s62 + $0x8] sm:$0x3] %v71
              %v73 = vld [vmem:[%s61 + $0x14] sm:$0x3]
              %74 = vst [vmem:[%s62 + $0xa] sm:$0x3] %v73
              %v75 = vld [vmem:[%s61 + $0x18] sm:$0x3]
              %76 = vst [vmem:[%s62 + $0xc] sm:$0x3] %v75
              %v77 = vld [vmem:[%s61 + $0x1c] sm:$0x3]
              %78 = vst [vmem:[%s62 + $0xe] sm:$0x3] %v77
            $region40: #{sentence_classifier2_forward.5} parent=27 // loop_footer
              %s60 = sadd.s32 1, %s56
            $region41: #{sentence_classifier2_forward.5} parent=27 // loop_footer_branch
              %55 = sbr.rel target = $region37
            $region42: #{sentence_classifier2_forward.5} parent=27 // loop_exit
              _
          $region28: #{sentence_classifier2_forward.5} parent=12 // pred_fallthru
            _
        $region13: #{sentence_classifier2_forward.5} parent=8 // pred_fallthru
          _
        // Predicated region
        $region14: #{sentence_classifier2_forward.5} parent=8 // pred_check
          _
        $region15: #{sentence_classifier2_forward.5} parent=8 // pred_check_branch
          %18 = sbr.rel (0) target = $region17
        $region16: #{sentence_classifier2_forward.5} parent=8 // pred_region
          loop: start=0, step=1, limit=1
          $region18: #{sentence_classifier2_forward.5} parent=16 // loop_pre_header
            _
          $region19: #{sentence_classifier2_forward.5} parent=16 // loop_header
            %s21 = sphi 0, %s25
            %p22 = scmp.ge.s32.totalorder %s21, 1
            %s26 = sphi %s0, %s0
            %s27 = sphi [#allocation6], [#allocation6]
          $region20: #{sentence_classifier2_forward.5} parent=16 // loop_header_branch
            %24 = sbr.rel (%p22) target = $region24
          $region21: #{sentence_classifier2_forward.5} parent=16 // loop_body
            %v28 = vld [vmem:[%s26] sm:$0x3]
            %29 = vst [vmem:[%s27] sm:$0x3] %v28
            %v30 = vld [vmem:[%s26 + $0x4] sm:$0x3]
            %31 = vst [vmem:[%s27 + $0x2] sm:$0x3] %v30
            %v32 = vld [vmem:[%s26 + $0x8] sm:$0x3]
            %33 = vst [vmem:[%s27 + $0x4] sm:$0x3] %v32
            %v34 = vld [vmem:[%s26 + $0xc] sm:$0x3]
            %35 = vst [vmem:[%s27 + $0x6] sm:$0x3] %v34
            %v36 = vld [vmem:[%s26 + $0x10] sm:$0x3]
            %37 = vst [vmem:[%s27 + $0x8] sm:$0x3] %v36
            %v38 = vld [vmem:[%s26 + $0x14] sm:$0x3]
            %39 = vst [vmem:[%s27 + $0xa] sm:$0x3] %v38
            %v40 = vld [vmem:[%s26 + $0x18] sm:$0x3]
            %41 = vst [vmem:[%s27 + $0xc] sm:$0x3] %v40
            %v42 = vld [vmem:[%s26 + $0x1c] sm:$0x3]
            %43 = vst [vmem:[%s27 + $0xe] sm:$0x3] %v42
          $region22: #{sentence_classifier2_forward.5} parent=16 // loop_footer
            %s25 = sadd.s32 1, %s21
          $region23: #{sentence_classifier2_forward.5} parent=16 // loop_footer_branch
            %20 = sbr.rel target = $region19
          $region24: #{sentence_classifier2_forward.5} parent=16 // loop_exit
            _
        $region17: #{sentence_classifier2_forward.5} parent=8 // pred_fallthru
          _
      $region9: #{sentence_classifier2_forward.5} parent=4 // pred_fallthru
        _
      %79 = vnop
    $region5: #{sentence_classifier2_forward.5} parent=1 // pred_fallthru
      _
    // Predicated region
    $region43: #{sentence_classifier2_forward.5} parent=1 // pred_check
      _
    $region44: #{sentence_classifier2_forward.5} parent=1 // pred_check_branch
      %81 = sbr.rel (0) target = $region46
    $region45: #{sentence_classifier2_forward.5} parent=1 // pred_region
      %s82 = ssub.s32 0, 0
      %s83 = smul.u32 8, %s82
      %s84 = smul.addr %s83, 2
      %s85 = sadd.s32 1, %s84
      %s86 = smul.addr %s85, 2
      %s87 = scalar_lea.vmem %s1, %s86
      // Predicated region
      $region47: #{sentence_classifier2_forward.5} parent=45 // pred_check
        _
      $region48: #{sentence_classifier2_forward.5} parent=45 // pred_check_branch
        %89 = sbr.rel (0) target = $region50
      $region49: #{sentence_classifier2_forward.5} parent=45 // pred_region
        // Predicated region
        $region51: #{sentence_classifier2_forward.5} parent=49 // pred_check
          _
        $region52: #{sentence_classifier2_forward.5} parent=49 // pred_check_branch
          %91 = sbr.rel target = $region54
        $region53: #{sentence_classifier2_forward.5} parent=49 // pred_region
          // Predicated region
          $region66: #{sentence_classifier2_forward.5} parent=53 // pred_check
            _
          $region67: #{sentence_classifier2_forward.5} parent=53 // pred_check_branch
            %120 = sbr.rel (0) target = $region69
          $region68: #{sentence_classifier2_forward.5} parent=53 // pred_region
            loop: start=0, step=1, limit=1
            $region70: #{sentence_classifier2_forward.5} parent=68 // loop_pre_header
              _
            $region71: #{sentence_classifier2_forward.5} parent=68 // loop_header
              %s122 = sphi 0, %s126
              %p123 = scmp.ge.s32.totalorder %s122, 1
              %s127 = sphi %s87, %s87
              %s128 = sphi [#allocation7], [#allocation7]
            $region72: #{sentence_classifier2_forward.5} parent=68 // loop_header_branch
              %125 = sbr.rel (%p123) target = $region76
            $region73: #{sentence_classifier2_forward.5} parent=68 // loop_body
              _
            $region74: #{sentence_classifier2_forward.5} parent=68 // loop_footer
              %s126 = sadd.s32 1, %s122
            $region75: #{sentence_classifier2_forward.5} parent=68 // loop_footer_branch
              %121 = sbr.rel target = $region71
            $region76: #{sentence_classifier2_forward.5} parent=68 // loop_exit
              _
            loop: start=0, step=1, limit=1
            $region77: #{sentence_classifier2_forward.5} parent=68 // loop_pre_header
              _
            $region78: #{sentence_classifier2_forward.5} parent=68 // loop_header
              %s131 = sphi 0, %s135
              %p132 = scmp.ge.s32.totalorder %s131, 1
              %s136 = sphi %s87, %s87
              %s137 = sphi [#allocation7], [#allocation7]
            $region79: #{sentence_classifier2_forward.5} parent=68 // loop_header_branch
              %134 = sbr.rel (%p132) target = $region83
            $region80: #{sentence_classifier2_forward.5} parent=68 // loop_body
              %v138 = vld [vmem:[%s136] sm:$0x3]
              %139 = vst [vmem:[%s137] sm:$0x3] %v138
              %v140 = vld [vmem:[%s136 + $0x4] sm:$0x3]
              %141 = vst [vmem:[%s137 + $0x2] sm:$0x3] %v140
              %v142 = vld [vmem:[%s136 + $0x8] sm:$0x3]
              %143 = vst [vmem:[%s137 + $0x4] sm:$0x3] %v142
              %v144 = vld [vmem:[%s136 + $0xc] sm:$0x3]
              %145 = vst [vmem:[%s137 + $0x6] sm:$0x3] %v144
              %v146 = vld [vmem:[%s136 + $0x10] sm:$0x3]
              %147 = vst [vmem:[%s137 + $0x8] sm:$0x3] %v146
              %v148 = vld [vmem:[%s136 + $0x14] sm:$0x3]
              %149 = vst [vmem:[%s137 + $0xa] sm:$0x3] %v148
              %v150 = vld [vmem:[%s136 + $0x18] sm:$0x3]
              %151 = vst [vmem:[%s137 + $0xc] sm:$0x3] %v150
              %v152 = vld [vmem:[%s136 + $0x1c] sm:$0x3]
              %153 = vst [vmem:[%s137 + $0xe] sm:$0x3] %v152
            $region81: #{sentence_classifier2_forward.5} parent=68 // loop_footer
              %s135 = sadd.s32 1, %s131
            $region82: #{sentence_classifier2_forward.5} parent=68 // loop_footer_branch
              %130 = sbr.rel target = $region78
            $region83: #{sentence_classifier2_forward.5} parent=68 // loop_exit
              _
          $region69: #{sentence_classifier2_forward.5} parent=53 // pred_fallthru
            _
        $region54: #{sentence_classifier2_forward.5} parent=49 // pred_fallthru
          _
        // Predicated region
        $region55: #{sentence_classifier2_forward.5} parent=49 // pred_check
          _
        $region56: #{sentence_classifier2_forward.5} parent=49 // pred_check_branch
          %93 = sbr.rel (0) target = $region58
        $region57: #{sentence_classifier2_forward.5} parent=49 // pred_region
          loop: start=0, step=1, limit=1
          $region59: #{sentence_classifier2_forward.5} parent=57 // loop_pre_header
            _
          $region60: #{sentence_classifier2_forward.5} parent=57 // loop_header
            %s96 = sphi 0, %s100
            %p97 = scmp.ge.s32.totalorder %s96, 1
            %s101 = sphi %s87, %s87
            %s102 = sphi [#allocation7], [#allocation7]
          $region61: #{sentence_classifier2_forward.5} parent=57 // loop_header_branch
            %99 = sbr.rel (%p97) target = $region65
          $region62: #{sentence_classifier2_forward.5} parent=57 // loop_body
            %v103 = vld [vmem:[%s101] sm:$0x3]
            %104 = vst [vmem:[%s102] sm:$0x3] %v103
            %v105 = vld [vmem:[%s101 + $0x4] sm:$0x3]
            %106 = vst [vmem:[%s102 + $0x2] sm:$0x3] %v105
            %v107 = vld [vmem:[%s101 + $0x8] sm:$0x3]
            %108 = vst [vmem:[%s102 + $0x4] sm:$0x3] %v107
            %v109 = vld [vmem:[%s101 + $0xc] sm:$0x3]
            %110 = vst [vmem:[%s102 + $0x6] sm:$0x3] %v109
            %v111 = vld [vmem:[%s101 + $0x10] sm:$0x3]
            %112 = vst [vmem:[%s102 + $0x8] sm:$0x3] %v111
            %v113 = vld [vmem:[%s101 + $0x14] sm:$0x3]
            %114 = vst [vmem:[%s102 + $0xa] sm:$0x3] %v113
            %v115 = vld [vmem:[%s101 + $0x18] sm:$0x3]
            %116 = vst [vmem:[%s102 + $0xc] sm:$0x3] %v115
            %v117 = vld [vmem:[%s101 + $0x1c] sm:$0x3]
            %118 = vst [vmem:[%s102 + $0xe] sm:$0x3] %v117
          $region63: #{sentence_classifier2_forward.5} parent=57 // loop_footer
            %s100 = sadd.s32 1, %s96
          $region64: #{sentence_classifier2_forward.5} parent=57 // loop_footer_branch
            %95 = sbr.rel target = $region60
          $region65: #{sentence_classifier2_forward.5} parent=57 // loop_exit
            _
        $region58: #{sentence_classifier2_forward.5} parent=49 // pred_fallthru
          _
      $region50: #{sentence_classifier2_forward.5} parent=45 // pred_fallthru
        _
      %154 = vnop
    $region46: #{sentence_classifier2_forward.5} parent=1 // pred_fallthru
      _
    // Predicated region
    $region84: #{sentence_classifier2_forward.5} parent=1 // pred_check
      _
    $region85: #{sentence_classifier2_forward.5} parent=1 // pred_check_branch
      %156 = sbr.rel (0) target = $region87
    $region86: #{sentence_classifier2_forward.5} parent=1 // pred_region
      _
    $region87: #{sentence_classifier2_forward.5} parent=1 // pred_fallthru
      _
    // Predicated region
    $region88: #{sentence_classifier2_forward.5} parent=1 // pred_check
      _
    $region89: #{sentence_classifier2_forward.5} parent=1 // pred_check_branch
      %158 = sbr.rel (0) target = $region91
    $region90: #{sentence_classifier2_forward.5} parent=1 // pred_region
      _
    $region91: #{sentence_classifier2_forward.5} parent=1 // pred_fallthru
      _
    // Predicated region
    $region92: #{sentence_classifier2_forward.5} parent=1 // pred_check
      _
    $region93: #{sentence_classifier2_forward.5} parent=1 // pred_check_branch
      %160 = sbr.rel (0) target = $region95
    $region94: #{sentence_classifier2_forward.5} parent=1 // pred_region
      _
    $region95: #{sentence_classifier2_forward.5} parent=1 // pred_fallthru
      _
    // Predicated region
    $region96: #{sentence_classifier2_forward.5} parent=1 // pred_check
      _
    $region97: #{sentence_classifier2_forward.5} parent=1 // pred_check_branch
      %162 = sbr.rel (0) target = $region99
    $region98: #{sentence_classifier2_forward.5} parent=1 // pred_region
      _
    $region99: #{sentence_classifier2_forward.5} parent=1 // pred_fallthru
      _
    %s163 = ssub.s32 0, 0
    %s164 = smul.u32 8, %s163
    %p165 = scmp.lt.s32.totalorder %s164, 7
    %s166 = scalar_select %p165, %s164, 7
    %s167 = scalar_lea.vmem %s5, %s166
    %s168 = ssub.s32 0, 0
    %s169 = smul.u32 8, %s168
    %s170 = ssub.s32 0, 0
    %s171 = smul.u32 8, %s170
    %p172 = scmp.lt.s32.totalorder %s171, 7
    %s173 = scalar_select %p172, %s171, 7
    %s174 = scalar_lea.vmem %s5, %s173
    %s175 = ssub.s32 0, 0
    %s176 = smul.u32 8, %s175
    %p178 = scmp.eq.s32.totalorder 0, 0
    // Predicated region
    $region100: #{sentence_classifier2_forward.5} parent=1 // pred_check
      %p179 = pneg %p178
    $region101: #{sentence_classifier2_forward.5} parent=1 // pred_check_branch
      %181 = sbr.rel (%p179) target = $region103
    $region102: #{sentence_classifier2_forward.5} parent=1 // pred_region
      %vm182 = vcmask 254976
      %183 = vst.msk [vmem:[#allocation2] sm:$0x3] %vm182, 0.0
      %184 = vst.msk [vmem:[#allocation3] sm:$0x3] %vm182, 0.0
      %185 = vst.msk [vmem:[#allocation4] sm:$0x3] %vm182, 0.0
      %186 = vst.msk [vmem:[#allocation5] sm:$0x3] %vm182, 0.0
    $region103: #{sentence_classifier2_forward.5} parent=1 // pred_fallthru
      _
    %v187 = vld [vmem:[%s2] sm:$0xf]
    %v188 = vld [vmem:[%s2 + $0x4] sm:$0xf]
    %v189 = vld [vmem:[%s2 + $0x8] sm:$0xf]
    %v190 = vld [vmem:[%s2 + $0xc] sm:$0xf]
    %v191 = vld [vmem:[%s3] sm:$0xf]
    %v192 = vld [vmem:[%s3 + $0x4] sm:$0xf]
    %v193 = vld [vmem:[%s3 + $0x8] sm:$0xf]
    %v194 = vld [vmem:[%s3 + $0xc] sm:$0xf]
    %v195 = vld [vmem:[#allocation2] sm:$0x3]
    %v196 = vld [vmem:[#allocation3] sm:$0x3]
    %v197 = vld [vmem:[#allocation4] sm:$0x3]
    %v198 = vld [vmem:[#allocation5] sm:$0x3]
    %v199 = vld [vmem:[#allocation6] sm:$0x3]
    %v200 = vpack.c.bf16 %v195, %v195
    %v205 = vunpack.c.l.b16 %v187
    %v206 = vunpack.c.l.b16 %v188
    %v207 = vunpack.c.l.b16 %v189
    %v208 = vunpack.c.l.b16 %v190
    %v209 = vpack.c.b16 %v206, %v205
    %v210 = vpack.c.b16 %v208, %v207
    %vm213 = vcmask 261120
    %v215 = vsel %vm213, %v200, 0
    %217 = vmatprep.subr.bf16.mxu0 0
    %218 = vmatpush1.bf16.msra.mxu0 %v209
    %219 = vmatprep.subr.bf16.mxu0 0
    %220 = vmatpush1.bf16.msra.mxu0 %v210
    %221 = vmatprep.subr.bf16.mxu0 0
    %222 = vmatpush1.bf16.msra.mxu0 0
    %223 = vmatprep.subr.bf16.mxu0 0
    %224 = vmatpush1.bf16.msra.mxu0 0
    %225 = vmatprep.subr.bf16.mxu0 0
    %226 = vmatpush1.bf16.msra.mxu0 0
    %227 = vmatprep.subr.bf16.mxu0 0
    %228 = vmatpush1.bf16.msra.mxu0 0
    %229 = vmatprep.subr.bf16.mxu0 0
    %230 = vmatpush1.bf16.msra.mxu0 0
    %231 = vmatprep.subr.bf16.mxu0 0
    %232 = vmatpush1.bf16.msra.mxu0 0
    %233 = vmatprep.subr.bf16.mxu0 0
    %234 = vmatpush1.bf16.msra.mxu0 0
    %235 = vmatprep.subr.bf16.mxu0 0
    %236 = vmatpush1.bf16.msra.mxu0 0
    %237 = vmatprep.subr.bf16.mxu0 0
    %238 = vmatpush1.bf16.msra.mxu0 0
    %239 = vmatprep.subr.bf16.mxu0 0
    %240 = vmatpush1.bf16.msra.mxu0 0
    %241 = vmatprep.subr.bf16.mxu0 0
    %242 = vmatpush1.bf16.msra.mxu0 0
    %243 = vmatprep.subr.bf16.mxu0 0
    %244 = vmatpush1.bf16.msra.mxu0 0
    %245 = vmatprep.subr.bf16.mxu0 0
    %246 = vmatpush1.bf16.msra.mxu0 0
    %247 = vmatprep.subr.bf16.mxu0 0
    %248 = vmatpush1.bf16.msra.mxu0 0
    %249 = vmatprep.mubr.bf16.mxu0 0
    %250 = vmatmul.mubr.bf16.gmra.mrb[0].mxu0 %v215
    %v251 = vpop.f32.mrb[0].mxu0
    %v252 = vadd.f32 0.0, %v251
    %v253 = vpop.f32.mrb[0].mxu0
    %v254 = vpop.f32.mrb[0].mxu0
    %v255 = vpop.f32.mrb[0].mxu0
    %256 = vdwg.mxu0
    %v257 = vadd.f32 %v199, %v252
    %v258 = vxor.u32 %v257, 2147483648
    %v259 = vmul.f32 %v258, 1.442695
    %v260 = vpow.pop %v259
    %v261 = vadd.f32 %v260, 1.0
    %v262 = vrcp.pop %v261
    %v263 = vmul.f32 1.0, %v262
    %v264 = vtanh.pop %v257
    %266 = vrot.lane.b32.xlu0 %v196, 32
    %v267 = vpop.permute.xlu0 %266
    %v269 = vmul.f32 %v263, %v267
    %271 = vrot.lane.b32.xlu0 %v264, 64
    %v272 = vpop.permute.xlu0 %271
    %v274 = vmul.f32 %v263, %v272
    %276 = vrot.lane.b32.xlu0 %v274, 32
    %v277 = vpop.permute.xlu0 %276
    %v279 = vadd.f32 %v269, %v277
    %v280 = vtanh.pop %v279
    %282 = vrot.lane.b32.xlu0 %v280, 64
    %v283 = vpop.permute.xlu0 %282
    %v285 = vmul.f32 %v263, %v283
    %v286 = vpack.c.bf16 %v285, %v285
    %v289 = vunpack.c.l.s4 1966171168
    %v290 = vunpack.c.0.s8 %v289
    %v291 = vlaneseq
    %v292 = vshrl.u32 %v291, 7
    %v293 = vsub.s32 %v290, %v292
    %v294 = vrot.slane %v286, %v293
    %v296 = vunpack.c.l.s4 1966171168
    %v297 = vunpack.c.0.s8 %v296
    %v298 = vlaneseq
    %v299 = vshrl.u32 %v298, 7
    %v300 = vsub.s32 %v297, %v299
    %v301 = vrot.slane %v294, %v300
    %302 = vrot.lane.b32.xlu0 %v301, 32
    %v303 = vpop.permute.xlu0 %302
    %vm305 = vcmask 253952
    %306 = vst.msk [vmem:[%s4] sm:$0x1] %vm305, %v303
    %s307 = scalar_lea.vmem [#allocation7], 14
    %v308 = vld [vmem:[%s307] sm:$0x3]
    %v309 = vpack.c.bf16 %v197, %v197
    %v314 = vunpack.c.l.b16 %v191
    %v315 = vunpack.c.l.b16 %v192
    %v316 = vunpack.c.l.b16 %v193
    %v317 = vunpack.c.l.b16 %v194
    %v318 = vpack.c.b16 %v315, %v314
    %v319 = vpack.c.b16 %v317, %v316
    %v323 = vsel %vm213, %v309, 0
    %325 = vmatprep.subr.bf16.mxu0 0
    %326 = vmatpush1.bf16.msra.mxu0 %v318
    %327 = vmatprep.subr.bf16.mxu0 0
    %328 = vmatpush1.bf16.msra.mxu0 %v319
    %329 = vmatprep.subr.bf16.mxu0 0
    %330 = vmatpush1.bf16.msra.mxu0 0
    %331 = vmatprep.subr.bf16.mxu0 0
    %332 = vmatpush1.bf16.msra.mxu0 0
    %333 = vmatprep.subr.bf16.mxu0 0
    %334 = vmatpush1.bf16.msra.mxu0 0
    %335 = vmatprep.subr.bf16.mxu0 0
    %336 = vmatpush1.bf16.msra.mxu0 0
    %337 = vmatprep.subr.bf16.mxu0 0
    %338 = vmatpush1.bf16.msra.mxu0 0
    %339 = vmatprep.subr.bf16.mxu0 0
    %340 = vmatpush1.bf16.msra.mxu0 0
    %341 = vmatprep.subr.bf16.mxu0 0
    %342 = vmatpush1.bf16.msra.mxu0 0
    %343 = vmatprep.subr.bf16.mxu0 0
    %344 = vmatpush1.bf16.msra.mxu0 0
    %345 = vmatprep.subr.bf16.mxu0 0
    %346 = vmatpush1.bf16.msra.mxu0 0
    %347 = vmatprep.subr.bf16.mxu0 0
    %348 = vmatpush1.bf16.msra.mxu0 0
    %349 = vmatprep.subr.bf16.mxu0 0
    %350 = vmatpush1.bf16.msra.mxu0 0
    %351 = vmatprep.subr.bf16.mxu0 0
    %352 = vmatpush1.bf16.msra.mxu0 0
    %353 = vmatprep.subr.bf16.mxu0 0
    %354 = vmatpush1.bf16.msra.mxu0 0
    %355 = vmatprep.subr.bf16.mxu0 0
    %356 = vmatpush1.bf16.msra.mxu0 0
    %357 = vmatprep.mubr.bf16.mxu0 0
    %358 = vmatmul.mubr.bf16.gmra.mrb[0].mxu0 %v323
    %v359 = vpop.f32.mrb[0].mxu0
    %v360 = vadd.f32 0.0, %v359
    %v361 = vpop.f32.mrb[0].mxu0
    %v362 = vpop.f32.mrb[0].mxu0
    %v363 = vpop.f32.mrb[0].mxu0
    %364 = vdwg.mxu0
    %v365 = vadd.f32 %v308, %v360
    %v366 = vxor.u32 %v365, 2147483648
    %v367 = vmul.f32 %v366, 1.442695
    %v368 = vpow.pop %v367
    %v369 = vadd.f32 %v368, 1.0
    %v370 = vrcp.pop %v369
    %v371 = vmul.f32 1.0, %v370
    %v372 = vtanh.pop %v365
    %374 = vrot.lane.b32.xlu0 %v198, 32
    %v375 = vpop.permute.xlu0 %374
    %v377 = vmul.f32 %v371, %v375
    %379 = vrot.lane.b32.xlu0 %v372, 64
    %v380 = vpop.permute.xlu0 %379
    %v382 = vmul.f32 %v371, %v380
    %384 = vrot.lane.b32.xlu0 %v382, 32
    %v385 = vpop.permute.xlu0 %384
    %v387 = vadd.f32 %v377, %v385
    %v388 = vtanh.pop %v387
    %390 = vrot.lane.b32.xlu0 %v388, 64
    %v391 = vpop.permute.xlu0 %390
    %v393 = vmul.f32 %v371, %v391
    %v394 = vpack.c.bf16 %v393, %v393
    %v397 = vunpack.c.l.s4 1966171168
    %v398 = vunpack.c.0.s8 %v397
    %v399 = vlaneseq
    %v400 = vshrl.u32 %v399, 7
    %v401 = vsub.s32 %v398, %v400
    %v402 = vrot.slane %v394, %v401
    %v404 = vunpack.c.l.s4 1966171168
    %v405 = vunpack.c.0.s8 %v404
    %v406 = vlaneseq
    %v407 = vshrl.u32 %v406, 7
    %v408 = vsub.s32 %v405, %v407
    %v409 = vrot.slane %v402, %v408
    %410 = vrot.lane.b32.xlu0 %v409, 32
    %v411 = vpop.permute.xlu0 %410
    %s413 = scalar_lea.vmem %s174, 7
    %414 = vst.msk [vmem:[%s413] sm:$0x1] %vm305, %v411
    %s415 = scalar_lea.vmem [#allocation6], 2
    %v416 = vld [vmem:[%s415] sm:$0x3]
    %417 = vrot.lane.b32.xlu0 %v286, 32
    %v418 = vpop.permute.xlu0 %417
    %v420 = vsel %vm213, %v418, 0
    %422 = vmatprep.subr.bf16.mxu0 0
    %423 = vmatpush1.bf16.msra.mxu0 %v209
    %424 = vmatprep.subr.bf16.mxu0 0
    %425 = vmatpush1.bf16.msra.mxu0 %v210
    %426 = vmatprep.subr.bf16.mxu0 0
    %427 = vmatpush1.bf16.msra.mxu0 0
    %428 = vmatprep.subr.bf16.mxu0 0
    %429 = vmatpush1.bf16.msra.mxu0 0
    %430 = vmatprep.subr.bf16.mxu0 0
    %431 = vmatpush1.bf16.msra.mxu0 0
    %432 = vmatprep.subr.bf16.mxu0 0
    %433 = vmatpush1.bf16.msra.mxu0 0
    %434 = vmatprep.subr.bf16.mxu0 0
    %435 = vmatpush1.bf16.msra.mxu0 0
    %436 = vmatprep.subr.bf16.mxu0 0
    %437 = vmatpush1.bf16.msra.mxu0 0
    %438 = vmatprep.subr.bf16.mxu0 0
    %439 = vmatpush1.bf16.msra.mxu0 0
    %440 = vmatprep.subr.bf16.mxu0 0
    %441 = vmatpush1.bf16.msra.mxu0 0
    %442 = vmatprep.subr.bf16.mxu0 0
    %443 = vmatpush1.bf16.msra.mxu0 0
    %444 = vmatprep.subr.bf16.mxu0 0
    %445 = vmatpush1.bf16.msra.mxu0 0
    %446 = vmatprep.subr.bf16.mxu0 0
    %447 = vmatpush1.bf16.msra.mxu0 0
    %448 = vmatprep.subr.bf16.mxu0 0
    %449 = vmatpush1.bf16.msra.mxu0 0
    %450 = vmatprep.subr.bf16.mxu0 0
    %451 = vmatpush1.bf16.msra.mxu0 0
    %452 = vmatprep.subr.bf16.mxu0 0
    %453 = vmatpush1.bf16.msra.mxu0 0
    %454 = vmatprep.mubr.bf16.mxu0 0
    %455 = vmatmul.mubr.bf16.gmra.mrb[0].mxu0 %v420
    %v456 = vpop.f32.mrb[0].mxu0
    %v457 = vadd.f32 0.0, %v456
    %v458 = vpop.f32.mrb[0].mxu0
    %v459 = vpop.f32.mrb[0].mxu0
    %v460 = vpop.f32.mrb[0].mxu0
    %461 = vdwg.mxu0
    %v462 = vadd.f32 %v416, %v457
    %v463 = vxor.u32 %v462, 2147483648
    %v464 = vmul.f32 %v463, 1.442695
    %v465 = vpow.pop %v464
    %v466 = vadd.f32 %v465, 1.0
    %v467 = vrcp.pop %v466
    %v468 = vmul.f32 1.0, %v467
    %v469 = vtanh.pop %v462
    %v470 = vmul.f32 %v468, %v279
    %472 = vrot.lane.b32.xlu0 %v469, 64
    %v473 = vpop.permute.xlu0 %472
    %v475 = vmul.f32 %v468, %v473
    %477 = vrot.lane.b32.xlu0 %v475, 32
    %v478 = vpop.permute.xlu0 %477
    %v480 = vadd.f32 %v470, %v478
    %v481 = vtanh.pop %v480
    %483 = vrot.lane.b32.xlu0 %v481, 64
    %v484 = vpop.permute.xlu0 %483
    %v486 = vmul.f32 %v468, %v484
    %v487 = vpack.c.bf16 %v486, %v486
    %v490 = vunpack.c.l.s4 1966171168
    %v491 = vunpack.c.0.s8 %v490
    %v492 = vlaneseq
    %v493 = vshrl.u32 %v492, 7
    %v494 = vsub.s32 %v491, %v493
    %v495 = vrot.slane %v487, %v494
    %v497 = vunpack.c.l.s4 1966171168
    %v498 = vunpack.c.0.s8 %v497
    %v499 = vlaneseq
    %v500 = vshrl.u32 %v499, 7
    %v501 = vsub.s32 %v498, %v500
    %v502 = vrot.slane %v495, %v501
    %503 = vrot.lane.b32.xlu0 %v502, 32
    %v504 = vpop.permute.xlu0 %503
    %s506 = scalar_lea.vmem %s4, 1
    %507 = vst.msk [vmem:[%s506] sm:$0x1] %vm305, %v504
    %s508 = scalar_lea.vmem [#allocation7], 12
    %v509 = vld [vmem:[%s508] sm:$0x3]
    %510 = vrot.lane.b32.xlu0 %v394, 32
    %v511 = vpop.permute.xlu0 %510
    %v513 = vsel %vm213, %v511, 0
    %515 = vmatprep.subr.bf16.mxu0 0
    %516 = vmatpush1.bf16.msra.mxu0 %v318
    %517 = vmatprep.subr.bf16.mxu0 0
    %518 = vmatpush1.bf16.msra.mxu0 %v319
    %519 = vmatprep.subr.bf16.mxu0 0
    %520 = vmatpush1.bf16.msra.mxu0 0
    %521 = vmatprep.subr.bf16.mxu0 0
    %522 = vmatpush1.bf16.msra.mxu0 0
    %523 = vmatprep.subr.bf16.mxu0 0
    %524 = vmatpush1.bf16.msra.mxu0 0
    %525 = vmatprep.subr.bf16.mxu0 0
    %526 = vmatpush1.bf16.msra.mxu0 0
    %527 = vmatprep.subr.bf16.mxu0 0
    %528 = vmatpush1.bf16.msra.mxu0 0
    %529 = vmatprep.subr.bf16.mxu0 0
    %530 = vmatpush1.bf16.msra.mxu0 0
    %531 = vmatprep.subr.bf16.mxu0 0
    %532 = vmatpush1.bf16.msra.mxu0 0
    %533 = vmatprep.subr.bf16.mxu0 0
    %534 = vmatpush1.bf16.msra.mxu0 0
    %535 = vmatprep.subr.bf16.mxu0 0
    %536 = vmatpush1.bf16.msra.mxu0 0
    %537 = vmatprep.subr.bf16.mxu0 0
    %538 = vmatpush1.bf16.msra.mxu0 0
    %539 = vmatprep.subr.bf16.mxu0 0
    %540 = vmatpush1.bf16.msra.mxu0 0
    %541 = vmatprep.subr.bf16.mxu0 0
    %542 = vmatpush1.bf16.msra.mxu0 0
    %543 = vmatprep.subr.bf16.mxu0 0
    %544 = vmatpush1.bf16.msra.mxu0 0
    %545 = vmatprep.subr.bf16.mxu0 0
    %546 = vmatpush1.bf16.msra.mxu0 0
    %547 = vmatprep.mubr.bf16.mxu0 0
    %548 = vmatmul.mubr.bf16.gmra.mrb[0].mxu0 %v513
    %v549 = vpop.f32.mrb[0].mxu0
    %v550 = vadd.f32 0.0, %v549
    %v551 = vpop.f32.mrb[0].mxu0
    %v552 = vpop.f32.mrb[0].mxu0
    %v553 = vpop.f32.mrb[0].mxu0
    %554 = vdwg.mxu0
    %v555 = vadd.f32 %v509, %v550
    %v556 = vxor.u32 %v555, 2147483648
    %v557 = vmul.f32 %v556, 1.442695
    %v558 = vpow.pop %v557
    %v559 = vadd.f32 %v558, 1.0
    %v560 = vrcp.pop %v559
    %v561 = vmul.f32 1.0, %v560
    %v562 = vtanh.pop %v555
    %v563 = vmul.f32 %v561, %v387
    %565 = vrot.lane.b32.xlu0 %v562, 64
    %v566 = vpop.permute.xlu0 %565
    %v568 = vmul.f32 %v561, %v566
    %570 = vrot.lane.b32.xlu0 %v568, 32
    %v571 = vpop.permute.xlu0 %570
    %v573 = vadd.f32 %v563, %v571
    %v574 = vtanh.pop %v573
    %576 = vrot.lane.b32.xlu0 %v574, 64
    %v577 = vpop.permute.xlu0 %576
    %v579 = vmul.f32 %v561, %v577
    %v580 = vpack.c.bf16 %v579, %v579
    %v583 = vunpack.c.l.s4 1966171168
    %v584 = vunpack.c.0.s8 %v583
    %v585 = vlaneseq
    %v586 = vshrl.u32 %v585, 7
    %v587 = vsub.s32 %v584, %v586
    %v588 = vrot.slane %v580, %v587
    %v590 = vunpack.c.l.s4 1966171168
    %v591 = vunpack.c.0.s8 %v590
    %v592 = vlaneseq
    %v593 = vshrl.u32 %v592, 7
    %v594 = vsub.s32 %v591, %v593
    %v595 = vrot.slane %v588, %v594
    %596 = vrot.lane.b32.xlu0 %v595, 32
    %v597 = vpop.permute.xlu0 %596
    %s599 = scalar_lea.vmem %s174, 6
    %600 = vst.msk [vmem:[%s599] sm:$0x1] %vm305, %v597
    %s601 = scalar_lea.vmem [#allocation6], 4
    %v602 = vld [vmem:[%s601] sm:$0x3]
    %603 = vrot.lane.b32.xlu0 %v487, 32
    %v604 = vpop.permute.xlu0 %603
    %v606 = vsel %vm213, %v604, 0
    %608 = vmatprep.subr.bf16.mxu0 0
    %609 = vmatpush1.bf16.msra.mxu0 %v209
    %610 = vmatprep.subr.bf16.mxu0 0
    %611 = vmatpush1.bf16.msra.mxu0 %v210
    %612 = vmatprep.subr.bf16.mxu0 0
    %613 = vmatpush1.bf16.msra.mxu0 0
    %614 = vmatprep.subr.bf16.mxu0 0
    %615 = vmatpush1.bf16.msra.mxu0 0
    %616 = vmatprep.subr.bf16.mxu0 0
    %617 = vmatpush1.bf16.msra.mxu0 0
    %618 = vmatprep.subr.bf16.mxu0 0
    %619 = vmatpush1.bf16.msra.mxu0 0
    %620 = vmatprep.subr.bf16.mxu0 0
    %621 = vmatpush1.bf16.msra.mxu0 0
    %622 = vmatprep.subr.bf16.mxu0 0
    %623 = vmatpush1.bf16.msra.mxu0 0
    %624 = vmatprep.subr.bf16.mxu0 0
    %625 = vmatpush1.bf16.msra.mxu0 0
    %626 = vmatprep.subr.bf16.mxu0 0
    %627 = vmatpush1.bf16.msra.mxu0 0
    %628 = vmatprep.subr.bf16.mxu0 0
    %629 = vmatpush1.bf16.msra.mxu0 0
    %630 = vmatprep.subr.bf16.mxu0 0
    %631 = vmatpush1.bf16.msra.mxu0 0
    %632 = vmatprep.subr.bf16.mxu0 0
    %633 = vmatpush1.bf16.msra.mxu0 0
    %634 = vmatprep.subr.bf16.mxu0 0
    %635 = vmatpush1.bf16.msra.mxu0 0
    %636 = vmatprep.subr.bf16.mxu0 0
    %637 = vmatpush1.bf16.msra.mxu0 0
    %638 = vmatprep.subr.bf16.mxu0 0
    %639 = vmatpush1.bf16.msra.mxu0 0
    %640 = vmatprep.mubr.bf16.mxu0 0
    %641 = vmatmul.mubr.bf16.gmra.mrb[0].mxu0 %v606
    %v642 = vpop.f32.mrb[0].mxu0
    %v643 = vadd.f32 0.0, %v642
    %v644 = vpop.f32.mrb[0].mxu0
    %v645 = vpop.f32.mrb[0].mxu0
    %v646 = vpop.f32.mrb[0].mxu0
    %647 = vdwg.mxu0
    %v648 = vadd.f32 %v602, %v643
    %v649 = vxor.u32 %v648, 2147483648
    %v650 = vmul.f32 %v649, 1.442695
    %v651 = vpow.pop %v650
    %v652 = vadd.f32 %v651, 1.0
    %v653 = vrcp.pop %v652
    %v654 = vmul.f32 1.0, %v653
    %v655 = vtanh.pop %v648
    %v656 = vmul.f32 %v654, %v480
    %658 = vrot.lane.b32.xlu0 %v655, 64
    %v659 = vpop.permute.xlu0 %658
    %v661 = vmul.f32 %v654, %v659
    %663 = vrot.lane.b32.xlu0 %v661, 32
    %v664 = vpop.permute.xlu0 %663
    %v666 = vadd.f32 %v656, %v664
    %v667 = vtanh.pop %v666
    %669 = vrot.lane.b32.xlu0 %v667, 64
    %v670 = vpop.permute.xlu0 %669
    %v672 = vmul.f32 %v654, %v670
    %v673 = vpack.c.bf16 %v672, %v672
    %v676 = vunpack.c.l.s4 1966171168
    %v677 = vunpack.c.0.s8 %v676
    %v678 = vlaneseq
    %v679 = vshrl.u32 %v678, 7
    %v680 = vsub.s32 %v677, %v679
    %v681 = vrot.slane %v673, %v680
    %v683 = vunpack.c.l.s4 1966171168
    %v684 = vunpack.c.0.s8 %v683
    %v685 = vlaneseq
    %v686 = vshrl.u32 %v685, 7
    %v687 = vsub.s32 %v684, %v686
    %v688 = vrot.slane %v681, %v687
    %689 = vrot.lane.b32.xlu0 %v688, 32
    %v690 = vpop.permute.xlu0 %689
    %s692 = scalar_lea.vmem %s4, 2
    %693 = vst.msk [vmem:[%s692] sm:$0x1] %vm305, %v690
    %s694 = scalar_lea.vmem [#allocation7], 10
    %v695 = vld [vmem:[%s694] sm:$0x3]
    %696 = vrot.lane.b32.xlu0 %v580, 32
    %v697 = vpop.permute.xlu0 %696
    %v699 = vsel %vm213, %v697, 0
    %701 = vmatprep.subr.bf16.mxu0 0
    %702 = vmatpush1.bf16.msra.mxu0 %v318
    %703 = vmatprep.subr.bf16.mxu0 0
    %704 = vmatpush1.bf16.msra.mxu0 %v319
    %705 = vmatprep.subr.bf16.mxu0 0
    %706 = vmatpush1.bf16.msra.mxu0 0
    %707 = vmatprep.subr.bf16.mxu0 0
    %708 = vmatpush1.bf16.msra.mxu0 0
    %709 = vmatprep.subr.bf16.mxu0 0
    %710 = vmatpush1.bf16.msra.mxu0 0
    %711 = vmatprep.subr.bf16.mxu0 0
    %712 = vmatpush1.bf16.msra.mxu0 0
    %713 = vmatprep.subr.bf16.mxu0 0
    %714 = vmatpush1.bf16.msra.mxu0 0
    %715 = vmatprep.subr.bf16.mxu0 0
    %716 = vmatpush1.bf16.msra.mxu0 0
    %717 = vmatprep.subr.bf16.mxu0 0
    %718 = vmatpush1.bf16.msra.mxu0 0
    %719 = vmatprep.subr.bf16.mxu0 0
    %720 = vmatpush1.bf16.msra.mxu0 0
    %721 = vmatprep.subr.bf16.mxu0 0
    %722 = vmatpush1.bf16.msra.mxu0 0
    %723 = vmatprep.subr.bf16.mxu0 0
    %724 = vmatpush1.bf16.msra.mxu0 0
    %725 = vmatprep.subr.bf16.mxu0 0
    %726 = vmatpush1.bf16.msra.mxu0 0
    %727 = vmatprep.subr.bf16.mxu0 0
    %728 = vmatpush1.bf16.msra.mxu0 0
    %729 = vmatprep.subr.bf16.mxu0 0
    %730 = vmatpush1.bf16.msra.mxu0 0
    %731 = vmatprep.subr.bf16.mxu0 0
    %732 = vmatpush1.bf16.msra.mxu0 0
    %733 = vmatprep.mubr.bf16.mxu0 0
    %734 = vmatmul.mubr.bf16.gmra.mrb[0].mxu0 %v699
    %v735 = vpop.f32.mrb[0].mxu0
    %v736 = vadd.f32 0.0, %v735
    %v737 = vpop.f32.mrb[0].mxu0
    %v738 = vpop.f32.mrb[0].mxu0
    %v739 = vpop.f32.mrb[0].mxu0
    %740 = vdwg.mxu0
    %v741 = vadd.f32 %v695, %v736
    %v742 = vxor.u32 %v741, 2147483648
    %v743 = vmul.f32 %v742, 1.442695
    %v744 = vpow.pop %v743
    %v745 = vadd.f32 %v744, 1.0
    %v746 = vrcp.pop %v745
    %v747 = vmul.f32 1.0, %v746
    %v748 = vtanh.pop %v741
    %v749 = vmul.f32 %v747, %v573
    %751 = vrot.lane.b32.xlu0 %v748, 64
    %v752 = vpop.permute.xlu0 %751
    %v754 = vmul.f32 %v747, %v752
    %756 = vrot.lane.b32.xlu0 %v754, 32
    %v757 = vpop.permute.xlu0 %756
    %v759 = vadd.f32 %v749, %v757
    %v760 = vtanh.pop %v759
    %762 = vrot.lane.b32.xlu0 %v760, 64
    %v763 = vpop.permute.xlu0 %762
    %v765 = vmul.f32 %v747, %v763
    %v766 = vpack.c.bf16 %v765, %v765
    %v769 = vunpack.c.l.s4 1966171168
    %v770 = vunpack.c.0.s8 %v769
    %v771 = vlaneseq
    %v772 = vshrl.u32 %v771, 7
    %v773 = vsub.s32 %v770, %v772
    %v774 = vrot.slane %v766, %v773
    %v776 = vunpack.c.l.s4 1966171168
    %v777 = vunpack.c.0.s8 %v776
    %v778 = vlaneseq
    %v779 = vshrl.u32 %v778, 7
    %v780 = vsub.s32 %v777, %v779
    %v781 = vrot.slane %v774, %v780
    %782 = vrot.lane.b32.xlu0 %v781, 32
    %v783 = vpop.permute.xlu0 %782
    %s785 = scalar_lea.vmem %s174, 5
    %786 = vst.msk [vmem:[%s785] sm:$0x1] %vm305, %v783
    %s787 = scalar_lea.vmem [#allocation6], 6
    %v788 = vld [vmem:[%s787] sm:$0x3]
    %789 = vrot.lane.b32.xlu0 %v673, 32
    %v790 = vpop.permute.xlu0 %789
    %v792 = vsel %vm213, %v790, 0
    %794 = vmatprep.subr.bf16.mxu0 0
    %795 = vmatpush1.bf16.msra.mxu0 %v209
    %796 = vmatprep.subr.bf16.mxu0 0
    %797 = vmatpush1.bf16.msra.mxu0 %v210
    %798 = vmatprep.subr.bf16.mxu0 0
    %799 = vmatpush1.bf16.msra.mxu0 0
    %800 = vmatprep.subr.bf16.mxu0 0
    %801 = vmatpush1.bf16.msra.mxu0 0
    %802 = vmatprep.subr.bf16.mxu0 0
    %803 = vmatpush1.bf16.msra.mxu0 0
    %804 = vmatprep.subr.bf16.mxu0 0
    %805 = vmatpush1.bf16.msra.mxu0 0
    %806 = vmatprep.subr.bf16.mxu0 0
    %807 = vmatpush1.bf16.msra.mxu0 0
    %808 = vmatprep.subr.bf16.mxu0 0
    %809 = vmatpush1.bf16.msra.mxu0 0
    %810 = vmatprep.subr.bf16.mxu0 0
    %811 = vmatpush1.bf16.msra.mxu0 0
    %812 = vmatprep.subr.bf16.mxu0 0
    %813 = vmatpush1.bf16.msra.mxu0 0
    %814 = vmatprep.subr.bf16.mxu0 0
    %815 = vmatpush1.bf16.msra.mxu0 0
    %816 = vmatprep.subr.bf16.mxu0 0
    %817 = vmatpush1.bf16.msra.mxu0 0
    %818 = vmatprep.subr.bf16.mxu0 0
    %819 = vmatpush1.bf16.msra.mxu0 0
    %820 = vmatprep.subr.bf16.mxu0 0
    %821 = vmatpush1.bf16.msra.mxu0 0
    %822 = vmatprep.subr.bf16.mxu0 0
    %823 = vmatpush1.bf16.msra.mxu0 0
    %824 = vmatprep.subr.bf16.mxu0 0
    %825 = vmatpush1.bf16.msra.mxu0 0
    %826 = vmatprep.mubr.bf16.mxu0 0
    %827 = vmatmul.mubr.bf16.gmra.mrb[0].mxu0 %v792
    %v828 = vpop.f32.mrb[0].mxu0
    %v829 = vadd.f32 0.0, %v828
    %v830 = vpop.f32.mrb[0].mxu0
    %v831 = vpop.f32.mrb[0].mxu0
    %v832 = vpop.f32.mrb[0].mxu0
    %833 = vdwg.mxu0
    %v834 = vadd.f32 %v788, %v829
    %v835 = vxor.u32 %v834, 2147483648
    %v836 = vmul.f32 %v835, 1.442695
    %v837 = vpow.pop %v836
    %v838 = vadd.f32 %v837, 1.0
    %v839 = vrcp.pop %v838
    %v840 = vmul.f32 1.0, %v839
    %v841 = vtanh.pop %v834
    %v842 = vmul.f32 %v840, %v666
    %844 = vrot.lane.b32.xlu0 %v841, 64
    %v845 = vpop.permute.xlu0 %844
    %v847 = vmul.f32 %v840, %v845
    %849 = vrot.lane.b32.xlu0 %v847, 32
    %v850 = vpop.permute.xlu0 %849
    %v852 = vadd.f32 %v842, %v850
    %v853 = vtanh.pop %v852
    %855 = vrot.lane.b32.xlu0 %v853, 64
    %v856 = vpop.permute.xlu0 %855
    %v858 = vmul.f32 %v840, %v856
    %v859 = vpack.c.bf16 %v858, %v858
    %v862 = vunpack.c.l.s4 1966171168
    %v863 = vunpack.c.0.s8 %v862
    %v864 = vlaneseq
    %v865 = vshrl.u32 %v864, 7
    %v866 = vsub.s32 %v863, %v865
    %v867 = vrot.slane %v859, %v866
    %v869 = vunpack.c.l.s4 1966171168
    %v870 = vunpack.c.0.s8 %v869
    %v871 = vlaneseq
    %v872 = vshrl.u32 %v871, 7
    %v873 = vsub.s32 %v870, %v872
    %v874 = vrot.slane %v867, %v873
    %875 = vrot.lane.b32.xlu0 %v874, 32
    %v876 = vpop.permute.xlu0 %875
    %s878 = scalar_lea.vmem %s4, 3
    %879 = vst.msk [vmem:[%s878] sm:$0x1] %vm305, %v876
    %s880 = scalar_lea.vmem [#allocation7], 8
    %v881 = vld [vmem:[%s880] sm:$0x3]
    %882 = vrot.lane.b32.xlu0 %v766, 32
    %v883 = vpop.permute.xlu0 %882
    %v885 = vsel %vm213, %v883, 0
    %887 = vmatprep.subr.bf16.mxu0 0
    %888 = vmatpush1.bf16.msra.mxu0 %v318
    %889 = vmatprep.subr.bf16.mxu0 0
    %890 = vmatpush1.bf16.msra.mxu0 %v319
    %891 = vmatprep.subr.bf16.mxu0 0
    %892 = vmatpush1.bf16.msra.mxu0 0
    %893 = vmatprep.subr.bf16.mxu0 0
    %894 = vmatpush1.bf16.msra.mxu0 0
    %895 = vmatprep.subr.bf16.mxu0 0
    %896 = vmatpush1.bf16.msra.mxu0 0
    %897 = vmatprep.subr.bf16.mxu0 0
    %898 = vmatpush1.bf16.msra.mxu0 0
    %899 = vmatprep.subr.bf16.mxu0 0
    %900 = vmatpush1.bf16.msra.mxu0 0
    %901 = vmatprep.subr.bf16.mxu0 0
    %902 = vmatpush1.bf16.msra.mxu0 0
    %903 = vmatprep.subr.bf16.mxu0 0
    %904 = vmatpush1.bf16.msra.mxu0 0
    %905 = vmatprep.subr.bf16.mxu0 0
    %906 = vmatpush1.bf16.msra.mxu0 0
    %907 = vmatprep.subr.bf16.mxu0 0
    %908 = vmatpush1.bf16.msra.mxu0 0
    %909 = vmatprep.subr.bf16.mxu0 0
    %910 = vmatpush1.bf16.msra.mxu0 0
    %911 = vmatprep.subr.bf16.mxu0 0
    %912 = vmatpush1.bf16.msra.mxu0 0
    %913 = vmatprep.subr.bf16.mxu0 0
    %914 = vmatpush1.bf16.msra.mxu0 0
    %915 = vmatprep.subr.bf16.mxu0 0
    %916 = vmatpush1.bf16.msra.mxu0 0
    %917 = vmatprep.subr.bf16.mxu0 0
    %918 = vmatpush1.bf16.msra.mxu0 0
    %919 = vmatprep.mubr.bf16.mxu0 0
    %920 = vmatmul.mubr.bf16.gmra.mrb[0].mxu0 %v885
    %v921 = vpop.f32.mrb[0].mxu0
    %v922 = vadd.f32 0.0, %v921
    %v923 = vpop.f32.mrb[0].mxu0
    %v924 = vpop.f32.mrb[0].mxu0
    %v925 = vpop.f32.mrb[0].mxu0
    %926 = vdwg.mxu0
    %v927 = vadd.f32 %v881, %v922
    %v928 = vxor.u32 %v927, 2147483648
    %v929 = vmul.f32 %v928, 1.442695
    %v930 = vpow.pop %v929
    %v931 = vadd.f32 %v930, 1.0
    %v932 = vrcp.pop %v931
    %v933 = vmul.f32 1.0, %v932
    %v934 = vtanh.pop %v927
    %v935 = vmul.f32 %v933, %v759
    %937 = vrot.lane.b32.xlu0 %v934, 64
    %v938 = vpop.permute.xlu0 %937
    %v940 = vmul.f32 %v933, %v938
    %942 = vrot.lane.b32.xlu0 %v940, 32
    %v943 = vpop.permute.xlu0 %942
    %v945 = vadd.f32 %v935, %v943
    %v946 = vtanh.pop %v945
    %948 = vrot.lane.b32.xlu0 %v946, 64
    %v949 = vpop.permute.xlu0 %948
    %v951 = vmul.f32 %v933, %v949
    %v952 = vpack.c.bf16 %v951, %v951
    %v955 = vunpack.c.l.s4 1966171168
    %v956 = vunpack.c.0.s8 %v955
    %v957 = vlaneseq
    %v958 = vshrl.u32 %v957, 7
    %v959 = vsub.s32 %v956, %v958
    %v960 = vrot.slane %v952, %v959
    %v962 = vunpack.c.l.s4 1966171168
    %v963 = vunpack.c.0.s8 %v962
    %v964 = vlaneseq
    %v965 = vshrl.u32 %v964, 7
    %v966 = vsub.s32 %v963, %v965
    %v967 = vrot.slane %v960, %v966
    %968 = vrot.lane.b32.xlu0 %v967, 32
    %v969 = vpop.permute.xlu0 %968
    %s971 = scalar_lea.vmem %s174, 4
    %972 = vst.msk [vmem:[%s971] sm:$0x1] %vm305, %v969
    %s973 = scalar_lea.vmem [#allocation6], 8
    %v974 = vld [vmem:[%s973] sm:$0x3]
    %975 = vrot.lane.b32.xlu0 %v859, 32
    %v976 = vpop.permute.xlu0 %975
    %v978 = vsel %vm213, %v976, 0
    %980 = vmatprep.subr.bf16.mxu0 0
    %981 = vmatpush1.bf16.msra.mxu0 %v209
    %982 = vmatprep.subr.bf16.mxu0 0
    %983 = vmatpush1.bf16.msra.mxu0 %v210
    %984 = vmatprep.subr.bf16.mxu0 0
    %985 = vmatpush1.bf16.msra.mxu0 0
    %986 = vmatprep.subr.bf16.mxu0 0
    %987 = vmatpush1.bf16.msra.mxu0 0
    %988 = vmatprep.subr.bf16.mxu0 0
    %989 = vmatpush1.bf16.msra.mxu0 0
    %990 = vmatprep.subr.bf16.mxu0 0
    %991 = vmatpush1.bf16.msra.mxu0 0
    %992 = vmatprep.subr.bf16.mxu0 0
    %993 = vmatpush1.bf16.msra.mxu0 0
    %994 = vmatprep.subr.bf16.mxu0 0
    %995 = vmatpush1.bf16.msra.mxu0 0
    %996 = vmatprep.subr.bf16.mxu0 0
    %997 = vmatpush1.bf16.msra.mxu0 0
    %998 = vmatprep.subr.bf16.mxu0 0
    %999 = vmatpush1.bf16.msra.mxu0 0
    %1000 = vmatprep.subr.bf16.mxu0 0
    %1001 = vmatpush1.bf16.msra.mxu0 0
    %1002 = vmatprep.subr.bf16.mxu0 0
    %1003 = vmatpush1.bf16.msra.mxu0 0
    %1004 = vmatprep.subr.bf16.mxu0 0
    %1005 = vmatpush1.bf16.msra.mxu0 0
    %1006 = vmatprep.subr.bf16.mxu0 0
    %1007 = vmatpush1.bf16.msra.mxu0 0
    %1008 = vmatprep.subr.bf16.mxu0 0
    %1009 = vmatpush1.bf16.msra.mxu0 0
    %1010 = vmatprep.subr.bf16.mxu0 0
    %1011 = vmatpush1.bf16.msra.mxu0 0
    %1012 = vmatprep.mubr.bf16.mxu0 0
    %1013 = vmatmul.mubr.bf16.gmra.mrb[0].mxu0 %v978
    %v1014 = vpop.f32.mrb[0].mxu0
    %v1015 = vadd.f32 0.0, %v1014
    %v1016 = vpop.f32.mrb[0].mxu0
    %v1017 = vpop.f32.mrb[0].mxu0
    %v1018 = vpop.f32.mrb[0].mxu0
    %1019 = vdwg.mxu0
    %v1020 = vadd.f32 %v974, %v1015
    %v1021 = vxor.u32 %v1020, 2147483648
    %v1022 = vmul.f32 %v1021, 1.442695
    %v1023 = vpow.pop %v1022
    %v1024 = vadd.f32 %v1023, 1.0
    %v1025 = vrcp.pop %v1024
    %v1026 = vmul.f32 1.0, %v1025
    %v1027 = vtanh.pop %v1020
    %v1028 = vmul.f32 %v1026, %v852
    %1030 = vrot.lane.b32.xlu0 %v1027, 64
    %v1031 = vpop.permute.xlu0 %1030
    %v1033 = vmul.f32 %v1026, %v1031
    %1035 = vrot.lane.b32.xlu0 %v1033, 32
    %v1036 = vpop.permute.xlu0 %1035
    %v1038 = vadd.f32 %v1028, %v1036
    %v1039 = vtanh.pop %v1038
    %1041 = vrot.lane.b32.xlu0 %v1039, 64
    %v1042 = vpop.permute.xlu0 %1041
    %v1044 = vmul.f32 %v1026, %v1042
    %v1045 = vpack.c.bf16 %v1044, %v1044
    %v1048 = vunpack.c.l.s4 1966171168
    %v1049 = vunpack.c.0.s8 %v1048
    %v1050 = vlaneseq
    %v1051 = vshrl.u32 %v1050, 7
    %v1052 = vsub.s32 %v1049, %v1051
    %v1053 = vrot.slane %v1045, %v1052
    %v1055 = vunpack.c.l.s4 1966171168
    %v1056 = vunpack.c.0.s8 %v1055
    %v1057 = vlaneseq
    %v1058 = vshrl.u32 %v1057, 7
    %v1059 = vsub.s32 %v1056, %v1058
    %v1060 = vrot.slane %v1053, %v1059
    %1061 = vrot.lane.b32.xlu0 %v1060, 32
    %v1062 = vpop.permute.xlu0 %1061
    %s1064 = scalar_lea.vmem %s4, 4
    %1065 = vst.msk [vmem:[%s1064] sm:$0x1] %vm305, %v1062
    %s1066 = scalar_lea.vmem [#allocation7], 6
    %v1067 = vld [vmem:[%s1066] sm:$0x3]
    %1068 = vrot.lane.b32.xlu0 %v952, 32
    %v1069 = vpop.permute.xlu0 %1068
    %v1071 = vsel %vm213, %v1069, 0
    %1073 = vmatprep.subr.bf16.mxu0 0
    %1074 = vmatpush1.bf16.msra.mxu0 %v318
    %1075 = vmatprep.subr.bf16.mxu0 0
    %1076 = vmatpush1.bf16.msra.mxu0 %v319
    %1077 = vmatprep.subr.bf16.mxu0 0
    %1078 = vmatpush1.bf16.msra.mxu0 0
    %1079 = vmatprep.subr.bf16.mxu0 0
    %1080 = vmatpush1.bf16.msra.mxu0 0
    %1081 = vmatprep.subr.bf16.mxu0 0
    %1082 = vmatpush1.bf16.msra.mxu0 0
    %1083 = vmatprep.subr.bf16.mxu0 0
    %1084 = vmatpush1.bf16.msra.mxu0 0
    %1085 = vmatprep.subr.bf16.mxu0 0
    %1086 = vmatpush1.bf16.msra.mxu0 0
    %1087 = vmatprep.subr.bf16.mxu0 0
    %1088 = vmatpush1.bf16.msra.mxu0 0
    %1089 = vmatprep.subr.bf16.mxu0 0
    %1090 = vmatpush1.bf16.msra.mxu0 0
    %1091 = vmatprep.subr.bf16.mxu0 0
    %1092 = vmatpush1.bf16.msra.mxu0 0
    %1093 = vmatprep.subr.bf16.mxu0 0
    %1094 = vmatpush1.bf16.msra.mxu0 0
    %1095 = vmatprep.subr.bf16.mxu0 0
    %1096 = vmatpush1.bf16.msra.mxu0 0
    %1097 = vmatprep.subr.bf16.mxu0 0
    %1098 = vmatpush1.bf16.msra.mxu0 0
    %1099 = vmatprep.subr.bf16.mxu0 0
    %1100 = vmatpush1.bf16.msra.mxu0 0
    %1101 = vmatprep.subr.bf16.mxu0 0
    %1102 = vmatpush1.bf16.msra.mxu0 0
    %1103 = vmatprep.subr.bf16.mxu0 0
    %1104 = vmatpush1.bf16.msra.mxu0 0
    %1105 = vmatprep.mubr.bf16.mxu0 0
    %1106 = vmatmul.mubr.bf16.gmra.mrb[0].mxu0 %v1071
    %v1107 = vpop.f32.mrb[0].mxu0
    %v1108 = vadd.f32 0.0, %v1107
    %v1109 = vpop.f32.mrb[0].mxu0
    %v1110 = vpop.f32.mrb[0].mxu0
    %v1111 = vpop.f32.mrb[0].mxu0
    %1112 = vdwg.mxu0
    %v1113 = vadd.f32 %v1067, %v1108
    %v1114 = vxor.u32 %v1113, 2147483648
    %v1115 = vmul.f32 %v1114, 1.442695
    %v1116 = vpow.pop %v1115
    %v1117 = vadd.f32 %v1116, 1.0
    %v1118 = vrcp.pop %v1117
    %v1119 = vmul.f32 1.0, %v1118
    %v1120 = vtanh.pop %v1113
    %v1121 = vmul.f32 %v1119, %v945
    %1123 = vrot.lane.b32.xlu0 %v1120, 64
    %v1124 = vpop.permute.xlu0 %1123
    %v1126 = vmul.f32 %v1119, %v1124
    %1128 = vrot.lane.b32.xlu0 %v1126, 32
    %v1129 = vpop.permute.xlu0 %1128
    %v1131 = vadd.f32 %v1121, %v1129
    %v1132 = vtanh.pop %v1131
    %1134 = vrot.lane.b32.xlu0 %v1132, 64
    %v1135 = vpop.permute.xlu0 %1134
    %v1137 = vmul.f32 %v1119, %v1135
    %v1138 = vpack.c.bf16 %v1137, %v1137
    %v1141 = vunpack.c.l.s4 1966171168
    %v1142 = vunpack.c.0.s8 %v1141
    %v1143 = vlaneseq
    %v1144 = vshrl.u32 %v1143, 7
    %v1145 = vsub.s32 %v1142, %v1144
    %v1146 = vrot.slane %v1138, %v1145
    %v1148 = vunpack.c.l.s4 1966171168
    %v1149 = vunpack.c.0.s8 %v1148
    %v1150 = vlaneseq
    %v1151 = vshrl.u32 %v1150, 7
    %v1152 = vsub.s32 %v1149, %v1151
    %v1153 = vrot.slane %v1146, %v1152
    %1154 = vrot.lane.b32.xlu0 %v1153, 32
    %v1155 = vpop.permute.xlu0 %1154
    %s1157 = scalar_lea.vmem %s174, 3
    %1158 = vst.msk [vmem:[%s1157] sm:$0x1] %vm305, %v1155
    %s1159 = scalar_lea.vmem [#allocation6], 10
    %v1160 = vld [vmem:[%s1159] sm:$0x3]
    %1161 = vrot.lane.b32.xlu0 %v1045, 32
    %v1162 = vpop.permute.xlu0 %1161
    %v1164 = vsel %vm213, %v1162, 0
    %1166 = vmatprep.subr.bf16.mxu0 0
    %1167 = vmatpush1.bf16.msra.mxu0 %v209
    %1168 = vmatprep.subr.bf16.mxu0 0
    %1169 = vmatpush1.bf16.msra.mxu0 %v210
    %1170 = vmatprep.subr.bf16.mxu0 0
    %1171 = vmatpush1.bf16.msra.mxu0 0
    %1172 = vmatprep.subr.bf16.mxu0 0
    %1173 = vmatpush1.bf16.msra.mxu0 0
    %1174 = vmatprep.subr.bf16.mxu0 0
    %1175 = vmatpush1.bf16.msra.mxu0 0
    %1176 = vmatprep.subr.bf16.mxu0 0
    %1177 = vmatpush1.bf16.msra.mxu0 0
    %1178 = vmatprep.subr.bf16.mxu0 0
    %1179 = vmatpush1.bf16.msra.mxu0 0
    %1180 = vmatprep.subr.bf16.mxu0 0
    %1181 = vmatpush1.bf16.msra.mxu0 0
    %1182 = vmatprep.subr.bf16.mxu0 0
    %1183 = vmatpush1.bf16.msra.mxu0 0
    %1184 = vmatprep.subr.bf16.mxu0 0
    %1185 = vmatpush1.bf16.msra.mxu0 0
    %1186 = vmatprep.subr.bf16.mxu0 0
    %1187 = vmatpush1.bf16.msra.mxu0 0
    %1188 = vmatprep.subr.bf16.mxu0 0
    %1189 = vmatpush1.bf16.msra.mxu0 0
    %1190 = vmatprep.subr.bf16.mxu0 0
    %1191 = vmatpush1.bf16.msra.mxu0 0
    %1192 = vmatprep.subr.bf16.mxu0 0
    %1193 = vmatpush1.bf16.msra.mxu0 0
    %1194 = vmatprep.subr.bf16.mxu0 0
    %1195 = vmatpush1.bf16.msra.mxu0 0
    %1196 = vmatprep.subr.bf16.mxu0 0
    %1197 = vmatpush1.bf16.msra.mxu0 0
    %1198 = vmatprep.mubr.bf16.mxu0 0
    %1199 = vmatmul.mubr.bf16.gmra.mrb[0].mxu0 %v1164
    %v1200 = vpop.f32.mrb[0].mxu0
    %v1201 = vadd.f32 0.0, %v1200
    %v1202 = vpop.f32.mrb[0].mxu0
    %v1203 = vpop.f32.mrb[0].mxu0
    %v1204 = vpop.f32.mrb[0].mxu0
    %1205 = vdwg.mxu0
    %v1206 = vadd.f32 %v1160, %v1201
    %v1207 = vxor.u32 %v1206, 2147483648
    %v1208 = vmul.f32 %v1207, 1.442695
    %v1209 = vpow.pop %v1208
    %v1210 = vadd.f32 %v1209, 1.0
    %v1211 = vrcp.pop %v1210
    %v1212 = vmul.f32 1.0, %v1211
    %v1213 = vtanh.pop %v1206
    %v1214 = vmul.f32 %v1212, %v1038
    %1216 = vrot.lane.b32.xlu0 %v1213, 64
    %v1217 = vpop.permute.xlu0 %1216
    %v1219 = vmul.f32 %v1212, %v1217
    %1221 = vrot.lane.b32.xlu0 %v1219, 32
    %v1222 = vpop.permute.xlu0 %1221
    %v1224 = vadd.f32 %v1214, %v1222
    %v1225 = vtanh.pop %v1224
    %1227 = vrot.lane.b32.xlu0 %v1225, 64
    %v1228 = vpop.permute.xlu0 %1227
    %v1230 = vmul.f32 %v1212, %v1228
    %v1231 = vpack.c.bf16 %v1230, %v1230
    %v1234 = vunpack.c.l.s4 1966171168
    %v1235 = vunpack.c.0.s8 %v1234
    %v1236 = vlaneseq
    %v1237 = vshrl.u32 %v1236, 7
    %v1238 = vsub.s32 %v1235, %v1237
    %v1239 = vrot.slane %v1231, %v1238
    %v1241 = vunpack.c.l.s4 1966171168
    %v1242 = vunpack.c.0.s8 %v1241
    %v1243 = vlaneseq
    %v1244 = vshrl.u32 %v1243, 7
    %v1245 = vsub.s32 %v1242, %v1244
    %v1246 = vrot.slane %v1239, %v1245
    %1247 = vrot.lane.b32.xlu0 %v1246, 32
    %v1248 = vpop.permute.xlu0 %1247
    %s1250 = scalar_lea.vmem %s4, 5
    %1251 = vst.msk [vmem:[%s1250] sm:$0x1] %vm305, %v1248
    %s1252 = scalar_lea.vmem [#allocation7], 4
    %v1253 = vld [vmem:[%s1252] sm:$0x3]
    %1254 = vrot.lane.b32.xlu0 %v1138, 32
    %v1255 = vpop.permute.xlu0 %1254
    %v1257 = vsel %vm213, %v1255, 0
    %1259 = vmatprep.subr.bf16.mxu0 0
    %1260 = vmatpush1.bf16.msra.mxu0 %v318
    %1261 = vmatprep.subr.bf16.mxu0 0
    %1262 = vmatpush1.bf16.msra.mxu0 %v319
    %1263 = vmatprep.subr.bf16.mxu0 0
    %1264 = vmatpush1.bf16.msra.mxu0 0
    %1265 = vmatprep.subr.bf16.mxu0 0
    %1266 = vmatpush1.bf16.msra.mxu0 0
    %1267 = vmatprep.subr.bf16.mxu0 0
    %1268 = vmatpush1.bf16.msra.mxu0 0
    %1269 = vmatprep.subr.bf16.mxu0 0
    %1270 = vmatpush1.bf16.msra.mxu0 0
    %1271 = vmatprep.subr.bf16.mxu0 0
    %1272 = vmatpush1.bf16.msra.mxu0 0
    %1273 = vmatprep.subr.bf16.mxu0 0
    %1274 = vmatpush1.bf16.msra.mxu0 0
    %1275 = vmatprep.subr.bf16.mxu0 0
    %1276 = vmatpush1.bf16.msra.mxu0 0
    %1277 = vmatprep.subr.bf16.mxu0 0
    %1278 = vmatpush1.bf16.msra.mxu0 0
    %1279 = vmatprep.subr.bf16.mxu0 0
    %1280 = vmatpush1.bf16.msra.mxu0 0
    %1281 = vmatprep.subr.bf16.mxu0 0
    %1282 = vmatpush1.bf16.msra.mxu0 0
    %1283 = vmatprep.subr.bf16.mxu0 0
    %1284 = vmatpush1.bf16.msra.mxu0 0
    %1285 = vmatprep.subr.bf16.mxu0 0
    %1286 = vmatpush1.bf16.msra.mxu0 0
    %1287 = vmatprep.subr.bf16.mxu0 0
    %1288 = vmatpush1.bf16.msra.mxu0 0
    %1289 = vmatprep.subr.bf16.mxu0 0
    %1290 = vmatpush1.bf16.msra.mxu0 0
    %1291 = vmatprep.mubr.bf16.mxu0 0
    %1292 = vmatmul.mubr.bf16.gmra.mrb[0].mxu0 %v1257
    %v1293 = vpop.f32.mrb[0].mxu0
    %v1294 = vadd.f32 0.0, %v1293
    %v1295 = vpop.f32.mrb[0].mxu0
    %v1296 = vpop.f32.mrb[0].mxu0
    %v1297 = vpop.f32.mrb[0].mxu0
    %1298 = vdwg.mxu0
    %v1299 = vadd.f32 %v1253, %v1294
    %v1300 = vxor.u32 %v1299, 2147483648
    %v1301 = vmul.f32 %v1300, 1.442695
    %v1302 = vpow.pop %v1301
    %v1303 = vadd.f32 %v1302, 1.0
    %v1304 = vrcp.pop %v1303
    %v1305 = vmul.f32 1.0, %v1304
    %v1306 = vtanh.pop %v1299
    %v1307 = vmul.f32 %v1305, %v1131
    %1309 = vrot.lane.b32.xlu0 %v1306, 64
    %v1310 = vpop.permute.xlu0 %1309
    %v1312 = vmul.f32 %v1305, %v1310
    %1314 = vrot.lane.b32.xlu0 %v1312, 32
    %v1315 = vpop.permute.xlu0 %1314
    %v1317 = vadd.f32 %v1307, %v1315
    %v1318 = vtanh.pop %v1317
    %1320 = vrot.lane.b32.xlu0 %v1318, 64
    %v1321 = vpop.permute.xlu0 %1320
    %v1323 = vmul.f32 %v1305, %v1321
    %v1324 = vpack.c.bf16 %v1323, %v1323
    %v1327 = vunpack.c.l.s4 1966171168
    %v1328 = vunpack.c.0.s8 %v1327
    %v1329 = vlaneseq
    %v1330 = vshrl.u32 %v1329, 7
    %v1331 = vsub.s32 %v1328, %v1330
    %v1332 = vrot.slane %v1324, %v1331
    %v1334 = vunpack.c.l.s4 1966171168
    %v1335 = vunpack.c.0.s8 %v1334
    %v1336 = vlaneseq
    %v1337 = vshrl.u32 %v1336, 7
    %v1338 = vsub.s32 %v1335, %v1337
    %v1339 = vrot.slane %v1332, %v1338
    %1340 = vrot.lane.b32.xlu0 %v1339, 32
    %v1341 = vpop.permute.xlu0 %1340
    %s1343 = scalar_lea.vmem %s174, 2
    %1344 = vst.msk [vmem:[%s1343] sm:$0x1] %vm305, %v1341
    %s1345 = scalar_lea.vmem [#allocation6], 12
    %v1346 = vld [vmem:[%s1345] sm:$0x3]
    %1347 = vrot.lane.b32.xlu0 %v1231, 32
    %v1348 = vpop.permute.xlu0 %1347
    %v1350 = vsel %vm213, %v1348, 0
    %1352 = vmatprep.subr.bf16.mxu0 0
    %1353 = vmatpush1.bf16.msra.mxu0 %v209
    %1354 = vmatprep.subr.bf16.mxu0 0
    %1355 = vmatpush1.bf16.msra.mxu0 %v210
    %1356 = vmatprep.subr.bf16.mxu0 0
    %1357 = vmatpush1.bf16.msra.mxu0 0
    %1358 = vmatprep.subr.bf16.mxu0 0
    %1359 = vmatpush1.bf16.msra.mxu0 0
    %1360 = vmatprep.subr.bf16.mxu0 0
    %1361 = vmatpush1.bf16.msra.mxu0 0
    %1362 = vmatprep.subr.bf16.mxu0 0
    %1363 = vmatpush1.bf16.msra.mxu0 0
    %1364 = vmatprep.subr.bf16.mxu0 0
    %1365 = vmatpush1.bf16.msra.mxu0 0
    %1366 = vmatprep.subr.bf16.mxu0 0
    %1367 = vmatpush1.bf16.msra.mxu0 0
    %1368 = vmatprep.subr.bf16.mxu0 0
    %1369 = vmatpush1.bf16.msra.mxu0 0
    %1370 = vmatprep.subr.bf16.mxu0 0
    %1371 = vmatpush1.bf16.msra.mxu0 0
    %1372 = vmatprep.subr.bf16.mxu0 0
    %1373 = vmatpush1.bf16.msra.mxu0 0
    %1374 = vmatprep.subr.bf16.mxu0 0
    %1375 = vmatpush1.bf16.msra.mxu0 0
    %1376 = vmatprep.subr.bf16.mxu0 0
    %1377 = vmatpush1.bf16.msra.mxu0 0
    %1378 = vmatprep.subr.bf16.mxu0 0
    %1379 = vmatpush1.bf16.msra.mxu0 0
    %1380 = vmatprep.subr.bf16.mxu0 0
    %1381 = vmatpush1.bf16.msra.mxu0 0
    %1382 = vmatprep.subr.bf16.mxu0 0
    %1383 = vmatpush1.bf16.msra.mxu0 0
    %1384 = vmatprep.mubr.bf16.mxu0 0
    %1385 = vmatmul.mubr.bf16.gmra.mrb[0].mxu0 %v1350
    %v1386 = vpop.f32.mrb[0].mxu0
    %v1387 = vadd.f32 0.0, %v1386
    %v1388 = vpop.f32.mrb[0].mxu0
    %v1389 = vpop.f32.mrb[0].mxu0
    %v1390 = vpop.f32.mrb[0].mxu0
    %1391 = vdwg.mxu0
    %v1392 = vadd.f32 %v1346, %v1387
    %v1393 = vxor.u32 %v1392, 2147483648
    %v1394 = vmul.f32 %v1393, 1.442695
    %v1395 = vpow.pop %v1394
    %v1396 = vadd.f32 %v1395, 1.0
    %v1397 = vrcp.pop %v1396
    %v1398 = vmul.f32 1.0, %v1397
    %v1399 = vtanh.pop %v1392
    %v1400 = vmul.f32 %v1398, %v1224
    %1402 = vrot.lane.b32.xlu0 %v1399, 64
    %v1403 = vpop.permute.xlu0 %1402
    %v1405 = vmul.f32 %v1398, %v1403
    %1407 = vrot.lane.b32.xlu0 %v1405, 32
    %v1408 = vpop.permute.xlu0 %1407
    %v1410 = vadd.f32 %v1400, %v1408
    %v1411 = vtanh.pop %v1410
    %1413 = vrot.lane.b32.xlu0 %v1411, 64
    %v1414 = vpop.permute.xlu0 %1413
    %v1416 = vmul.f32 %v1398, %v1414
    %v1417 = vpack.c.bf16 %v1416, %v1416
    %v1420 = vunpack.c.l.s4 1966171168
    %v1421 = vunpack.c.0.s8 %v1420
    %v1422 = vlaneseq
    %v1423 = vshrl.u32 %v1422, 7
    %v1424 = vsub.s32 %v1421, %v1423
    %v1425 = vrot.slane %v1417, %v1424
    %v1427 = vunpack.c.l.s4 1966171168
    %v1428 = vunpack.c.0.s8 %v1427
    %v1429 = vlaneseq
    %v1430 = vshrl.u32 %v1429, 7
    %v1431 = vsub.s32 %v1428, %v1430
    %v1432 = vrot.slane %v1425, %v1431
    %1433 = vrot.lane.b32.xlu0 %v1432, 32
    %v1434 = vpop.permute.xlu0 %1433
    %s1436 = scalar_lea.vmem %s4, 6
    %1437 = vst.msk [vmem:[%s1436] sm:$0x1] %vm305, %v1434
    %s1438 = scalar_lea.vmem [#allocation7], 2
    %v1439 = vld [vmem:[%s1438] sm:$0x3]
    %1440 = vrot.lane.b32.xlu0 %v1324, 32
    %v1441 = vpop.permute.xlu0 %1440
    %v1443 = vsel %vm213, %v1441, 0
    %1445 = vmatprep.subr.bf16.mxu0 0
    %1446 = vmatpush1.bf16.msra.mxu0 %v318
    %1447 = vmatprep.subr.bf16.mxu0 0
    %1448 = vmatpush1.bf16.msra.mxu0 %v319
    %1449 = vmatprep.subr.bf16.mxu0 0
    %1450 = vmatpush1.bf16.msra.mxu0 0
    %1451 = vmatprep.subr.bf16.mxu0 0
    %1452 = vmatpush1.bf16.msra.mxu0 0
    %1453 = vmatprep.subr.bf16.mxu0 0
    %1454 = vmatpush1.bf16.msra.mxu0 0
    %1455 = vmatprep.subr.bf16.mxu0 0
    %1456 = vmatpush1.bf16.msra.mxu0 0
    %1457 = vmatprep.subr.bf16.mxu0 0
    %1458 = vmatpush1.bf16.msra.mxu0 0
    %1459 = vmatprep.subr.bf16.mxu0 0
    %1460 = vmatpush1.bf16.msra.mxu0 0
    %1461 = vmatprep.subr.bf16.mxu0 0
    %1462 = vmatpush1.bf16.msra.mxu0 0
    %1463 = vmatprep.subr.bf16.mxu0 0
    %1464 = vmatpush1.bf16.msra.mxu0 0
    %1465 = vmatprep.subr.bf16.mxu0 0
    %1466 = vmatpush1.bf16.msra.mxu0 0
    %1467 = vmatprep.subr.bf16.mxu0 0
    %1468 = vmatpush1.bf16.msra.mxu0 0
    %1469 = vmatprep.subr.bf16.mxu0 0
    %1470 = vmatpush1.bf16.msra.mxu0 0
    %1471 = vmatprep.subr.bf16.mxu0 0
    %1472 = vmatpush1.bf16.msra.mxu0 0
    %1473 = vmatprep.subr.bf16.mxu0 0
    %1474 = vmatpush1.bf16.msra.mxu0 0
    %1475 = vmatprep.subr.bf16.mxu0 0
    %1476 = vmatpush1.bf16.msra.mxu0 0
    %1477 = vmatprep.mubr.bf16.mxu0 0
    %1478 = vmatmul.mubr.bf16.gmra.mrb[0].mxu0 %v1443
    %v1479 = vpop.f32.mrb[0].mxu0
    %v1480 = vadd.f32 0.0, %v1479
    %v1481 = vpop.f32.mrb[0].mxu0
    %v1482 = vpop.f32.mrb[0].mxu0
    %v1483 = vpop.f32.mrb[0].mxu0
    %1484 = vdwg.mxu0
    %v1485 = vadd.f32 %v1439, %v1480
    %v1486 = vxor.u32 %v1485, 2147483648
    %v1487 = vmul.f32 %v1486, 1.442695
    %v1488 = vpow.pop %v1487
    %v1489 = vadd.f32 %v1488, 1.0
    %v1490 = vrcp.pop %v1489
    %v1491 = vmul.f32 1.0, %v1490
    %v1492 = vtanh.pop %v1485
    %v1493 = vmul.f32 %v1491, %v1317
    %1495 = vrot.lane.b32.xlu0 %v1492, 64
    %v1496 = vpop.permute.xlu0 %1495
    %v1498 = vmul.f32 %v1491, %v1496
    %1500 = vrot.lane.b32.xlu0 %v1498, 32
    %v1501 = vpop.permute.xlu0 %1500
    %v1503 = vadd.f32 %v1493, %v1501
    %v1504 = vtanh.pop %v1503
    %1506 = vrot.lane.b32.xlu0 %v1504, 64
    %v1507 = vpop.permute.xlu0 %1506
    %v1509 = vmul.f32 %v1491, %v1507
    %v1510 = vpack.c.bf16 %v1509, %v1509
    %v1513 = vunpack.c.l.s4 1966171168
    %v1514 = vunpack.c.0.s8 %v1513
    %v1515 = vlaneseq
    %v1516 = vshrl.u32 %v1515, 7
    %v1517 = vsub.s32 %v1514, %v1516
    %v1518 = vrot.slane %v1510, %v1517
    %v1520 = vunpack.c.l.s4 1966171168
    %v1521 = vunpack.c.0.s8 %v1520
    %v1522 = vlaneseq
    %v1523 = vshrl.u32 %v1522, 7
    %v1524 = vsub.s32 %v1521, %v1523
    %v1525 = vrot.slane %v1518, %v1524
    %1526 = vrot.lane.b32.xlu0 %v1525, 32
    %v1527 = vpop.permute.xlu0 %1526
    %s1529 = scalar_lea.vmem %s174, 1
    %1530 = vst.msk [vmem:[%s1529] sm:$0x1] %vm305, %v1527
    %s1531 = scalar_lea.vmem [#allocation6], 14
    %v1532 = vld [vmem:[%s1531] sm:$0x3]
    %1533 = vrot.lane.b32.xlu0 %v1417, 32
    %v1534 = vpop.permute.xlu0 %1533
    %v1536 = vsel %vm213, %v1534, 0
    %1538 = vmatprep.subr.bf16.mxu0 0
    %1539 = vmatpush1.bf16.msra.mxu0 %v209
    %1540 = vmatprep.subr.bf16.mxu0 0
    %1541 = vmatpush1.bf16.msra.mxu0 %v210
    %1542 = vmatprep.subr.bf16.mxu0 0
    %1543 = vmatpush1.bf16.msra.mxu0 0
    %1544 = vmatprep.subr.bf16.mxu0 0
    %1545 = vmatpush1.bf16.msra.mxu0 0
    %1546 = vmatprep.subr.bf16.mxu0 0
    %1547 = vmatpush1.bf16.msra.mxu0 0
    %1548 = vmatprep.subr.bf16.mxu0 0
    %1549 = vmatpush1.bf16.msra.mxu0 0
    %1550 = vmatprep.subr.bf16.mxu0 0
    %1551 = vmatpush1.bf16.msra.mxu0 0
    %1552 = vmatprep.subr.bf16.mxu0 0
    %1553 = vmatpush1.bf16.msra.mxu0 0
    %1554 = vmatprep.subr.bf16.mxu0 0
    %1555 = vmatpush1.bf16.msra.mxu0 0
    %1556 = vmatprep.subr.bf16.mxu0 0
    %1557 = vmatpush1.bf16.msra.mxu0 0
    %1558 = vmatprep.subr.bf16.mxu0 0
    %1559 = vmatpush1.bf16.msra.mxu0 0
    %1560 = vmatprep.subr.bf16.mxu0 0
    %1561 = vmatpush1.bf16.msra.mxu0 0
    %1562 = vmatprep.subr.bf16.mxu0 0
    %1563 = vmatpush1.bf16.msra.mxu0 0
    %1564 = vmatprep.subr.bf16.mxu0 0
    %1565 = vmatpush1.bf16.msra.mxu0 0
    %1566 = vmatprep.subr.bf16.mxu0 0
    %1567 = vmatpush1.bf16.msra.mxu0 0
    %1568 = vmatprep.subr.bf16.mxu0 0
    %1569 = vmatpush1.bf16.msra.mxu0 0
    %1570 = vmatprep.mubr.bf16.mxu0 0
    %1571 = vmatmul.mubr.bf16.gmra.mrb[0].mxu0 %v1536
    %v1572 = vpop.f32.mrb[0].mxu0
    %v1573 = vadd.f32 0.0, %v1572
    %v1574 = vpop.f32.mrb[0].mxu0
    %v1575 = vpop.f32.mrb[0].mxu0
    %v1576 = vpop.f32.mrb[0].mxu0
    %1577 = vdwg.mxu0
    %v1578 = vadd.f32 %v1532, %v1573
    %v1579 = vxor.u32 %v1578, 2147483648
    %v1580 = vmul.f32 %v1579, 1.442695
    %v1581 = vpow.pop %v1580
    %v1582 = vadd.f32 %v1581, 1.0
    %v1583 = vrcp.pop %v1582
    %v1584 = vmul.f32 1.0, %v1583
    %v1585 = vtanh.pop %v1578
    %v1586 = vmul.f32 %v1584, %v1410
    %1588 = vrot.lane.b32.xlu0 %v1585, 64
    %v1589 = vpop.permute.xlu0 %1588
    %v1591 = vmul.f32 %v1584, %v1589
    %1593 = vrot.lane.b32.xlu0 %v1591, 32
    %v1594 = vpop.permute.xlu0 %1593
    %v1596 = vadd.f32 %v1586, %v1594
    %v1597 = vtanh.pop %v1596
    %1599 = vrot.lane.b32.xlu0 %v1597, 64
    %v1600 = vpop.permute.xlu0 %1599
    %v1602 = vmul.f32 %v1584, %v1600
    %v1603 = vpack.c.bf16 %v1602, %v1602
    %v1606 = vunpack.c.l.s4 1966171168
    %v1607 = vunpack.c.0.s8 %v1606
    %v1608 = vlaneseq
    %v1609 = vshrl.u32 %v1608, 7
    %v1610 = vsub.s32 %v1607, %v1609
    %v1611 = vrot.slane %v1603, %v1610
    %v1613 = vunpack.c.l.s4 1966171168
    %v1614 = vunpack.c.0.s8 %v1613
    %v1615 = vlaneseq
    %v1616 = vshrl.u32 %v1615, 7
    %v1617 = vsub.s32 %v1614, %v1616
    %v1618 = vrot.slane %v1611, %v1617
    %1619 = vrot.lane.b32.xlu0 %v1618, 32
    %v1620 = vpop.permute.xlu0 %1619
    %s1622 = scalar_lea.vmem %s4, 7
    %1623 = vst.msk [vmem:[%s1622] sm:$0x1] %vm305, %v1620
    %v1624 = vld [vmem:[#allocation7] sm:$0x3]
    %1625 = vrot.lane.b32.xlu0 %v1510, 32
    %v1626 = vpop.permute.xlu0 %1625
    %v1628 = vsel %vm213, %v1626, 0
    %1630 = vmatprep.subr.bf16.mxu0 0
    %1631 = vmatpush1.bf16.msra.mxu0 %v318
    %1632 = vmatprep.subr.bf16.mxu0 0
    %1633 = vmatpush1.bf16.msra.mxu0 %v319
    %1634 = vmatprep.subr.bf16.mxu0 0
    %1635 = vmatpush1.bf16.msra.mxu0 0
    %1636 = vmatprep.subr.bf16.mxu0 0
    %1637 = vmatpush1.bf16.msra.mxu0 0
    %1638 = vmatprep.subr.bf16.mxu0 0
    %1639 = vmatpush1.bf16.msra.mxu0 0
    %1640 = vmatprep.subr.bf16.mxu0 0
    %1641 = vmatpush1.bf16.msra.mxu0 0
    %1642 = vmatprep.subr.bf16.mxu0 0
    %1643 = vmatpush1.bf16.msra.mxu0 0
    %1644 = vmatprep.subr.bf16.mxu0 0
    %1645 = vmatpush1.bf16.msra.mxu0 0
    %1646 = vmatprep.subr.bf16.mxu0 0
    %1647 = vmatpush1.bf16.msra.mxu0 0
    %1648 = vmatprep.subr.bf16.mxu0 0
    %1649 = vmatpush1.bf16.msra.mxu0 0
    %1650 = vmatprep.subr.bf16.mxu0 0
    %1651 = vmatpush1.bf16.msra.mxu0 0
    %1652 = vmatprep.subr.bf16.mxu0 0
    %1653 = vmatpush1.bf16.msra.mxu0 0
    %1654 = vmatprep.subr.bf16.mxu0 0
    %1655 = vmatpush1.bf16.msra.mxu0 0
    %1656 = vmatprep.subr.bf16.mxu0 0
    %1657 = vmatpush1.bf16.msra.mxu0 0
    %1658 = vmatprep.subr.bf16.mxu0 0
    %1659 = vmatpush1.bf16.msra.mxu0 0
    %1660 = vmatprep.subr.bf16.mxu0 0
    %1661 = vmatpush1.bf16.msra.mxu0 0
    %1662 = vmatprep.mubr.bf16.mxu0 0
    %1663 = vmatmul.mubr.bf16.gmra.mrb[0].mxu0 %v1628
    %v1664 = vpop.f32.mrb[0].mxu0
    %v1665 = vadd.f32 0.0, %v1664
    %v1666 = vpop.f32.mrb[0].mxu0
    %v1667 = vpop.f32.mrb[0].mxu0
    %v1668 = vpop.f32.mrb[0].mxu0
    %1669 = vdwg.mxu0
    %v1670 = vadd.f32 %v1624, %v1665
    %v1671 = vxor.u32 %v1670, 2147483648
    %v1672 = vmul.f32 %v1671, 1.442695
    %v1673 = vpow.pop %v1672
    %v1674 = vadd.f32 %v1673, 1.0
    %v1675 = vrcp.pop %v1674
    %v1676 = vmul.f32 1.0, %v1675
    %v1677 = vtanh.pop %v1670
    %v1678 = vmul.f32 %v1676, %v1503
    %1680 = vrot.lane.b32.xlu0 %v1677, 64
    %v1681 = vpop.permute.xlu0 %1680
    %v1683 = vmul.f32 %v1676, %v1681
    %1685 = vrot.lane.b32.xlu0 %v1683, 32
    %v1686 = vpop.permute.xlu0 %1685
    %v1688 = vadd.f32 %v1678, %v1686
    %v1689 = vtanh.pop %v1688
    %1691 = vrot.lane.b32.xlu0 %v1689, 64
    %v1692 = vpop.permute.xlu0 %1691
    %v1694 = vmul.f32 %v1676, %v1692
    %v1695 = vpack.c.bf16 %v1694, %v1694
    %v1698 = vunpack.c.l.s4 1966171168
    %v1699 = vunpack.c.0.s8 %v1698
    %v1700 = vlaneseq
    %v1701 = vshrl.u32 %v1700, 7
    %v1702 = vsub.s32 %v1699, %v1701
    %v1703 = vrot.slane %v1695, %v1702
    %v1705 = vunpack.c.l.s4 1966171168
    %v1706 = vunpack.c.0.s8 %v1705
    %v1707 = vlaneseq
    %v1708 = vshrl.u32 %v1707, 7
    %v1709 = vsub.s32 %v1706, %v1708
    %v1710 = vrot.slane %v1703, %v1709
    %1711 = vrot.lane.b32.xlu0 %v1710, 32
    %v1712 = vpop.permute.xlu0 %1711
    %1714 = vst.msk [vmem:[%s174] sm:$0x1] %vm305, %v1712
    %1716 = vrot.lane.b32.xlu0 %v1602, 32
    %v1717 = vpop.permute.xlu0 %1716
    %vm1719 = vcmask 254976
    %1720 = vst.msk [vmem:[#allocation2] sm:$0x3] %vm1719, %v1717
    %1722 = vrot.lane.b32.xlu0 %v1596, 96
    %v1723 = vpop.permute.xlu0 %1722
    %1725 = vst.msk [vmem:[#allocation3] sm:$0x3] %vm1719, %v1723
    %1727 = vrot.lane.b32.xlu0 %v1694, 32
    %v1728 = vpop.permute.xlu0 %1727
    %1730 = vst.msk [vmem:[#allocation4] sm:$0x3] %vm1719, %v1728
    %1732 = vrot.lane.b32.xlu0 %v1688, 96
    %v1733 = vpop.permute.xlu0 %1732
    %1735 = vst.msk [vmem:[#allocation5] sm:$0x3] %vm1719, %v1733
    %s1736 = ssub.s32 0, 0
    %s1737 = smul.u32 8, %s1736
    %p1738 = scmp.lt.s32.totalorder %s1737, 7
    %s1739 = scalar_select %p1738, %s1737, 7
    %s1740 = scalar_lea.vmem %s5, %s1739
    // Predicated region
    $region104: #{sentence_classifier2_forward.5} parent=1 // pred_check
      _
    $region105: #{sentence_classifier2_forward.5} parent=1 // pred_check_branch
      %1742 = sbr.rel (0) target = $region107
    $region106: #{sentence_classifier2_forward.5} parent=1 // pred_region
      _
    $region107: #{sentence_classifier2_forward.5} parent=1 // pred_fallthru
      _
    // Predicated region
    $region108: #{sentence_classifier2_forward.5} parent=1 // pred_check
      _
    $region109: #{sentence_classifier2_forward.5} parent=1 // pred_check_branch
      %1744 = sbr.rel (0) target = $region111
    $region110: #{sentence_classifier2_forward.5} parent=1 // pred_region
      %s1745 = ssub.s32 0, 0
      %s1746 = smul.u32 8, %s1745
    $region111: #{sentence_classifier2_forward.5} parent=1 // pred_fallthru
      _
    // Predicated region
    $region112: #{sentence_classifier2_forward.5} parent=1 // pred_check
      _
    $region113: #{sentence_classifier2_forward.5} parent=1 // pred_check_branch
      %1748 = sbr.rel (0) target = $region115
    $region114: #{sentence_classifier2_forward.5} parent=1 // pred_region
      _
    $region115: #{sentence_classifier2_forward.5} parent=1 // pred_fallthru
      _
    // Predicated region
    $region116: #{sentence_classifier2_forward.5} parent=1 // pred_check
      _
    $region117: #{sentence_classifier2_forward.5} parent=1 // pred_check_branch
      %1750 = sbr.rel (0) target = $region119
    $region118: #{sentence_classifier2_forward.5} parent=1 // pred_region
      %s1751 = ssub.s32 0, 0
      %s1752 = smul.u32 8, %s1751
      %p1753 = scmp.lt.s32.totalorder %s1752, 7
      %s1754 = scalar_select %p1753, %s1752, 7
      %s1755 = scalar_lea.vmem %s5, %s1754
    $region119: #{sentence_classifier2_forward.5} parent=1 // pred_fallthru
      _

</llo_original>
